<compile_context>
chip_gen: v7x
topology: tpu7x:2x2x1
jax: 0.10.0
libtpu: 0.0.40
codegen_flags: <defaults>
</compile_context>

<pallas_src>
import functools

import jax
import jax.numpy as jnp
import numpy as np
from jax.experimental import pallas as pl
from jax.experimental.pallas import tpu as pltpu

_MATMUL_DTYPE = jnp.bfloat16  # bf16 MXU inputs; accumulation stays f32.


# ---------------------------------------------------------------------------
# Pallas kernel: build frames -> (frames @ [cos|sin]) -> power -> mel -> log
# ---------------------------------------------------------------------------
def _mel_kernel(body_ref, tail_ref, dft_ref, fb_ref, inv_norm_ref, out_ref, *,
                n_freq_p, n_shifts):
    body = body_ref[0]                       # (tile_m, hop) f32 audio chunks
    tail = tail_ref[0]                       # (tail_chunks, hop) f32 chunks after tile
    tm = body.shape[0]

    # Frame r = chunks [r, r+1, ..., r+n_shifts-1] concatenated (hop | n_fft).
    combined = jnp.concatenate([body, tail], axis=0)        # (tile_m + tail, hop)
    cols = [combined[s:s + tm, :] for s in range(n_shifts)]
    frames = jnp.concatenate(cols, axis=1)                   # (tile_m, n_fft) f32

    # Single MXU pass: Hann window folded into merged [cos|sin] DFT basis.
    rei = jnp.dot(frames.astype(dft_ref.dtype), dft_ref[...],
                  preferred_element_type=jnp.float32)        # (tile_m, 2*Fp) f32
    re = rei[:, :n_freq_p]
    im = rei[:, n_freq_p:]
    power = re * re + im * im                                # |STFT|^2 (f32)

    mel = jnp.dot(power.astype(fb_ref.dtype), fb_ref[...],
                  preferred_element_type=jnp.float32)        # (tile_m, Mp) f32
    # TODO(synk): on v6e/v7x the f32 log on the single EUP port can rival the
    # bf16 MXU time per step; a bf16 log is possible if accuracy budget allows.
    mel = jnp.log(jnp.maximum(mel, jnp.float32(1e-5)))       # log(clamp)
    out_ref[0] = mel * inv_norm_ref[...]                     # * 1/mel_norms


# ---------------------------------------------------------------------------
# Constant construction (plain numpy glue; one-time cost)
# ---------------------------------------------------------------------------
def _hann_window_periodic(n):
    k = np.arange(n, dtype=np.float64)
    return 0.5 - 0.5 * np.cos(2.0 * np.pi * k / n)


def _dft_matrices(n_fft, n_freq):
    # Real-FFT basis restricted to the first n_freq bins.
    k = np.arange(n_fft, dtype=np.float64)[:, None]
    f = np.arange(n_freq, dtype=np.float64)[None, :]
    ang = 2.0 * np.pi * k * f / n_fft
    return np.cos(ang), -np.sin(ang)


def _mel_filterbank(n_freqs, f_min, f_max, n_mels, sample_rate):
    # torchaudio.functional.melscale_fbanks(mel_scale='htk', norm='slaney')
    def hz_to_mel(f):
        return 2595.0 * np.log10(1.0 + f / 700.0)

    def mel_to_hz(m):
        return 700.0 * (10.0 ** (m / 2595.0) - 1.0)

    all_freqs = np.linspace(0.0, sample_rate // 2, n_freqs)
    m_pts = np.linspace(hz_to_mel(f_min), hz_to_mel(f_max), n_mels + 2)
    f_pts = mel_to_hz(m_pts)
    f_diff = f_pts[1:] - f_pts[:-1]                          # (n_mels+1,)
    slopes = f_pts[None, :] - all_freqs[:, None]             # (n_freqs, n_mels+2)
    down = -slopes[:, :-2] / f_diff[:-1]
    up = slopes[:, 2:] / f_diff[1:]
    fb = np.maximum(0.0, np.minimum(down, up))               # (n_freqs, n_mels)
    enorm = 2.0 / (f_pts[2:n_mels + 2] - f_pts[:n_mels])     # slaney norm
    return fb * enorm[None, :]


def _round_up(x, m):
    return (x + m - 1) // m * m


# ---------------------------------------------------------------------------
# Wrapper: reflect pad + chunk reshape + pallas_call (framing happens in-kernel)
# ---------------------------------------------------------------------------
def torch_mel_spectrogram(
    inp,
    mel_norms,
    *,
    filter_length=1024,
    hop_length=256,
    win_length=1024,
    n_mel_channels=80,
    mel_fmin=0.0,
    mel_fmax=8000.0,
    sampling_rate=22050,
):
    if inp.ndim == 3:
        inp = jnp.squeeze(inp, axis=1)
    assert inp.ndim == 2
    inp = inp.astype(jnp.float32)
    B, T = inp.shape
    n_fft = filter_length
    hop = hop_length
    n_freq = n_fft // 2 + 1
    # TODO(synk): in-kernel framing assumes hop divides n_fft (true for tortoise).
    assert n_fft % hop == 0
    n_shifts = n_fft // hop                                   # 4 for defaults

    # ---- constants (numpy, host side) -------------------------------------
    fb_full = _mel_filterbank(n_freq, mel_fmin, mel_fmax, n_mel_channels,
                              sampling_rate)                  # (n_freq, n_mels)
    nz = np.nonzero(np.any(fb_full != 0.0, axis=1))[0]
    f_used = int(nz[-1]) + 1 if nz.size else 1                # 372 for defaults
    Fp = _round_up(f_used, 128)                               # 384 for defaults
    Mp = _round_up(n_mel_channels, 128)                       # 128 for defaults

    win = np.zeros(n_fft, dtype=np.float64)
    lpad = (n_fft - win_length) // 2
    win[lpad:lpad + win_length] = _hann_window_periodic(win_length)

    cos_np, sin_np = _dft_matrices(n_fft, f_used)             # (n_fft, f_used)
    dft_np = np.zeros((n_fft, 2 * Fp), dtype=np.float32)
    dft_np[:, :f_used] = win[:, None] * cos_np
    dft_np[:, Fp:Fp + f_used] = win[:, None] * sin_np
    dft = jnp.asarray(dft_np).astype(_MATMUL_DTYPE)

    fb_p = jnp.zeros((Fp, Mp), jnp.float32).at[:f_used, :n_mel_channels].set(
        jnp.asarray(fb_full[:f_used].astype(np.float32))).astype(_MATMUL_DTYPE)

    inv_norms = jnp.ones((1, Mp), jnp.float32).at[0, :n_mel_channels].set(
        1.0 / mel_norms.astype(jnp.float32))

    # ---- chunked audio (no gather, no duplicated frames intermediate) -----
    n_frames = T // hop + 1
    tile_m = min(512, _round_up(n_frames, 128))               # rows per MXU tile
    n_tiles = pl.cdiv(n_frames, tile_m)
    tail_chunks = _round_up(max(n_shifts - 1, 1), 8)          # 8 for defaults
    n_chunks = n_tiles * tile_m + tail_chunks

    x_pad = jnp.pad(inp, ((0, 0), (n_fft // 2, n_fft // 2)), mode="reflect")
    x_pad = jnp.pad(x_pad, ((0, 0), (0, n_chunks * hop - x_pad.shape[1])))
    x_chunks = x_pad.reshape(B, n_chunks, hop)                # (B, C, hop) f32

    kernel = functools.partial(_mel_kernel, n_freq_p=Fp, n_shifts=n_shifts)

    Np = n_tiles * tile_m
    out = pl.pallas_call(
        kernel,
        out_shape=jax.ShapeDtypeStruct((B, Np, Mp), jnp.float32),
        grid_spec=pltpu.PrefetchScalarGridSpec(
            num_scalar_prefetch=0,
            grid=(B, n_tiles),
            in_specs=[
                # tile_m chunks belonging to this tile's frames
                pl.BlockSpec((1, tile_m, hop), lambda b, i: (b, i, 0)),
                # the next 8 chunks (overlap into the following tile)
                pl.BlockSpec((1, tail_chunks, hop),
                             lambda b, i: (b, (i + 1) * (tile_m // tail_chunks), 0)),
                pl.BlockSpec((n_fft, 2 * Fp), lambda b, i: (0, 0)),   # [cos|sin] (resident)
                pl.BlockSpec((Fp, Mp), lambda b, i: (0, 0)),          # mel fbank (resident)
                pl.BlockSpec((1, Mp), lambda b, i: (0, 0)),           # 1/mel_norms (resident)
            ],
            out_specs=pl.BlockSpec((1, tile_m, Mp), lambda b, i: (b, i, 0)),
        ),
        compiler_params=pltpu.CompilerParams(
            dimension_semantics=("parallel", "parallel"),  # batch x frame-tiles
            vmem_limit_bytes=32 << 20,                     # fits v5e/v6e/v7x budgets
        ),
    )(x_chunks, x_chunks, dft, fb_p, inv_norms)

    # Back to PyTorch layout (B, n_mels, n_frames).
    mel = out[:, :n_frames, :n_mel_channels]
    return jnp.transpose(mel, (0, 2, 1))


if __name__ == "__main__":
    key = jax.random.PRNGKey(0)
    B, T = 2, 2048  # small audio: 2 batches, 2048 samples -> 9 frames of 80 mels
    x = jax.random.normal(key, (B, 1, T), dtype=jnp.float32)  # (B, 1, T)

    # Deterministic synthetic mel_norms (replaces torch.load(mel_norms.pth)).
    mel_norms = jnp.linspace(0.5, 2.0, 80, dtype=jnp.float32)

    mel = torch_mel_spectrogram(x, mel_norms)
    jax.block_until_ready(mel)
    assert mel.shape == (B, 80, T // 256 + 1)
    assert bool(jnp.all(jnp.isfinite(mel)))
    print("KERNEL_OK")
</pallas_src>

<mosaic_0001>
module attributes {stable_mosaic.version = 11 : i64} {
  func.func @_mel_kernel(%arg0: i32, %arg1: i32, %arg2: memref<1x128x256xf32, #tpu.memory_space<vmem>>, %arg3: memref<1x8x256xf32, #tpu.memory_space<vmem>>, %arg4: memref<1024x768xbf16, #tpu.memory_space<vmem>>, %arg5: memref<384x128xbf16, #tpu.memory_space<vmem>>, %arg6: memref<1x128xf32, #tpu.memory_space<vmem>>, %arg7: memref<1x128x128xf32, #tpu.memory_space<vmem>>) attributes {dimension_semantics = [#tpu.dimension_semantics<parallel>, #tpu.dimension_semantics<parallel>], iteration_bounds = array<i64: 2, 1>, scalar_prefetch = 0 : i64, scratch_operands = 0 : i64, tpu.core_type = #tpu.core_type<tc>, window_params = [{transform_indices = @transform_0, window_bounds = array<i64: 1, 128, 256>}, {transform_indices = @transform_1, window_bounds = array<i64: 1, 8, 256>}, {pipeline_mode = #tpu.pipeline_mode<synchronous>, transform_indices = @transform_2, window_bounds = array<i64: 1024, 768>}, {pipeline_mode = #tpu.pipeline_mode<synchronous>, transform_indices = @transform_3, window_bounds = array<i64: 384, 128>}, {pipeline_mode = #tpu.pipeline_mode<synchronous>, transform_indices = @transform_4, window_bounds = array<i64: 1, 128>}, {transform_indices = @transform_5, window_bounds = array<i64: 1, 128, 128>}]} {
    %c0 = arith.constant 0 : index
    %c0_0 = arith.constant 0 : index
    %c0_1 = arith.constant 0 : index
    %0 = vector.load %arg2[%c0, %c0_0, %c0_1] : memref<1x128x256xf32, #tpu.memory_space<vmem>>, vector<1x128x256xf32>
    %1 = vector.shape_cast %0 : vector<1x128x256xf32> to vector<128x256xf32>
    %c0_2 = arith.constant 0 : index
    %c0_3 = arith.constant 0 : index
    %c0_4 = arith.constant 0 : index
    %2 = vector.load %arg3[%c0_2, %c0_3, %c0_4] : memref<1x8x256xf32, #tpu.memory_space<vmem>>, vector<1x8x256xf32>
    %3 = vector.shape_cast %2 : vector<1x8x256xf32> to vector<8x256xf32>
    %4 = tpu.concatenate %1, %3 in 0 : vector<128x256xf32>, vector<8x256xf32> -> vector<136x256xf32>
    %5 = vector.extract_strided_slice %4 {offsets = [0, 0], sizes = [128, 256], strides = [1, 1]} : vector<136x256xf32> to vector<128x256xf32>
    %6 = vector.extract_strided_slice %4 {offsets = [1, 0], sizes = [128, 256], strides = [1, 1]} : vector<136x256xf32> to vector<128x256xf32>
    %7 = vector.extract_strided_slice %4 {offsets = [2, 0], sizes = [128, 256], strides = [1, 1]} : vector<136x256xf32> to vector<128x256xf32>
    %8 = vector.extract_strided_slice %4 {offsets = [3, 0], sizes = [128, 256], strides = [1, 1]} : vector<136x256xf32> to vector<128x256xf32>
    %9 = tpu.concatenate %5, %6, %7, %8 in 1 : vector<128x256xf32>, vector<128x256xf32>, vector<128x256xf32>, vector<128x256xf32> -> vector<128x1024xf32>
    %10 = arith.truncf %9 : vector<128x1024xf32> to vector<128x1024xbf16>
    %c0_5 = arith.constant 0 : index
    %c0_6 = arith.constant 0 : index
    %11 = vector.load %arg4[%c0_5, %c0_6] : memref<1024x768xbf16, #tpu.memory_space<vmem>>, vector<1024x768xbf16>
    %cst = arith.constant dense<0.000000e+00> : vector<128x768xf32>
    %12 = tpu.matmul %10, %11, %cst {dimension_numbers = #tpu.dot_dimension_numbers<[1], [0], [0], [1], [0, 0, 1, 1], [], []>} : vector<128x1024xbf16>, vector<1024x768xbf16>, vector<128x768xf32> -> vector<128x768xf32>
    %13 = vector.extract_strided_slice %12 {offsets = [0, 0], sizes = [128, 384], strides = [1, 1]} : vector<128x768xf32> to vector<128x384xf32>
    %14 = vector.extract_strided_slice %12 {offsets = [0, 384], sizes = [128, 384], strides = [1, 1]} : vector<128x768xf32> to vector<128x384xf32>
    %15 = arith.mulf %13, %13 : vector<128x384xf32>
    %16 = arith.mulf %14, %14 : vector<128x384xf32>
    %17 = arith.addf %15, %16 : vector<128x384xf32>
    %18 = arith.truncf %17 : vector<128x384xf32> to vector<128x384xbf16>
    %c0_7 = arith.constant 0 : index
    %c0_8 = arith.constant 0 : index
    %19 = vector.load %arg5[%c0_7, %c0_8] : memref<384x128xbf16, #tpu.memory_space<vmem>>, vector<384x128xbf16>
    %cst_9 = arith.constant dense<0.000000e+00> : vector<128x128xf32>
    %20 = tpu.matmul %18, %19, %cst_9 {dimension_numbers = #tpu.dot_dimension_numbers<[1], [0], [0], [1], [0, 0, 1, 1], [], []>} : vector<128x384xbf16>, vector<384x128xbf16>, vector<128x128xf32> -> vector<128x128xf32>
    %cst_10 = arith.constant 9.99999974E-6 : f32
    %21 = vector.broadcast %cst_10 : f32 to vector<128x128xf32>
    %22 = arith.maximumf %20, %21 : vector<128x128xf32>
    %23 = math.log %22 : vector<128x128xf32>
    %c0_11 = arith.constant 0 : index
    %c0_12 = arith.constant 0 : index
    %24 = vector.load %arg6[%c0_11, %c0_12] : memref<1x128xf32, #tpu.memory_space<vmem>>, vector<1x128xf32>
    %25 = vector.broadcast %24 : vector<1x128xf32> to vector<128x128xf32>
    %26 = arith.mulf %23, %25 : vector<128x128xf32>
    %c0_13 = arith.constant 0 : index
    %c0_14 = arith.constant 0 : index
    %c0_15 = arith.constant 0 : index
    %27 = vector.load %arg7[%c0_13, %c0_14, %c0_15] : memref<1x128x128xf32, #tpu.memory_space<vmem>>, vector<1x128x128xf32>
    %28 = vector.shape_cast %27 : vector<1x128x128xf32> to vector<128x128xf32>
    %29 = vector.shape_cast %26 : vector<128x128xf32> to vector<1x128x128xf32>
    tpu.vector_store %arg7[%c0_13, %c0_14, %c0_15], %29 {strides = array<i32>} : memref<1x128x128xf32, #tpu.memory_space<vmem>>, vector<1x128x128xf32>,
    return
  }
  func.func @transform_0(%arg0: i32, %arg1: i32) -> (i32, i32, i32) {
    %c0_i32 = arith.constant 0 : i32
    %c0_i32_0 = arith.constant 0 : i32
    return %arg0, %arg1, %c0_i32 : i32, i32, i32
  }
  func.func @transform_1(%arg0: i32, %arg1: i32) -> (i32, i32, i32) {
    %c1_i32 = arith.constant 1 : i32
    %0 = arith.addi %arg1, %c1_i32 : i32
    %c16_i32 = arith.constant 16 : i32
    %1 = arith.muli %0, %c16_i32 : i32
    %c0_i32 = arith.constant 0 : i32
    %c0_i32_0 = arith.constant 0 : i32
    return %arg0, %1, %c0_i32 : i32, i32, i32
  }
  func.func @transform_2(%arg0: i32, %arg1: i32) -> (i32, i32) {
    %c0_i32 = arith.constant 0 : i32
    %c0_i32_0 = arith.constant 0 : i32
    %c0_i32_1 = arith.constant 0 : i32
    return %c0_i32, %c0_i32_0 : i32, i32
  }
  func.func @transform_3(%arg0: i32, %arg1: i32) -> (i32, i32) {
    %c0_i32 = arith.constant 0 : i32
    %c0_i32_0 = arith.constant 0 : i32
    %c0_i32_1 = arith.constant 0 : i32
    return %c0_i32, %c0_i32_0 : i32, i32
  }
  func.func @transform_4(%arg0: i32, %arg1: i32) -> (i32, i32) {
    %c0_i32 = arith.constant 0 : i32
    %c0_i32_0 = arith.constant 0 : i32
    %c0_i32_1 = arith.constant 0 : i32
    return %c0_i32, %c0_i32_0 : i32, i32
  }
  func.func @transform_5(%arg0: i32, %arg1: i32) -> (i32, i32, i32) {
    %c0_i32 = arith.constant 0 : i32
    %c0_i32_0 = arith.constant 0 : i32
    return %arg0, %arg1, %c0_i32 : i32, i32, i32
  }
}

</mosaic_0001>

<llo_original>
// kernel: tpu_custom_call.1
$region0: #{tpu_custom_call.1}
  #allocation0 [shape = 'u32[]', space=smem, size = 0x4, offset = 0x4, fixed_abs, tag = 'smem constant byte address 0x4 - core index']
  #allocation1 [shape = 'u32[144,128]{1,0:T(1,128)}', space=vmem, size = 0x12000, scoped, tag = 'internal scratch']
  %s0 = inlined_call_operand.hbm [shape: f32[2,136,256], index: 0, kind: input, shape index: {}]
  %s1 = inlined_call_operand.hbm [shape: f32[2,136,256], index: 1, kind: input, shape index: {}]
  %s2 = inlined_call_operand.hbm [shape: bf16[1024,768], index: 2, kind: input, shape index: {}]
  %s3 = inlined_call_operand.hbm [shape: bf16[384,128], index: 3, kind: input, shape index: {}]
  %s4 = inlined_call_operand.hbm [shape: f32[1,128], index: 4, kind: input, shape index: {}]
  %s5 = inlined_call_operand.hbm [shape: f32[2,128,128], index: 5, kind: output, shape index: {}]
  %s6 = sld [smem:[#allocation0]]
  $region73: #{tpu_custom_call.1} parent=0
    _
  %s8 = ssub.s32 1, %s6
  %s9 = scalar_select 0, %s8, %s6
  $region1: #{tpu_custom_call.1} parent=0
    #allocation2 [shape = 'u8[262144]{0}', space=vmem, size = 0x40000, scoped, tag = 'input window, operand 0']
    #allocation3 [shape = 's32[2]{0}', space=sflag, size = 0x8, scoped, tag = 'scoped memory for tpu_custom_call.1']
    #allocation4 [shape = 's32[2]{0}', space=sflag, size = 0x8, scoped, tag = 'scoped memory for tpu_custom_call.1']
    #allocation5 [shape = 'u8[16384]{0}', space=vmem, size = 0x4000, scoped, tag = 'input window, operand 1']
    #allocation6 [shape = 's32[2]{0}', space=sflag, size = 0x8, scoped, tag = 'scoped memory for tpu_custom_call.1']
    #allocation7 [shape = 'u8[1572864]{0}', space=vmem, size = 0x180000, scoped, tag = 'input window, operand 2, single buffered']
    #allocation8 [shape = 'u8[98304]{0}', space=vmem, size = 0x18000, scoped, tag = 'input window, operand 3, single buffered']
    #allocation9 [shape = 's32[1]{0}', space=sflag, size = 0x4, scoped, tag = 'scoped memory for tpu_custom_call.1']
    #allocation10 [shape = 'u8[512]{0}', space=vmem, size = 0x400, scoped, tag = 'input window, operand 4, single buffered']
    #allocation11 [shape = 'u8[131072]{0}', space=vmem, size = 0x20000, scoped, tag = 'output window, operand 0']
    %10 = vsyncpa [#allocation3], 0
    %s11 = scalar_lea.sflag [#allocation3], 1
    %12 = vsyncpa %s11, 0
    %13 = vsyncpa [#allocation6], 0
    %s14 = scalar_lea.sflag [#allocation6], 1
    %15 = vsyncpa %s14, 0
    %16 = vsyncpa [#allocation9], 0
    %17 = vsyncpa [#allocation4], 0
    %s18 = scalar_lea.sflag [#allocation4], 1
    %19 = vsyncpa %s18, 0
    loop: start=0, step=1, limit=4
    $region2: #{tpu_custom_call.1} parent=1 // loop_pre_header
      _
    $region3: #{tpu_custom_call.1} parent=1 // loop_header
      %s21 = sphi 0, %s25
      %p22 = scmp.ge.s32.totalorder %s21, 4
      %s28 = sphi 0, %s40
      %s29 = sphi 0, %s36
      %s30 = sphi 0, %s28
      %s31 = sphi 0, %s29
      %s32 = sphi 0, %s30
      %s33 = sphi 0, %s31
      %s45 = sphi 0, %s47
      %s48 = sphi 0, %s45
      %s49 = sphi 0, %s48
      %s65 = sphi 0, %s49
      %s77 = sphi 0, %s79
      %s80 = sphi 0, %s77
      %s81 = sphi 0, %s80
      %s97 = sphi 0, %s81
      %s101 = sphi 0, %s101
      %s103 = sphi 0, %s101
      %s104 = sphi 0, %s103
      %s118 = sphi 0, %s104
      %s122 = sphi 0, %s122
      %s124 = sphi 0, %s122
      %s125 = sphi 0, %s124
      %s139 = sphi 0, %s125
      %s143 = sphi 0, %s143
      %s145 = sphi 0, %s143
      %s146 = sphi 0, %s145
      %s160 = sphi 0, %s146
      %s168 = sphi 0, %s170
      %s171 = sphi 0, %s168
      %s172 = sphi 0, %s171
      %s188 = sphi 0, %s172
    $region4: #{tpu_custom_call.1} parent=1 // loop_header_branch
      %24 = sbr.rel (%p22) target = $region8
    $region5: #{tpu_custom_call.1} parent=1 // loop_body
      %s26 = ssub.s32 %s21, 1
      %s27 = ssub.s32 %s21, 2
      %s34 = sadd.s32 1, %s29
      %p35 = scmp.ge.s32.totalorder %s34, 1
      %s36 = scalar_select %p35, 0, %s34
      %s37 = sadd.s32 1, %s28
      %s38 = scalar_select %p35, %s37, %s28
      %p39 = scmp.ge.s32.totalorder %s38, 2
      %s40 = scalar_select %p39, 0, %s38
      %s41 = ssub.s32 %s28, %s40
      %s42 = ssub.s32 %s29, %s36
      %s43 = sor.u32 %s41, %s42
      %p44 = scmp.eq.s32.totalorder %s43, 0
      %s46 = sadd.s32 %s45, 1
      %s47 = scalar_select %p44, %s45, %s46
      %p50 = pneg %p44
      %p51 = scmp.eq.s32.totalorder %s21, 1
      %p52 = por %p50, %p51
      %p53 = scmp.ne.s32.totalorder %s45, %s48
      %p54 = scmp.eq.s32.totalorder %s21, 0
      %p55 = por %p53, %p54
      %p56 = scmp.ne.s32.totalorder %s45, %s48
      %p57 = scmp.eq.s32.totalorder %s26, 1
      %p58 = por %p56, %p57
      %p59 = scmp.ne.s32.totalorder %s48, %s49
      %p60 = scmp.eq.s32.totalorder %s26, 0
      %p61 = por %p59, %p60
      %p62 = scmp.ne.s32.totalorder %s48, %s49
      %p63 = scmp.eq.s32.totalorder %s27, 1
      %p64 = por %p62, %p63
      %p66 = scmp.ne.s32.totalorder %s49, %s65
      %p67 = scmp.eq.s32.totalorder %s27, 0
      %p68 = por %p66, %p67
      %s69 = sadd.s32 %s29, 1
      %s70 = smul.u32 %s69, 16
      %s71 = sadd.s32 %s36, 1
      %s72 = smul.u32 %s71, 16
      %s73 = ssub.s32 %s28, %s40
      %s74 = ssub.s32 %s70, %s72
      %s75 = sor.u32 %s73, %s74
      %p76 = scmp.eq.s32.totalorder %s75, 0
      %s78 = sadd.s32 %s77, 1
      %s79 = scalar_select %p76, %s77, %s78
      %p82 = pneg %p76
      %p83 = scmp.eq.s32.totalorder %s21, 1
      %p84 = por %p82, %p83
      %p85 = scmp.ne.s32.totalorder %s77, %s80
      %p86 = scmp.eq.s32.totalorder %s21, 0
      %p87 = por %p85, %p86
      %p88 = scmp.ne.s32.totalorder %s77, %s80
      %p89 = scmp.eq.s32.totalorder %s26, 1
      %p90 = por %p88, %p89
      %p91 = scmp.ne.s32.totalorder %s80, %s81
      %p92 = scmp.eq.s32.totalorder %s26, 0
      %p93 = por %p91, %p92
      %p94 = scmp.ne.s32.totalorder %s80, %s81
      %p95 = scmp.eq.s32.totalorder %s27, 1
      %p96 = por %p94, %p95
      %p98 = scmp.ne.s32.totalorder %s81, %s97
      %p99 = scmp.eq.s32.totalorder %s27, 0
      %p100 = por %p98, %p99
      %s102 = sadd.s32 %s101, 1
      %p105 = scmp.eq.s32.totalorder %s21, 1
      %p106 = scmp.ne.s32.totalorder %s101, %s103
      %p107 = scmp.eq.s32.totalorder %s21, 0
      %p108 = por %p106, %p107
      %p109 = scmp.ne.s32.totalorder %s101, %s103
      %p110 = scmp.eq.s32.totalorder %s26, 1
      %p111 = por %p109, %p110
      %p112 = scmp.ne.s32.totalorder %s103, %s104
      %p113 = scmp.eq.s32.totalorder %s26, 0
      %p114 = por %p112, %p113
      %p115 = scmp.ne.s32.totalorder %s103, %s104
      %p116 = scmp.eq.s32.totalorder %s27, 1
      %p117 = por %p115, %p116
      %p119 = scmp.ne.s32.totalorder %s104, %s118
      %p120 = scmp.eq.s32.totalorder %s27, 0
      %p121 = por %p119, %p120
      %s123 = sadd.s32 %s122, 1
      %p126 = scmp.eq.s32.totalorder %s21, 1
      %p127 = scmp.ne.s32.totalorder %s122, %s124
      %p128 = scmp.eq.s32.totalorder %s21, 0
      %p129 = por %p127, %p128
      %p130 = scmp.ne.s32.totalorder %s122, %s124
      %p131 = scmp.eq.s32.totalorder %s26, 1
      %p132 = por %p130, %p131
      %p133 = scmp.ne.s32.totalorder %s124, %s125
      %p134 = scmp.eq.s32.totalorder %s26, 0
      %p135 = por %p133, %p134
      %p136 = scmp.ne.s32.totalorder %s124, %s125
      %p137 = scmp.eq.s32.totalorder %s27, 1
      %p138 = por %p136, %p137
      %p140 = scmp.ne.s32.totalorder %s125, %s139
      %p141 = scmp.eq.s32.totalorder %s27, 0
      %p142 = por %p140, %p141
      %s144 = sadd.s32 %s143, 1
      %p147 = scmp.eq.s32.totalorder %s21, 1
      %p148 = scmp.ne.s32.totalorder %s143, %s145
      %p149 = scmp.eq.s32.totalorder %s21, 0
      %p150 = por %p148, %p149
      %p151 = scmp.ne.s32.totalorder %s143, %s145
      %p152 = scmp.eq.s32.totalorder %s26, 1
      %p153 = por %p151, %p152
      %p154 = scmp.ne.s32.totalorder %s145, %s146
      %p155 = scmp.eq.s32.totalorder %s26, 0
      %p156 = por %p154, %p155
      %p157 = scmp.ne.s32.totalorder %s145, %s146
      %p158 = scmp.eq.s32.totalorder %s27, 1
      %p159 = por %p157, %p158
      %p161 = scmp.ne.s32.totalorder %s146, %s160
      %p162 = scmp.eq.s32.totalorder %s27, 0
      %p163 = por %p161, %p162
      %s164 = ssub.s32 %s28, %s40
      %s165 = ssub.s32 %s29, %s36
      %s166 = sor.u32 %s164, %s165
      %p167 = scmp.eq.s32.totalorder %s166, 0
      %s169 = sadd.s32 %s168, 1
      %s170 = scalar_select %p167, %s168, %s169
      %p173 = pneg %p167
      %p174 = scmp.eq.s32.totalorder %s21, 1
      %p175 = por %p173, %p174
      %p176 = scmp.ne.s32.totalorder %s168, %s171
      %p177 = scmp.eq.s32.totalorder %s21, 0
      %p178 = por %p176, %p177
      %p179 = scmp.ne.s32.totalorder %s168, %s171
      %p180 = scmp.eq.s32.totalorder %s26, 1
      %p181 = por %p179, %p180
      %p182 = scmp.ne.s32.totalorder %s171, %s172
      %p183 = scmp.eq.s32.totalorder %s26, 0
      %p184 = por %p182, %p183
      %p185 = scmp.ne.s32.totalorder %s171, %s172
      %p186 = scmp.eq.s32.totalorder %s27, 1
      %p187 = por %p185, %p186
      %p189 = scmp.ne.s32.totalorder %s172, %s188
      %p190 = scmp.eq.s32.totalorder %s27, 0
      %p191 = por %p189, %p190
      %p192 = scmp.le.s32.totalorder 1, %s21
      %p193 = scmp.lt.s32.totalorder %s21, 3
      %p194 = pnand %p192, %p193
      %p195 = pneg %p194
      // Predicated region
      $region9: #{tpu_custom_call.1} parent=5 // pred_check
        _
      $region10: #{tpu_custom_call.1} parent=5 // pred_check_branch
        %197 = sbr.rel (%p194) target = $region12
      $region11: #{tpu_custom_call.1} parent=5 // pred_region
        %s198 = ssub.s32 %s21, 1
        // Predicated region
        $region13: #{tpu_custom_call.1} parent=11 // pred_check
          %p199 = pneg %p114
        $region14: #{tpu_custom_call.1} parent=11 // pred_check_branch
          %201 = sbr.rel (%p199) target = $region16
        $region15: #{tpu_custom_call.1} parent=11 // pred_region
          %s203 = ssub.s32 49152, 49152
          %204 = vsyncadd [#allocation6], %s203
          %s205 = sshll.u32 [#allocation7], 4
          %s206 = int_to_ptr.vmem [resolvable:$true] %s205
          %211 = dma.hbm_to_vmem [thread:$0]  %s2, 49152, %s206, [#allocation6], 384, 384, 24
        $region16: #{tpu_custom_call.1} parent=11 // pred_fallthru
          _
        // Predicated region
        $region17: #{tpu_custom_call.1} parent=11 // pred_check
          %p212 = pneg %p135
        $region18: #{tpu_custom_call.1} parent=11 // pred_check_branch
          %214 = sbr.rel (%p212) target = $region20
        $region19: #{tpu_custom_call.1} parent=11 // pred_region
          %s216 = ssub.s32 3072, 3072
          %217 = vsyncadd [#allocation9], %s216
          %s218 = sshll.u32 [#allocation8], 4
          %s219 = int_to_ptr.vmem [resolvable:$true] %s218
          %224 = dma.hbm_to_vmem [thread:$0]  %s3, 3072, %s219, [#allocation9], 64, 64, 4
        $region20: #{tpu_custom_call.1} parent=11 // pred_fallthru
          _
        // Predicated region
        $region21: #{tpu_custom_call.1} parent=11 // pred_check
          %p225 = pneg %p156
        $region22: #{tpu_custom_call.1} parent=11 // pred_check_branch
          %227 = sbr.rel (%p225) target = $region24
        $region23: #{tpu_custom_call.1} parent=11 // pred_region
          %s229 = ssub.s32 16, 16
          %230 = vsyncadd [#allocation9], %s229
          %s232 = sshll.u32 [#allocation10], 4
          %s233 = int_to_ptr.vmem [resolvable:$true] %s232
          %235 = dma.hbm_to_vmem [thread:$0]  %s4, 16, %s233, [#allocation9]
        $region24: #{tpu_custom_call.1} parent=11 // pred_fallthru
          _
      $region12: #{tpu_custom_call.1} parent=5 // pred_fallthru
        _
      %p236 = scmp.lt.s32.totalorder %s21, 2
      // Predicated region
      $region25: #{tpu_custom_call.1} parent=5 // pred_check
        %p237 = pneg %p236
      $region26: #{tpu_custom_call.1} parent=5 // pred_check_branch
        %239 = sbr.rel (%p237) target = $region28
      $region27: #{tpu_custom_call.1} parent=5 // pred_region
        // Predicated region
        $region29: #{tpu_custom_call.1} parent=27 // pred_check
          %p240 = pneg %p55
        $region30: #{tpu_custom_call.1} parent=27 // pred_check_branch
          %242 = sbr.rel (%p240) target = $region32
        $region31: #{tpu_custom_call.1} parent=27 // pred_region
          %s243 = sand.u32 %s45, 1
          %s244 = scalar_lea.sflag [#allocation3], %s243
          %s245 = sand.u32 %s45, 1
          %s246 = smul.addr %s245, 256
          %s247 = scalar_lea.vmem [#allocation2], %s246
          %s248 = smul.u32 16, %s29
          %s249 = ssub.s32 17, %s248
          %p250 = scmp.lt.s32.totalorder %s249, 16
          %s251 = scalar_select %p250, %s249, 16
          %s252 = smul.u32 128, %s251
          %s253 = smul.u32 %s252, 2
          %s255 = ssub.s32 4096, %s253
          %256 = vsyncadd %s244, %s255
          %p257 = scmp.ne.s32.totalorder 0, %s253
          %s258 = smul.addr %s248, 2
          %s259 = smul.addr %s28, 34
          %s260 = sadd.s32 %s258, %s259
          %s261 = smul.addr %s260, 128
          %s262 = scalar_lea.hbm %s0, %s261
          %s263 = smul.u32 16, %s251
          %s264 = sshll.u32 %s247, 4
          %s265 = int_to_ptr.vmem [resolvable:$true] %s264
          %s266 = sshll.u32 %s263, 4
          %270 = dma.hbm_to_vmem [thread:$0]  (%p257), %s262, %s266, %s265, %s244, 256, 256, 16
        $region32: #{tpu_custom_call.1} parent=27 // pred_fallthru
          _
        // Predicated region
        $region33: #{tpu_custom_call.1} parent=27 // pred_check
          %p271 = pneg %p87
        $region34: #{tpu_custom_call.1} parent=27 // pred_check_branch
          %273 = sbr.rel (%p271) target = $region36
        $region35: #{tpu_custom_call.1} parent=27 // pred_region
          %s274 = sand.u32 %s21, 1
          %s275 = scalar_lea.sflag [#allocation6], %s274
          %s276 = sand.u32 %s77, 1
          %s277 = smul.addr %s276, 16
          %s278 = scalar_lea.vmem [#allocation5], %s277
          %s279 = sadd.s32 %s29, 1
          %s280 = smul.u32 %s279, 16
          %s282 = ssub.s32 256, 256
          %283 = vsyncadd %s275, %s282
          %s284 = smul.addr %s280, 2
          %s285 = smul.addr %s28, 34
          %s286 = sadd.s32 %s284, %s285
          %s287 = smul.addr %s286, 128
          %s288 = scalar_lea.hbm %s1, %s287
          %s290 = sshll.u32 %s278, 4
          %s291 = int_to_ptr.vmem [resolvable:$true] %s290
          %293 = dma.hbm_to_vmem [thread:$0]  %s288, 256, %s291, %s275
        $region36: #{tpu_custom_call.1} parent=27 // pred_fallthru
          _
      $region28: #{tpu_custom_call.1} parent=5 // pred_fallthru
        _
      %p294 = scmp.le.s32.totalorder 1, %s21
      %p295 = scmp.lt.s32.totalorder %s21, 3
      %p296 = pnand %p294, %p295
      %p297 = pneg %p296
      // Predicated region
      $region37: #{tpu_custom_call.1} parent=5 // pred_check
        _
      $region38: #{tpu_custom_call.1} parent=5 // pred_check_branch
        %299 = sbr.rel (%p296) target = $region40
      $region39: #{tpu_custom_call.1} parent=5 // pred_region
        %s300 = ssub.s32 %s21, 1
        %s301 = sand.u32 %s48, 1
        %s302 = scalar_lea.sflag [#allocation3], %s301
        %s303 = sand.u32 %s48, 1
        %s304 = smul.addr %s303, 256
        %s305 = scalar_lea.vmem [#allocation2], %s304
        // Predicated region
        $region41: #{tpu_custom_call.1} parent=39 // pred_check
          %p306 = pneg %p61
        $region42: #{tpu_custom_call.1} parent=39 // pred_check_branch
          %308 = sbr.rel (%p306) target = $region44
        $region43: #{tpu_custom_call.1} parent=39 // pred_region
          %309 = dma.done %s302, 4096
        $region44: #{tpu_custom_call.1} parent=39 // pred_fallthru
          _
        %s310 = sand.u32 %s26, 1
        %s311 = scalar_lea.sflag [#allocation6], %s310
        %s312 = sand.u32 %s80, 1
        %s313 = smul.addr %s312, 16
        %s314 = scalar_lea.vmem [#allocation5], %s313
        // Predicated region
        $region45: #{tpu_custom_call.1} parent=39 // pred_check
          %p315 = pneg %p93
        $region46: #{tpu_custom_call.1} parent=39 // pred_check_branch
          %317 = sbr.rel (%p315) target = $region48
        $region47: #{tpu_custom_call.1} parent=39 // pred_region
          %318 = dma.done %s311, 256
        $region48: #{tpu_custom_call.1} parent=39 // pred_fallthru
          _
        // Predicated region
        $region49: #{tpu_custom_call.1} parent=39 // pred_check
          %p319 = pneg %p114
        $region50: #{tpu_custom_call.1} parent=39 // pred_check_branch
          %321 = sbr.rel (%p319) target = $region52
        $region51: #{tpu_custom_call.1} parent=39 // pred_region
          %322 = dma.done [#allocation6], 49152
        $region52: #{tpu_custom_call.1} parent=39 // pred_fallthru
          _
        // Predicated region
        $region53: #{tpu_custom_call.1} parent=39 // pred_check
          %p323 = pneg %p135
        $region54: #{tpu_custom_call.1} parent=39 // pred_check_branch
          %325 = sbr.rel (%p323) target = $region56
        $region55: #{tpu_custom_call.1} parent=39 // pred_region
          %326 = dma.done [#allocation9], 3072
        $region56: #{tpu_custom_call.1} parent=39 // pred_fallthru
          _
        // Predicated region
        $region57: #{tpu_custom_call.1} parent=39 // pred_check
          %p327 = pneg %p156
        $region58: #{tpu_custom_call.1} parent=39 // pred_check_branch
          %329 = sbr.rel (%p327) target = $region60
        $region59: #{tpu_custom_call.1} parent=39 // pred_region
          %330 = dma.done [#allocation9], 16
        $region60: #{tpu_custom_call.1} parent=39 // pred_fallthru
          _
        %s331 = sand.u32 %s48, 1
        %s332 = scalar_lea.sflag [#allocation3], %s331
        %s333 = sand.u32 %s48, 1
        %s334 = smul.addr %s333, 256
        %s335 = scalar_lea.vmem [#allocation2], %s334
        %p336 = pneg %p61
        %p337 = pneg %p58
        %s338 = sand.u32 %s26, 1
        %s339 = scalar_lea.sflag [#allocation6], %s338
        %s340 = sand.u32 %s80, 1
        %s341 = smul.addr %s340, 16
        %s342 = scalar_lea.vmem [#allocation5], %s341
        %p343 = pneg %p93
        %p344 = pneg %p90
        %p345 = pneg %p114
        %p346 = pneg %p111
        %p347 = pneg %p135
        %p348 = pneg %p132
        %p349 = pneg %p156
        %p350 = pneg %p153
        %p351 = pneg %p184
        %p352 = pneg %p181
        %s353 = sand.u32 %s171, 1
        %s354 = scalar_lea.sflag [#allocation4], %s353
        %s355 = sand.u32 %s171, 1
        %s356 = smul.addr %s355, 128
        %s357 = scalar_lea.vmem [#allocation11], %s356
        %s358 = smul.u32 16, %s31
        %s359 = ssub.s32 17, %s358
        %p360 = scmp.lt.s32.totalorder %s359, 16
        %s361 = scalar_select %p360, %s359, 16
        %s362 = smul.u32 128, %s361
        %s363 = smul.u32 %s362, 2
        %s364 = sadd.s32 %s31, 1
        %s365 = smul.u32 %s364, 16
        %s366 = smul.u32 16, %s31
        %v368 = vld [vmem:[%s305] sm:$0xff]
        %v369 = vld [vmem:[%s305 + $0x8] sm:$0xff]
        %v370 = vld [vmem:[%s305 + $0x10] sm:$0xff]
        %v371 = vld [vmem:[%s305 + $0x18] sm:$0xff]
        %v372 = vld [vmem:[%s305 + $0x20] sm:$0xff]
        %v373 = vld [vmem:[%s305 + $0x28] sm:$0xff]
        %v374 = vld [vmem:[%s305 + $0x30] sm:$0xff]
        %v375 = vld [vmem:[%s305 + $0x38] sm:$0xff]
        %v376 = vld [vmem:[%s305 + $0x40] sm:$0xff]
        %v377 = vld [vmem:[%s305 + $0x48] sm:$0xff]
        %v378 = vld [vmem:[%s305 + $0x50] sm:$0xff]
        %v379 = vld [vmem:[%s305 + $0x58] sm:$0xff]
        %v380 = vld [vmem:[%s305 + $0x60] sm:$0xff]
        %v381 = vld [vmem:[%s305 + $0x68] sm:$0xff]
        %v382 = vld [vmem:[%s305 + $0x70] sm:$0xff]
        %v383 = vld [vmem:[%s305 + $0x78] sm:$0xff]
        %v384 = vld [vmem:[%s305 + $0x80] sm:$0xff]
        %v385 = vld [vmem:[%s305 + $0x88] sm:$0xff]
        %v386 = vld [vmem:[%s305 + $0x90] sm:$0xff]
        %v387 = vld [vmem:[%s305 + $0x98] sm:$0xff]
        %v388 = vld [vmem:[%s305 + $0xa0] sm:$0xff]
        %v389 = vld [vmem:[%s305 + $0xa8] sm:$0xff]
        %v390 = vld [vmem:[%s305 + $0xb0] sm:$0xff]
        %v391 = vld [vmem:[%s305 + $0xb8] sm:$0xff]
        %v392 = vld [vmem:[%s305 + $0xc0] sm:$0xff]
        %v393 = vld [vmem:[%s305 + $0xc8] sm:$0xff]
        %v394 = vld [vmem:[%s305 + $0xd0] sm:$0xff]
        %v395 = vld [vmem:[%s305 + $0xd8] sm:$0xff]
        %v396 = vld [vmem:[%s305 + $0xe0] sm:$0xff]
        %v397 = vld [vmem:[%s305 + $0xe8] sm:$0xff]
        %v398 = vld [vmem:[%s305 + $0xf0] sm:$0xff]
        %v399 = vld [vmem:[%s305 + $0xf8] sm:$0xff]
        %v400 = vld [vmem:[%s314] sm:$0xff]
        %v401 = vld [vmem:[%s314 + $0x8] sm:$0xff]
        %vm436 = vcmask 1046528
        %v437 = vrot.slane %v368, 1
        %v438 = vrot.slane %v370, 1
        %v439 = vsel %vm436, %v437, %v438
        %v440 = vrot.slane %v369, 1
        %v441 = vrot.slane %v371, 1
        %v442 = vsel %vm436, %v440, %v441
        %v443 = vrot.slane %v372, 1
        %v444 = vsel %vm436, %v438, %v443
        %v445 = vrot.slane %v373, 1
        %v446 = vsel %vm436, %v441, %v445
        %v447 = vrot.slane %v374, 1
        %v448 = vsel %vm436, %v443, %v447
        %v449 = vrot.slane %v375, 1
        %v450 = vsel %vm436, %v445, %v449
        %v451 = vrot.slane %v376, 1
        %v452 = vsel %vm436, %v447, %v451
        %v453 = vrot.slane %v377, 1
        %v454 = vsel %vm436, %v449, %v453
        %v455 = vrot.slane %v378, 1
        %v456 = vsel %vm436, %v451, %v455
        %v457 = vrot.slane %v379, 1
        %v458 = vsel %vm436, %v453, %v457
        %v459 = vrot.slane %v380, 1
        %v460 = vsel %vm436, %v455, %v459
        %v461 = vrot.slane %v381, 1
        %v462 = vsel %vm436, %v457, %v461
        %v463 = vrot.slane %v382, 1
        %v464 = vsel %vm436, %v459, %v463
        %v465 = vrot.slane %v383, 1
        %v466 = vsel %vm436, %v461, %v465
        %v467 = vrot.slane %v384, 1
        %v468 = vsel %vm436, %v463, %v467
        %v469 = vrot.slane %v385, 1
        %v470 = vsel %vm436, %v465, %v469
        %v471 = vrot.slane %v386, 1
        %v472 = vsel %vm436, %v467, %v471
        %v473 = vrot.slane %v387, 1
        %v474 = vsel %vm436, %v469, %v473
        %v475 = vrot.slane %v388, 1
        %v476 = vsel %vm436, %v471, %v475
        %v477 = vrot.slane %v389, 1
        %v478 = vsel %vm436, %v473, %v477
        %v479 = vrot.slane %v390, 1
        %v480 = vsel %vm436, %v475, %v479
        %v481 = vrot.slane %v391, 1
        %v482 = vsel %vm436, %v477, %v481
        %v483 = vrot.slane %v392, 1
        %v484 = vsel %vm436, %v479, %v483
        %v485 = vrot.slane %v393, 1
        %v486 = vsel %vm436, %v481, %v485
        %v487 = vrot.slane %v394, 1
        %v488 = vsel %vm436, %v483, %v487
        %v489 = vrot.slane %v395, 1
        %v490 = vsel %vm436, %v485, %v489
        %v491 = vrot.slane %v396, 1
        %v492 = vsel %vm436, %v487, %v491
        %v493 = vrot.slane %v397, 1
        %v494 = vsel %vm436, %v489, %v493
        %v495 = vrot.slane %v398, 1
        %v496 = vsel %vm436, %v491, %v495
        %v497 = vrot.slane %v399, 1
        %v498 = vsel %vm436, %v493, %v497
        %v499 = vrot.slane %v400, 1
        %v500 = vsel %vm436, %v495, %v499
        %v501 = vrot.slane %v401, 1
        %v502 = vsel %vm436, %v497, %v501
        %vm535 = vcmask 1045504
        %v536 = vrot.slane %v368, 2
        %v537 = vrot.slane %v370, 2
        %v538 = vsel %vm535, %v536, %v537
        %v539 = vrot.slane %v369, 2
        %v540 = vrot.slane %v371, 2
        %v541 = vsel %vm535, %v539, %v540
        %v542 = vrot.slane %v372, 2
        %v543 = vsel %vm535, %v537, %v542
        %v544 = vrot.slane %v373, 2
        %v545 = vsel %vm535, %v540, %v544
        %v546 = vrot.slane %v374, 2
        %v547 = vsel %vm535, %v542, %v546
        %v548 = vrot.slane %v375, 2
        %v549 = vsel %vm535, %v544, %v548
        %v550 = vrot.slane %v376, 2
        %v551 = vsel %vm535, %v546, %v550
        %v552 = vrot.slane %v377, 2
        %v553 = vsel %vm535, %v548, %v552
        %v554 = vrot.slane %v378, 2
        %v555 = vsel %vm535, %v550, %v554
        %v556 = vrot.slane %v379, 2
        %v557 = vsel %vm535, %v552, %v556
        %v558 = vrot.slane %v380, 2
        %v559 = vsel %vm535, %v554, %v558
        %v560 = vrot.slane %v381, 2
        %v561 = vsel %vm535, %v556, %v560
        %v562 = vrot.slane %v382, 2
        %v563 = vsel %vm535, %v558, %v562
        %v564 = vrot.slane %v383, 2
        %v565 = vsel %vm535, %v560, %v564
        %v566 = vrot.slane %v384, 2
        %v567 = vsel %vm535, %v562, %v566
        %v568 = vrot.slane %v385, 2
        %v569 = vsel %vm535, %v564, %v568
        %v570 = vrot.slane %v386, 2
        %v571 = vsel %vm535, %v566, %v570
        %v572 = vrot.slane %v387, 2
        %v573 = vsel %vm535, %v568, %v572
        %v574 = vrot.slane %v388, 2
        %v575 = vsel %vm535, %v570, %v574
        %v576 = vrot.slane %v389, 2
        %v577 = vsel %vm535, %v572, %v576
        %v578 = vrot.slane %v390, 2
        %v579 = vsel %vm535, %v574, %v578
        %v580 = vrot.slane %v391, 2
        %v581 = vsel %vm535, %v576, %v580
        %v582 = vrot.slane %v392, 2
        %v583 = vsel %vm535, %v578, %v582
        %v584 = vrot.slane %v393, 2
        %v585 = vsel %vm535, %v580, %v584
        %v586 = vrot.slane %v394, 2
        %v587 = vsel %vm535, %v582, %v586
        %v588 = vrot.slane %v395, 2
        %v589 = vsel %vm535, %v584, %v588
        %v590 = vrot.slane %v396, 2
        %v591 = vsel %vm535, %v586, %v590
        %v592 = vrot.slane %v397, 2
        %v593 = vsel %vm535, %v588, %v592
        %v594 = vrot.slane %v398, 2
        %v595 = vsel %vm535, %v590, %v594
        %v596 = vrot.slane %v399, 2
        %v597 = vsel %vm535, %v592, %v596
        %v598 = vrot.slane %v400, 2
        %v599 = vsel %vm535, %v594, %v598
        %v600 = vrot.slane %v401, 2
        %v601 = vsel %vm535, %v596, %v600
        %vm634 = vcmask 1044480
        %v635 = vrot.slane %v368, 3
        %v636 = vrot.slane %v370, 3
        %v637 = vsel %vm634, %v635, %v636
        %v638 = vrot.slane %v369, 3
        %v639 = vrot.slane %v371, 3
        %v640 = vsel %vm634, %v638, %v639
        %v641 = vrot.slane %v372, 3
        %v642 = vsel %vm634, %v636, %v641
        %v643 = vrot.slane %v373, 3
        %v644 = vsel %vm634, %v639, %v643
        %v645 = vrot.slane %v374, 3
        %v646 = vsel %vm634, %v641, %v645
        %v647 = vrot.slane %v375, 3
        %v648 = vsel %vm634, %v643, %v647
        %v649 = vrot.slane %v376, 3
        %v650 = vsel %vm634, %v645, %v649
        %v651 = vrot.slane %v377, 3
        %v652 = vsel %vm634, %v647, %v651
        %v653 = vrot.slane %v378, 3
        %v654 = vsel %vm634, %v649, %v653
        %v655 = vrot.slane %v379, 3
        %v656 = vsel %vm634, %v651, %v655
        %v657 = vrot.slane %v380, 3
        %v658 = vsel %vm634, %v653, %v657
        %v659 = vrot.slane %v381, 3
        %v660 = vsel %vm634, %v655, %v659
        %v661 = vrot.slane %v382, 3
        %v662 = vsel %vm634, %v657, %v661
        %v663 = vrot.slane %v383, 3
        %v664 = vsel %vm634, %v659, %v663
        %v665 = vrot.slane %v384, 3
        %v666 = vsel %vm634, %v661, %v665
        %v667 = vrot.slane %v385, 3
        %v668 = vsel %vm634, %v663, %v667
        %v669 = vrot.slane %v386, 3
        %v670 = vsel %vm634, %v665, %v669
        %v671 = vrot.slane %v387, 3
        %v672 = vsel %vm634, %v667, %v671
        %v673 = vrot.slane %v388, 3
        %v674 = vsel %vm634, %v669, %v673
        %v675 = vrot.slane %v389, 3
        %v676 = vsel %vm634, %v671, %v675
        %v677 = vrot.slane %v390, 3
        %v678 = vsel %vm634, %v673, %v677
        %v679 = vrot.slane %v391, 3
        %v680 = vsel %vm634, %v675, %v679
        %v681 = vrot.slane %v392, 3
        %v682 = vsel %vm634, %v677, %v681
        %v683 = vrot.slane %v393, 3
        %v684 = vsel %vm634, %v679, %v683
        %v685 = vrot.slane %v394, 3
        %v686 = vsel %vm634, %v681, %v685
        %v687 = vrot.slane %v395, 3
        %v688 = vsel %vm634, %v683, %v687
        %v689 = vrot.slane %v396, 3
        %v690 = vsel %vm634, %v685, %v689
        %v691 = vrot.slane %v397, 3
        %v692 = vsel %vm634, %v687, %v691
        %v693 = vrot.slane %v398, 3
        %v694 = vsel %vm634, %v689, %v693
        %v695 = vrot.slane %v399, 3
        %v696 = vsel %vm634, %v691, %v695
        %v697 = vrot.slane %v400, 3
        %v698 = vsel %vm634, %v693, %v697
        %v699 = vrot.slane %v401, 3
        %v700 = vsel %vm634, %v695, %v699
        %v733 = vpack.c.bf16 %v370, %v368
        %v734 = vpack.c.bf16 %v371, %v369
        %v735 = vpack.c.bf16 %v444, %v439
        %v736 = vpack.c.bf16 %v446, %v442
        %v737 = vpack.c.bf16 %v543, %v538
        %v738 = vpack.c.bf16 %v545, %v541
        %v739 = vpack.c.bf16 %v642, %v637
        %v740 = vpack.c.bf16 %v644, %v640
        %v741 = vpack.c.bf16 %v374, %v372
        %v742 = vpack.c.bf16 %v375, %v373
        %v743 = vpack.c.bf16 %v452, %v448
        %v744 = vpack.c.bf16 %v454, %v450
        %v745 = vpack.c.bf16 %v551, %v547
        %v746 = vpack.c.bf16 %v553, %v549
        %v747 = vpack.c.bf16 %v650, %v646
        %v748 = vpack.c.bf16 %v652, %v648
        %v749 = vpack.c.bf16 %v378, %v376
        %v750 = vpack.c.bf16 %v379, %v377
        %v751 = vpack.c.bf16 %v460, %v456
        %v752 = vpack.c.bf16 %v462, %v458
        %v753 = vpack.c.bf16 %v559, %v555
        %v754 = vpack.c.bf16 %v561, %v557
        %v755 = vpack.c.bf16 %v658, %v654
        %v756 = vpack.c.bf16 %v660, %v656
        %v757 = vpack.c.bf16 %v382, %v380
        %v758 = vpack.c.bf16 %v383, %v381
        %v759 = vpack.c.bf16 %v468, %v464
        %v760 = vpack.c.bf16 %v470, %v466
        %v761 = vpack.c.bf16 %v567, %v563
        %v762 = vpack.c.bf16 %v569, %v565
        %v763 = vpack.c.bf16 %v666, %v662
        %v764 = vpack.c.bf16 %v668, %v664
        %v765 = vpack.c.bf16 %v386, %v384
        %v766 = vpack.c.bf16 %v387, %v385
        %v767 = vpack.c.bf16 %v476, %v472
        %v768 = vpack.c.bf16 %v478, %v474
        %v769 = vpack.c.bf16 %v575, %v571
        %v770 = vpack.c.bf16 %v577, %v573
        %v771 = vpack.c.bf16 %v674, %v670
        %v772 = vpack.c.bf16 %v676, %v672
        %v773 = vpack.c.bf16 %v390, %v388
        %v774 = vpack.c.bf16 %v391, %v389
        %v775 = vpack.c.bf16 %v484, %v480
        %v776 = vpack.c.bf16 %v486, %v482
        %v777 = vpack.c.bf16 %v583, %v579
        %v778 = vpack.c.bf16 %v585, %v581
        %v779 = vpack.c.bf16 %v682, %v678
        %v780 = vpack.c.bf16 %v684, %v680
        %v781 = vpack.c.bf16 %v394, %v392
        %v782 = vpack.c.bf16 %v395, %v393
        %v783 = vpack.c.bf16 %v492, %v488
        %v784 = vpack.c.bf16 %v494, %v490
        %v785 = vpack.c.bf16 %v591, %v587
        %v786 = vpack.c.bf16 %v593, %v589
        %v787 = vpack.c.bf16 %v690, %v686
        %v788 = vpack.c.bf16 %v692, %v688
        %v789 = vpack.c.bf16 %v398, %v396
        %v790 = vpack.c.bf16 %v399, %v397
        %v791 = vpack.c.bf16 %v500, %v496
        %v792 = vpack.c.bf16 %v502, %v498
        %v793 = vpack.c.bf16 %v599, %v595
        %v794 = vpack.c.bf16 %v601, %v597
        %v795 = vpack.c.bf16 %v698, %v694
        %v796 = vpack.c.bf16 %v700, %v696
        %v797 = vld [vmem:[#allocation7] sm:$0xff]
        %v798 = vld [vmem:[#allocation7 + $0x8] sm:$0xff]
        %v799 = vld [vmem:[#allocation7 + $0x10] sm:$0xff]
        %v800 = vld [vmem:[#allocation7 + $0x18] sm:$0xff]
        %v801 = vld [vmem:[#allocation7 + $0x20] sm:$0xff]
        %v802 = vld [vmem:[#allocation7 + $0x28] sm:$0xff]
        %v803 = vld [vmem:[#allocation7 + $0x30] sm:$0xff]
        %v804 = vld [vmem:[#allocation7 + $0x38] sm:$0xff]
        %v805 = vld [vmem:[#allocation7 + $0x40] sm:$0xff]
        %v806 = vld [vmem:[#allocation7 + $0x48] sm:$0xff]
        %v807 = vld [vmem:[#allocation7 + $0x50] sm:$0xff]
        %v808 = vld [vmem:[#allocation7 + $0x58] sm:$0xff]
        %v809 = vld [vmem:[#allocation7 + $0x60] sm:$0xff]
        %v810 = vld [vmem:[#allocation7 + $0x68] sm:$0xff]
        %v811 = vld [vmem:[#allocation7 + $0x70] sm:$0xff]
        %v812 = vld [vmem:[#allocation7 + $0x78] sm:$0xff]
        %v813 = vld [vmem:[#allocation7 + $0x80] sm:$0xff]
        %v814 = vld [vmem:[#allocation7 + $0x88] sm:$0xff]
        %v815 = vld [vmem:[#allocation7 + $0x90] sm:$0xff]
        %v816 = vld [vmem:[#allocation7 + $0x98] sm:$0xff]
        %v817 = vld [vmem:[#allocation7 + $0xa0] sm:$0xff]
        %v818 = vld [vmem:[#allocation7 + $0xa8] sm:$0xff]
        %v819 = vld [vmem:[#allocation7 + $0xb0] sm:$0xff]
        %v820 = vld [vmem:[#allocation7 + $0xb8] sm:$0xff]
        %v821 = vld [vmem:[#allocation7 + $0xc0] sm:$0xff]
        %v822 = vld [vmem:[#allocation7 + $0xc8] sm:$0xff]
        %v823 = vld [vmem:[#allocation7 + $0xd0] sm:$0xff]
        %v824 = vld [vmem:[#allocation7 + $0xd8] sm:$0xff]
        %v825 = vld [vmem:[#allocation7 + $0xe0] sm:$0xff]
        %v826 = vld [vmem:[#allocation7 + $0xe8] sm:$0xff]
        %v827 = vld [vmem:[#allocation7 + $0xf0] sm:$0xff]
        %v828 = vld [vmem:[#allocation7 + $0xf8] sm:$0xff]
        %v829 = vld [vmem:[#allocation7 + $0x100] sm:$0xff]
        %v830 = vld [vmem:[#allocation7 + $0x108] sm:$0xff]
        %v831 = vld [vmem:[#allocation7 + $0x110] sm:$0xff]
        %v832 = vld [vmem:[#allocation7 + $0x118] sm:$0xff]
        %v833 = vld [vmem:[#allocation7 + $0x120] sm:$0xff]
        %v834 = vld [vmem:[#allocation7 + $0x128] sm:$0xff]
        %v835 = vld [vmem:[#allocation7 + $0x130] sm:$0xff]
        %v836 = vld [vmem:[#allocation7 + $0x138] sm:$0xff]
        %v837 = vld [vmem:[#allocation7 + $0x140] sm:$0xff]
        %v838 = vld [vmem:[#allocation7 + $0x148] sm:$0xff]
        %v839 = vld [vmem:[#allocation7 + $0x150] sm:$0xff]
        %v840 = vld [vmem:[#allocation7 + $0x158] sm:$0xff]
        %v841 = vld [vmem:[#allocation7 + $0x160] sm:$0xff]
        %v842 = vld [vmem:[#allocation7 + $0x168] sm:$0xff]
        %v843 = vld [vmem:[#allocation7 + $0x170] sm:$0xff]
        %v844 = vld [vmem:[#allocation7 + $0x178] sm:$0xff]
        %v845 = vld [vmem:[#allocation7 + $0x180] sm:$0xff]
        %v846 = vld [vmem:[#allocation7 + $0x188] sm:$0xff]
        %v847 = vld [vmem:[#allocation7 + $0x190] sm:$0xff]
        %v848 = vld [vmem:[#allocation7 + $0x198] sm:$0xff]
        %v849 = vld [vmem:[#allocation7 + $0x1a0] sm:$0xff]
        %v850 = vld [vmem:[#allocation7 + $0x1a8] sm:$0xff]
        %v851 = vld [vmem:[#allocation7 + $0x1b0] sm:$0xff]
        %v852 = vld [vmem:[#allocation7 + $0x1b8] sm:$0xff]
        %v853 = vld [vmem:[#allocation7 + $0x1c0] sm:$0xff]
        %v854 = vld [vmem:[#allocation7 + $0x1c8] sm:$0xff]
        %v855 = vld [vmem:[#allocation7 + $0x1d0] sm:$0xff]
        %v856 = vld [vmem:[#allocation7 + $0x1d8] sm:$0xff]
        %v857 = vld [vmem:[#allocation7 + $0x1e0] sm:$0xff]
        %v858 = vld [vmem:[#allocation7 + $0x1e8] sm:$0xff]
        %v859 = vld [vmem:[#allocation7 + $0x1f0] sm:$0xff]
        %v860 = vld [vmem:[#allocation7 + $0x1f8] sm:$0xff]
        %v861 = vld [vmem:[#allocation7 + $0x200] sm:$0xff]
        %v862 = vld [vmem:[#allocation7 + $0x208] sm:$0xff]
        %v863 = vld [vmem:[#allocation7 + $0x210] sm:$0xff]
        %v864 = vld [vmem:[#allocation7 + $0x218] sm:$0xff]
        %v865 = vld [vmem:[#allocation7 + $0x220] sm:$0xff]
        %v866 = vld [vmem:[#allocation7 + $0x228] sm:$0xff]
        %v867 = vld [vmem:[#allocation7 + $0x230] sm:$0xff]
        %v868 = vld [vmem:[#allocation7 + $0x238] sm:$0xff]
        %v869 = vld [vmem:[#allocation7 + $0x240] sm:$0xff]
        %v870 = vld [vmem:[#allocation7 + $0x248] sm:$0xff]
        %v871 = vld [vmem:[#allocation7 + $0x250] sm:$0xff]
        %v872 = vld [vmem:[#allocation7 + $0x258] sm:$0xff]
        %v873 = vld [vmem:[#allocation7 + $0x260] sm:$0xff]
        %v874 = vld [vmem:[#allocation7 + $0x268] sm:$0xff]
        %v875 = vld [vmem:[#allocation7 + $0x270] sm:$0xff]
        %v876 = vld [vmem:[#allocation7 + $0x278] sm:$0xff]
        %v877 = vld [vmem:[#allocation7 + $0x280] sm:$0xff]
        %v878 = vld [vmem:[#allocation7 + $0x288] sm:$0xff]
        %v879 = vld [vmem:[#allocation7 + $0x290] sm:$0xff]
        %v880 = vld [vmem:[#allocation7 + $0x298] sm:$0xff]
        %v881 = vld [vmem:[#allocation7 + $0x2a0] sm:$0xff]
        %v882 = vld [vmem:[#allocation7 + $0x2a8] sm:$0xff]
        %v883 = vld [vmem:[#allocation7 + $0x2b0] sm:$0xff]
        %v884 = vld [vmem:[#allocation7 + $0x2b8] sm:$0xff]
        %v885 = vld [vmem:[#allocation7 + $0x2c0] sm:$0xff]
        %v886 = vld [vmem:[#allocation7 + $0x2c8] sm:$0xff]
        %v887 = vld [vmem:[#allocation7 + $0x2d0] sm:$0xff]
        %v888 = vld [vmem:[#allocation7 + $0x2d8] sm:$0xff]
        %v889 = vld [vmem:[#allocation7 + $0x2e0] sm:$0xff]
        %v890 = vld [vmem:[#allocation7 + $0x2e8] sm:$0xff]
        %v891 = vld [vmem:[#allocation7 + $0x2f0] sm:$0xff]
        %v892 = vld [vmem:[#allocation7 + $0x2f8] sm:$0xff]
        %v893 = vld [vmem:[#allocation7 + $0x300] sm:$0xff]
        %v894 = vld [vmem:[#allocation7 + $0x308] sm:$0xff]
        %v895 = vld [vmem:[#allocation7 + $0x310] sm:$0xff]
        %v896 = vld [vmem:[#allocation7 + $0x318] sm:$0xff]
        %v897 = vld [vmem:[#allocation7 + $0x320] sm:$0xff]
        %v898 = vld [vmem:[#allocation7 + $0x328] sm:$0xff]
        %v899 = vld [vmem:[#allocation7 + $0x330] sm:$0xff]
        %v900 = vld [vmem:[#allocation7 + $0x338] sm:$0xff]
        %v901 = vld [vmem:[#allocation7 + $0x340] sm:$0xff]
        %v902 = vld [vmem:[#allocation7 + $0x348] sm:$0xff]
        %v903 = vld [vmem:[#allocation7 + $0x350] sm:$0xff]
        %v904 = vld [vmem:[#allocation7 + $0x358] sm:$0xff]
        %v905 = vld [vmem:[#allocation7 + $0x360] sm:$0xff]
        %v906 = vld [vmem:[#allocation7 + $0x368] sm:$0xff]
        %v907 = vld [vmem:[#allocation7 + $0x370] sm:$0xff]
        %v908 = vld [vmem:[#allocation7 + $0x378] sm:$0xff]
        %v909 = vld [vmem:[#allocation7 + $0x380] sm:$0xff]
        %v910 = vld [vmem:[#allocation7 + $0x388] sm:$0xff]
        %v911 = vld [vmem:[#allocation7 + $0x390] sm:$0xff]
        %v912 = vld [vmem:[#allocation7 + $0x398] sm:$0xff]
        %v913 = vld [vmem:[#allocation7 + $0x3a0] sm:$0xff]
        %v914 = vld [vmem:[#allocation7 + $0x3a8] sm:$0xff]
        %v915 = vld [vmem:[#allocation7 + $0x3b0] sm:$0xff]
        %v916 = vld [vmem:[#allocation7 + $0x3b8] sm:$0xff]
        %v917 = vld [vmem:[#allocation7 + $0x3c0] sm:$0xff]
        %v918 = vld [vmem:[#allocation7 + $0x3c8] sm:$0xff]
        %v919 = vld [vmem:[#allocation7 + $0x3d0] sm:$0xff]
        %v920 = vld [vmem:[#allocation7 + $0x3d8] sm:$0xff]
        %v921 = vld [vmem:[#allocation7 + $0x3e0] sm:$0xff]
        %v922 = vld [vmem:[#allocation7 + $0x3e8] sm:$0xff]
        %v923 = vld [vmem:[#allocation7 + $0x3f0] sm:$0xff]
        %v924 = vld [vmem:[#allocation7 + $0x3f8] sm:$0xff]
        %v925 = vld [vmem:[#allocation7 + $0x400] sm:$0xff]
        %v926 = vld [vmem:[#allocation7 + $0x408] sm:$0xff]
        %v927 = vld [vmem:[#allocation7 + $0x410] sm:$0xff]
        %v928 = vld [vmem:[#allocation7 + $0x418] sm:$0xff]
        %v929 = vld [vmem:[#allocation7 + $0x420] sm:$0xff]
        %v930 = vld [vmem:[#allocation7 + $0x428] sm:$0xff]
        %v931 = vld [vmem:[#allocation7 + $0x430] sm:$0xff]
        %v932 = vld [vmem:[#allocation7 + $0x438] sm:$0xff]
        %v933 = vld [vmem:[#allocation7 + $0x440] sm:$0xff]
        %v934 = vld [vmem:[#allocation7 + $0x448] sm:$0xff]
        %v935 = vld [vmem:[#allocation7 + $0x450] sm:$0xff]
        %v936 = vld [vmem:[#allocation7 + $0x458] sm:$0xff]
        %v937 = vld [vmem:[#allocation7 + $0x460] sm:$0xff]
        %v938 = vld [vmem:[#allocation7 + $0x468] sm:$0xff]
        %v939 = vld [vmem:[#allocation7 + $0x470] sm:$0xff]
        %v940 = vld [vmem:[#allocation7 + $0x478] sm:$0xff]
        %v941 = vld [vmem:[#allocation7 + $0x480] sm:$0xff]
        %v942 = vld [vmem:[#allocation7 + $0x488] sm:$0xff]
        %v943 = vld [vmem:[#allocation7 + $0x490] sm:$0xff]
        %v944 = vld [vmem:[#allocation7 + $0x498] sm:$0xff]
        %v945 = vld [vmem:[#allocation7 + $0x4a0] sm:$0xff]
        %v946 = vld [vmem:[#allocation7 + $0x4a8] sm:$0xff]
        %v947 = vld [vmem:[#allocation7 + $0x4b0] sm:$0xff]
        %v948 = vld [vmem:[#allocation7 + $0x4b8] sm:$0xff]
        %v949 = vld [vmem:[#allocation7 + $0x4c0] sm:$0xff]
        %v950 = vld [vmem:[#allocation7 + $0x4c8] sm:$0xff]
        %v951 = vld [vmem:[#allocation7 + $0x4d0] sm:$0xff]
        %v952 = vld [vmem:[#allocation7 + $0x4d8] sm:$0xff]
        %v953 = vld [vmem:[#allocation7 + $0x4e0] sm:$0xff]
        %v954 = vld [vmem:[#allocation7 + $0x4e8] sm:$0xff]
        %v955 = vld [vmem:[#allocation7 + $0x4f0] sm:$0xff]
        %v956 = vld [vmem:[#allocation7 + $0x4f8] sm:$0xff]
        %v957 = vld [vmem:[#allocation7 + $0x500] sm:$0xff]
        %v958 = vld [vmem:[#allocation7 + $0x508] sm:$0xff]
        %v959 = vld [vmem:[#allocation7 + $0x510] sm:$0xff]
        %v960 = vld [vmem:[#allocation7 + $0x518] sm:$0xff]
        %v961 = vld [vmem:[#allocation7 + $0x520] sm:$0xff]
        %v962 = vld [vmem:[#allocation7 + $0x528] sm:$0xff]
        %v963 = vld [vmem:[#allocation7 + $0x530] sm:$0xff]
        %v964 = vld [vmem:[#allocation7 + $0x538] sm:$0xff]
        %v965 = vld [vmem:[#allocation7 + $0x540] sm:$0xff]
        %v966 = vld [vmem:[#allocation7 + $0x548] sm:$0xff]
        %v967 = vld [vmem:[#allocation7 + $0x550] sm:$0xff]
        %v968 = vld [vmem:[#allocation7 + $0x558] sm:$0xff]
        %v969 = vld [vmem:[#allocation7 + $0x560] sm:$0xff]
        %v970 = vld [vmem:[#allocation7 + $0x568] sm:$0xff]
        %v971 = vld [vmem:[#allocation7 + $0x570] sm:$0xff]
        %v972 = vld [vmem:[#allocation7 + $0x578] sm:$0xff]
        %v973 = vld [vmem:[#allocation7 + $0x580] sm:$0xff]
        %v974 = vld [vmem:[#allocation7 + $0x588] sm:$0xff]
        %v975 = vld [vmem:[#allocation7 + $0x590] sm:$0xff]
        %v976 = vld [vmem:[#allocation7 + $0x598] sm:$0xff]
        %v977 = vld [vmem:[#allocation7 + $0x5a0] sm:$0xff]
        %v978 = vld [vmem:[#allocation7 + $0x5a8] sm:$0xff]
        %v979 = vld [vmem:[#allocation7 + $0x5b0] sm:$0xff]
        %v980 = vld [vmem:[#allocation7 + $0x5b8] sm:$0xff]
        %v981 = vld [vmem:[#allocation7 + $0x5c0] sm:$0xff]
        %v982 = vld [vmem:[#allocation7 + $0x5c8] sm:$0xff]
        %v983 = vld [vmem:[#allocation7 + $0x5d0] sm:$0xff]
        %v984 = vld [vmem:[#allocation7 + $0x5d8] sm:$0xff]
        %v985 = vld [vmem:[#allocation7 + $0x5e0] sm:$0xff]
        %v986 = vld [vmem:[#allocation7 + $0x5e8] sm:$0xff]
        %v987 = vld [vmem:[#allocation7 + $0x5f0] sm:$0xff]
        %v988 = vld [vmem:[#allocation7 + $0x5f8] sm:$0xff]
        %v989 = vld [vmem:[#allocation7 + $0x600] sm:$0xff]
        %v990 = vld [vmem:[#allocation7 + $0x608] sm:$0xff]
        %v991 = vld [vmem:[#allocation7 + $0x610] sm:$0xff]
        %v992 = vld [vmem:[#allocation7 + $0x618] sm:$0xff]
        %v993 = vld [vmem:[#allocation7 + $0x620] sm:$0xff]
        %v994 = vld [vmem:[#allocation7 + $0x628] sm:$0xff]
        %v995 = vld [vmem:[#allocation7 + $0x630] sm:$0xff]
        %v996 = vld [vmem:[#allocation7 + $0x638] sm:$0xff]
        %v997 = vld [vmem:[#allocation7 + $0x640] sm:$0xff]
        %v998 = vld [vmem:[#allocation7 + $0x648] sm:$0xff]
        %v999 = vld [vmem:[#allocation7 + $0x650] sm:$0xff]
        %v1000 = vld [vmem:[#allocation7 + $0x658] sm:$0xff]
        %v1001 = vld [vmem:[#allocation7 + $0x660] sm:$0xff]
        %v1002 = vld [vmem:[#allocation7 + $0x668] sm:$0xff]
        %v1003 = vld [vmem:[#allocation7 + $0x670] sm:$0xff]
        %v1004 = vld [vmem:[#allocation7 + $0x678] sm:$0xff]
        %v1005 = vld [vmem:[#allocation7 + $0x680] sm:$0xff]
        %v1006 = vld [vmem:[#allocation7 + $0x688] sm:$0xff]
        %v1007 = vld [vmem:[#allocation7 + $0x690] sm:$0xff]
        %v1008 = vld [vmem:[#allocation7 + $0x698] sm:$0xff]
        %v1009 = vld [vmem:[#allocation7 + $0x6a0] sm:$0xff]
        %v1010 = vld [vmem:[#allocation7 + $0x6a8] sm:$0xff]
        %v1011 = vld [vmem:[#allocation7 + $0x6b0] sm:$0xff]
        %v1012 = vld [vmem:[#allocation7 + $0x6b8] sm:$0xff]
        %v1013 = vld [vmem:[#allocation7 + $0x6c0] sm:$0xff]
        %v1014 = vld [vmem:[#allocation7 + $0x6c8] sm:$0xff]
        %v1015 = vld [vmem:[#allocation7 + $0x6d0] sm:$0xff]
        %v1016 = vld [vmem:[#allocation7 + $0x6d8] sm:$0xff]
        %v1017 = vld [vmem:[#allocation7 + $0x6e0] sm:$0xff]
        %v1018 = vld [vmem:[#allocation7 + $0x6e8] sm:$0xff]
        %v1019 = vld [vmem:[#allocation7 + $0x6f0] sm:$0xff]
        %v1020 = vld [vmem:[#allocation7 + $0x6f8] sm:$0xff]
        %v1021 = vld [vmem:[#allocation7 + $0x700] sm:$0xff]
        %v1022 = vld [vmem:[#allocation7 + $0x708] sm:$0xff]
        %v1023 = vld [vmem:[#allocation7 + $0x710] sm:$0xff]
        %v1024 = vld [vmem:[#allocation7 + $0x718] sm:$0xff]
        %v1025 = vld [vmem:[#allocation7 + $0x720] sm:$0xff]
        %v1026 = vld [vmem:[#allocation7 + $0x728] sm:$0xff]
        %v1027 = vld [vmem:[#allocation7 + $0x730] sm:$0xff]
        %v1028 = vld [vmem:[#allocation7 + $0x738] sm:$0xff]
        %v1029 = vld [vmem:[#allocation7 + $0x740] sm:$0xff]
        %v1030 = vld [vmem:[#allocation7 + $0x748] sm:$0xff]
        %v1031 = vld [vmem:[#allocation7 + $0x750] sm:$0xff]
        %v1032 = vld [vmem:[#allocation7 + $0x758] sm:$0xff]
        %v1033 = vld [vmem:[#allocation7 + $0x760] sm:$0xff]
        %v1034 = vld [vmem:[#allocation7 + $0x768] sm:$0xff]
        %v1035 = vld [vmem:[#allocation7 + $0x770] sm:$0xff]
        %v1036 = vld [vmem:[#allocation7 + $0x778] sm:$0xff]
        %v1037 = vld [vmem:[#allocation7 + $0x780] sm:$0xff]
        %v1038 = vld [vmem:[#allocation7 + $0x788] sm:$0xff]
        %v1039 = vld [vmem:[#allocation7 + $0x790] sm:$0xff]
        %v1040 = vld [vmem:[#allocation7 + $0x798] sm:$0xff]
        %v1041 = vld [vmem:[#allocation7 + $0x7a0] sm:$0xff]
        %v1042 = vld [vmem:[#allocation7 + $0x7a8] sm:$0xff]
        %v1043 = vld [vmem:[#allocation7 + $0x7b0] sm:$0xff]
        %v1044 = vld [vmem:[#allocation7 + $0x7b8] sm:$0xff]
        %v1045 = vld [vmem:[#allocation7 + $0x7c0] sm:$0xff]
        %v1046 = vld [vmem:[#allocation7 + $0x7c8] sm:$0xff]
        %v1047 = vld [vmem:[#allocation7 + $0x7d0] sm:$0xff]
        %v1048 = vld [vmem:[#allocation7 + $0x7d8] sm:$0xff]
        %v1049 = vld [vmem:[#allocation7 + $0x7e0] sm:$0xff]
        %v1050 = vld [vmem:[#allocation7 + $0x7e8] sm:$0xff]
        %v1051 = vld [vmem:[#allocation7 + $0x7f0] sm:$0xff]
        %v1052 = vld [vmem:[#allocation7 + $0x7f8] sm:$0xff]
        %v1053 = vld [vmem:[#allocation7 + $0x800] sm:$0xff]
        %v1054 = vld [vmem:[#allocation7 + $0x808] sm:$0xff]
        %v1055 = vld [vmem:[#allocation7 + $0x810] sm:$0xff]
        %v1056 = vld [vmem:[#allocation7 + $0x818] sm:$0xff]
        %v1057 = vld [vmem:[#allocation7 + $0x820] sm:$0xff]
        %v1058 = vld [vmem:[#allocation7 + $0x828] sm:$0xff]
        %v1059 = vld [vmem:[#allocation7 + $0x830] sm:$0xff]
        %v1060 = vld [vmem:[#allocation7 + $0x838] sm:$0xff]
        %v1061 = vld [vmem:[#allocation7 + $0x840] sm:$0xff]
        %v1062 = vld [vmem:[#allocation7 + $0x848] sm:$0xff]
        %v1063 = vld [vmem:[#allocation7 + $0x850] sm:$0xff]
        %v1064 = vld [vmem:[#allocation7 + $0x858] sm:$0xff]
        %v1065 = vld [vmem:[#allocation7 + $0x860] sm:$0xff]
        %v1066 = vld [vmem:[#allocation7 + $0x868] sm:$0xff]
        %v1067 = vld [vmem:[#allocation7 + $0x870] sm:$0xff]
        %v1068 = vld [vmem:[#allocation7 + $0x878] sm:$0xff]
        %v1069 = vld [vmem:[#allocation7 + $0x880] sm:$0xff]
        %v1070 = vld [vmem:[#allocation7 + $0x888] sm:$0xff]
        %v1071 = vld [vmem:[#allocation7 + $0x890] sm:$0xff]
        %v1072 = vld [vmem:[#allocation7 + $0x898] sm:$0xff]
        %v1073 = vld [vmem:[#allocation7 + $0x8a0] sm:$0xff]
        %v1074 = vld [vmem:[#allocation7 + $0x8a8] sm:$0xff]
        %v1075 = vld [vmem:[#allocation7 + $0x8b0] sm:$0xff]
        %v1076 = vld [vmem:[#allocation7 + $0x8b8] sm:$0xff]
        %v1077 = vld [vmem:[#allocation7 + $0x8c0] sm:$0xff]
        %v1078 = vld [vmem:[#allocation7 + $0x8c8] sm:$0xff]
        %v1079 = vld [vmem:[#allocation7 + $0x8d0] sm:$0xff]
        %v1080 = vld [vmem:[#allocation7 + $0x8d8] sm:$0xff]
        %v1081 = vld [vmem:[#allocation7 + $0x8e0] sm:$0xff]
        %v1082 = vld [vmem:[#allocation7 + $0x8e8] sm:$0xff]
        %v1083 = vld [vmem:[#allocation7 + $0x8f0] sm:$0xff]
        %v1084 = vld [vmem:[#allocation7 + $0x8f8] sm:$0xff]
        %v1085 = vld [vmem:[#allocation7 + $0x900] sm:$0xff]
        %v1086 = vld [vmem:[#allocation7 + $0x908] sm:$0xff]
        %v1087 = vld [vmem:[#allocation7 + $0x910] sm:$0xff]
        %v1088 = vld [vmem:[#allocation7 + $0x918] sm:$0xff]
        %v1089 = vld [vmem:[#allocation7 + $0x920] sm:$0xff]
        %v1090 = vld [vmem:[#allocation7 + $0x928] sm:$0xff]
        %v1091 = vld [vmem:[#allocation7 + $0x930] sm:$0xff]
        %v1092 = vld [vmem:[#allocation7 + $0x938] sm:$0xff]
        %v1093 = vld [vmem:[#allocation7 + $0x940] sm:$0xff]
        %v1094 = vld [vmem:[#allocation7 + $0x948] sm:$0xff]
        %v1095 = vld [vmem:[#allocation7 + $0x950] sm:$0xff]
        %v1096 = vld [vmem:[#allocation7 + $0x958] sm:$0xff]
        %v1097 = vld [vmem:[#allocation7 + $0x960] sm:$0xff]
        %v1098 = vld [vmem:[#allocation7 + $0x968] sm:$0xff]
        %v1099 = vld [vmem:[#allocation7 + $0x970] sm:$0xff]
        %v1100 = vld [vmem:[#allocation7 + $0x978] sm:$0xff]
        %v1101 = vld [vmem:[#allocation7 + $0x980] sm:$0xff]
        %v1102 = vld [vmem:[#allocation7 + $0x988] sm:$0xff]
        %v1103 = vld [vmem:[#allocation7 + $0x990] sm:$0xff]
        %v1104 = vld [vmem:[#allocation7 + $0x998] sm:$0xff]
        %v1105 = vld [vmem:[#allocation7 + $0x9a0] sm:$0xff]
        %v1106 = vld [vmem:[#allocation7 + $0x9a8] sm:$0xff]
        %v1107 = vld [vmem:[#allocation7 + $0x9b0] sm:$0xff]
        %v1108 = vld [vmem:[#allocation7 + $0x9b8] sm:$0xff]
        %v1109 = vld [vmem:[#allocation7 + $0x9c0] sm:$0xff]
        %v1110 = vld [vmem:[#allocation7 + $0x9c8] sm:$0xff]
        %v1111 = vld [vmem:[#allocation7 + $0x9d0] sm:$0xff]
        %v1112 = vld [vmem:[#allocation7 + $0x9d8] sm:$0xff]
        %v1113 = vld [vmem:[#allocation7 + $0x9e0] sm:$0xff]
        %v1114 = vld [vmem:[#allocation7 + $0x9e8] sm:$0xff]
        %v1115 = vld [vmem:[#allocation7 + $0x9f0] sm:$0xff]
        %v1116 = vld [vmem:[#allocation7 + $0x9f8] sm:$0xff]
        %v1117 = vld [vmem:[#allocation7 + $0xa00] sm:$0xff]
        %v1118 = vld [vmem:[#allocation7 + $0xa08] sm:$0xff]
        %v1119 = vld [vmem:[#allocation7 + $0xa10] sm:$0xff]
        %v1120 = vld [vmem:[#allocation7 + $0xa18] sm:$0xff]
        %v1121 = vld [vmem:[#allocation7 + $0xa20] sm:$0xff]
        %v1122 = vld [vmem:[#allocation7 + $0xa28] sm:$0xff]
        %v1123 = vld [vmem:[#allocation7 + $0xa30] sm:$0xff]
        %v1124 = vld [vmem:[#allocation7 + $0xa38] sm:$0xff]
        %v1125 = vld [vmem:[#allocation7 + $0xa40] sm:$0xff]
        %v1126 = vld [vmem:[#allocation7 + $0xa48] sm:$0xff]
        %v1127 = vld [vmem:[#allocation7 + $0xa50] sm:$0xff]
        %v1128 = vld [vmem:[#allocation7 + $0xa58] sm:$0xff]
        %v1129 = vld [vmem:[#allocation7 + $0xa60] sm:$0xff]
        %v1130 = vld [vmem:[#allocation7 + $0xa68] sm:$0xff]
        %v1131 = vld [vmem:[#allocation7 + $0xa70] sm:$0xff]
        %v1132 = vld [vmem:[#allocation7 + $0xa78] sm:$0xff]
        %v1133 = vld [vmem:[#allocation7 + $0xa80] sm:$0xff]
        %v1134 = vld [vmem:[#allocation7 + $0xa88] sm:$0xff]
        %v1135 = vld [vmem:[#allocation7 + $0xa90] sm:$0xff]
        %v1136 = vld [vmem:[#allocation7 + $0xa98] sm:$0xff]
        %v1137 = vld [vmem:[#allocation7 + $0xaa0] sm:$0xff]
        %v1138 = vld [vmem:[#allocation7 + $0xaa8] sm:$0xff]
        %v1139 = vld [vmem:[#allocation7 + $0xab0] sm:$0xff]
        %v1140 = vld [vmem:[#allocation7 + $0xab8] sm:$0xff]
        %v1141 = vld [vmem:[#allocation7 + $0xac0] sm:$0xff]
        %v1142 = vld [vmem:[#allocation7 + $0xac8] sm:$0xff]
        %v1143 = vld [vmem:[#allocation7 + $0xad0] sm:$0xff]
        %v1144 = vld [vmem:[#allocation7 + $0xad8] sm:$0xff]
        %v1145 = vld [vmem:[#allocation7 + $0xae0] sm:$0xff]
        %v1146 = vld [vmem:[#allocation7 + $0xae8] sm:$0xff]
        %v1147 = vld [vmem:[#allocation7 + $0xaf0] sm:$0xff]
        %v1148 = vld [vmem:[#allocation7 + $0xaf8] sm:$0xff]
        %v1149 = vld [vmem:[#allocation7 + $0xb00] sm:$0xff]
        %v1150 = vld [vmem:[#allocation7 + $0xb08] sm:$0xff]
        %v1151 = vld [vmem:[#allocation7 + $0xb10] sm:$0xff]
        %v1152 = vld [vmem:[#allocation7 + $0xb18] sm:$0xff]
        %v1153 = vld [vmem:[#allocation7 + $0xb20] sm:$0xff]
        %v1154 = vld [vmem:[#allocation7 + $0xb28] sm:$0xff]
        %v1155 = vld [vmem:[#allocation7 + $0xb30] sm:$0xff]
        %v1156 = vld [vmem:[#allocation7 + $0xb38] sm:$0xff]
        %v1157 = vld [vmem:[#allocation7 + $0xb40] sm:$0xff]
        %v1158 = vld [vmem:[#allocation7 + $0xb48] sm:$0xff]
        %v1159 = vld [vmem:[#allocation7 + $0xb50] sm:$0xff]
        %v1160 = vld [vmem:[#allocation7 + $0xb58] sm:$0xff]
        %v1161 = vld [vmem:[#allocation7 + $0xb60] sm:$0xff]
        %v1162 = vld [vmem:[#allocation7 + $0xb68] sm:$0xff]
        %v1163 = vld [vmem:[#allocation7 + $0xb70] sm:$0xff]
        %v1164 = vld [vmem:[#allocation7 + $0xb78] sm:$0xff]
        %v1165 = vld [vmem:[#allocation7 + $0xb80] sm:$0xff]
        %v1166 = vld [vmem:[#allocation7 + $0xb88] sm:$0xff]
        %v1167 = vld [vmem:[#allocation7 + $0xb90] sm:$0xff]
        %v1168 = vld [vmem:[#allocation7 + $0xb98] sm:$0xff]
        %v1169 = vld [vmem:[#allocation7 + $0xba0] sm:$0xff]
        %v1170 = vld [vmem:[#allocation7 + $0xba8] sm:$0xff]
        %v1171 = vld [vmem:[#allocation7 + $0xbb0] sm:$0xff]
        %v1172 = vld [vmem:[#allocation7 + $0xbb8] sm:$0xff]
        %v1173 = vld [vmem:[#allocation7 + $0xbc0] sm:$0xff]
        %v1174 = vld [vmem:[#allocation7 + $0xbc8] sm:$0xff]
        %v1175 = vld [vmem:[#allocation7 + $0xbd0] sm:$0xff]
        %v1176 = vld [vmem:[#allocation7 + $0xbd8] sm:$0xff]
        %v1177 = vld [vmem:[#allocation7 + $0xbe0] sm:$0xff]
        %v1178 = vld [vmem:[#allocation7 + $0xbe8] sm:$0xff]
        %v1179 = vld [vmem:[#allocation7 + $0xbf0] sm:$0xff]
        %v1180 = vld [vmem:[#allocation7 + $0xbf8] sm:$0xff]
        %v1565 = vunpack.c.l.b16 %v797
        %v1566 = vunpack.c.h.b16 %v797
        %v1567 = vunpack.c.l.b16 %v798
        %v1568 = vunpack.c.h.b16 %v798
        %v1569 = vunpack.c.l.b16 %v799
        %v1570 = vunpack.c.h.b16 %v799
        %v1571 = vunpack.c.l.b16 %v800
        %v1572 = vunpack.c.h.b16 %v800
        %v1573 = vunpack.c.l.b16 %v801
        %v1574 = vunpack.c.h.b16 %v801
        %v1575 = vunpack.c.l.b16 %v802
        %v1576 = vunpack.c.h.b16 %v802
        %v1577 = vunpack.c.l.b16 %v803
        %v1578 = vunpack.c.h.b16 %v803
        %v1579 = vunpack.c.l.b16 %v804
        %v1580 = vunpack.c.h.b16 %v804
        %v1581 = vunpack.c.l.b16 %v805
        %v1582 = vunpack.c.h.b16 %v805
        %v1583 = vunpack.c.l.b16 %v806
        %v1584 = vunpack.c.h.b16 %v806
        %v1585 = vunpack.c.l.b16 %v807
        %v1586 = vunpack.c.h.b16 %v807
        %v1587 = vunpack.c.l.b16 %v808
        %v1588 = vunpack.c.h.b16 %v808
        %v1589 = vunpack.c.l.b16 %v809
        %v1590 = vunpack.c.h.b16 %v809
        %v1591 = vunpack.c.l.b16 %v810
        %v1592 = vunpack.c.h.b16 %v810
        %v1593 = vunpack.c.l.b16 %v811
        %v1594 = vunpack.c.h.b16 %v811
        %v1595 = vunpack.c.l.b16 %v812
        %v1596 = vunpack.c.h.b16 %v812
        %v1597 = vunpack.c.l.b16 %v813
        %v1598 = vunpack.c.h.b16 %v813
        %v1599 = vunpack.c.l.b16 %v814
        %v1600 = vunpack.c.h.b16 %v814
        %v1601 = vunpack.c.l.b16 %v815
        %v1602 = vunpack.c.h.b16 %v815
        %v1603 = vunpack.c.l.b16 %v816
        %v1604 = vunpack.c.h.b16 %v816
        %v1605 = vunpack.c.l.b16 %v817
        %v1606 = vunpack.c.h.b16 %v817
        %v1607 = vunpack.c.l.b16 %v818
        %v1608 = vunpack.c.h.b16 %v818
        %v1609 = vunpack.c.l.b16 %v819
        %v1610 = vunpack.c.h.b16 %v819
        %v1611 = vunpack.c.l.b16 %v820
        %v1612 = vunpack.c.h.b16 %v820
        %v1613 = vunpack.c.l.b16 %v821
        %v1614 = vunpack.c.h.b16 %v821
        %v1615 = vunpack.c.l.b16 %v822
        %v1616 = vunpack.c.h.b16 %v822
        %v1617 = vunpack.c.l.b16 %v823
        %v1618 = vunpack.c.h.b16 %v823
        %v1619 = vunpack.c.l.b16 %v824
        %v1620 = vunpack.c.h.b16 %v824
        %v1621 = vunpack.c.l.b16 %v825
        %v1622 = vunpack.c.h.b16 %v825
        %v1623 = vunpack.c.l.b16 %v826
        %v1624 = vunpack.c.h.b16 %v826
        %v1625 = vunpack.c.l.b16 %v827
        %v1626 = vunpack.c.h.b16 %v827
        %v1627 = vunpack.c.l.b16 %v828
        %v1628 = vunpack.c.h.b16 %v828
        %v1629 = vunpack.c.l.b16 %v829
        %v1630 = vunpack.c.h.b16 %v829
        %v1631 = vunpack.c.l.b16 %v830
        %v1632 = vunpack.c.h.b16 %v830
        %v1633 = vunpack.c.l.b16 %v831
        %v1634 = vunpack.c.h.b16 %v831
        %v1635 = vunpack.c.l.b16 %v832
        %v1636 = vunpack.c.h.b16 %v832
        %v1637 = vunpack.c.l.b16 %v833
        %v1638 = vunpack.c.h.b16 %v833
        %v1639 = vunpack.c.l.b16 %v834
        %v1640 = vunpack.c.h.b16 %v834
        %v1641 = vunpack.c.l.b16 %v835
        %v1642 = vunpack.c.h.b16 %v835
        %v1643 = vunpack.c.l.b16 %v836
        %v1644 = vunpack.c.h.b16 %v836
        %v1645 = vunpack.c.l.b16 %v837
        %v1646 = vunpack.c.h.b16 %v837
        %v1647 = vunpack.c.l.b16 %v838
        %v1648 = vunpack.c.h.b16 %v838
        %v1649 = vunpack.c.l.b16 %v839
        %v1650 = vunpack.c.h.b16 %v839
        %v1651 = vunpack.c.l.b16 %v840
        %v1652 = vunpack.c.h.b16 %v840
        %v1653 = vunpack.c.l.b16 %v841
        %v1654 = vunpack.c.h.b16 %v841
        %v1655 = vunpack.c.l.b16 %v842
        %v1656 = vunpack.c.h.b16 %v842
        %v1657 = vunpack.c.l.b16 %v843
        %v1658 = vunpack.c.h.b16 %v843
        %v1659 = vunpack.c.l.b16 %v844
        %v1660 = vunpack.c.h.b16 %v844
        %v1661 = vunpack.c.l.b16 %v845
        %v1662 = vunpack.c.h.b16 %v845
        %v1663 = vunpack.c.l.b16 %v846
        %v1664 = vunpack.c.h.b16 %v846
        %v1665 = vunpack.c.l.b16 %v847
        %v1666 = vunpack.c.h.b16 %v847
        %v1667 = vunpack.c.l.b16 %v848
        %v1668 = vunpack.c.h.b16 %v848
        %v1669 = vunpack.c.l.b16 %v849
        %v1670 = vunpack.c.h.b16 %v849
        %v1671 = vunpack.c.l.b16 %v850
        %v1672 = vunpack.c.h.b16 %v850
        %v1673 = vunpack.c.l.b16 %v851
        %v1674 = vunpack.c.h.b16 %v851
        %v1675 = vunpack.c.l.b16 %v852
        %v1676 = vunpack.c.h.b16 %v852
        %v1677 = vunpack.c.l.b16 %v853
        %v1678 = vunpack.c.h.b16 %v853
        %v1679 = vunpack.c.l.b16 %v854
        %v1680 = vunpack.c.h.b16 %v854
        %v1681 = vunpack.c.l.b16 %v855
        %v1682 = vunpack.c.h.b16 %v855
        %v1683 = vunpack.c.l.b16 %v856
        %v1684 = vunpack.c.h.b16 %v856
        %v1685 = vunpack.c.l.b16 %v857
        %v1686 = vunpack.c.h.b16 %v857
        %v1687 = vunpack.c.l.b16 %v858
        %v1688 = vunpack.c.h.b16 %v858
        %v1689 = vunpack.c.l.b16 %v859
        %v1690 = vunpack.c.h.b16 %v859
        %v1691 = vunpack.c.l.b16 %v860
        %v1692 = vunpack.c.h.b16 %v860
        %v1693 = vunpack.c.l.b16 %v861
        %v1694 = vunpack.c.h.b16 %v861
        %v1695 = vunpack.c.l.b16 %v862
        %v1696 = vunpack.c.h.b16 %v862
        %v1697 = vunpack.c.l.b16 %v863
        %v1698 = vunpack.c.h.b16 %v863
        %v1699 = vunpack.c.l.b16 %v864
        %v1700 = vunpack.c.h.b16 %v864
        %v1701 = vunpack.c.l.b16 %v865
        %v1702 = vunpack.c.h.b16 %v865
        %v1703 = vunpack.c.l.b16 %v866
        %v1704 = vunpack.c.h.b16 %v866
        %v1705 = vunpack.c.l.b16 %v867
        %v1706 = vunpack.c.h.b16 %v867
        %v1707 = vunpack.c.l.b16 %v868
        %v1708 = vunpack.c.h.b16 %v868
        %v1709 = vunpack.c.l.b16 %v869
        %v1710 = vunpack.c.h.b16 %v869
        %v1711 = vunpack.c.l.b16 %v870
        %v1712 = vunpack.c.h.b16 %v870
        %v1713 = vunpack.c.l.b16 %v871
        %v1714 = vunpack.c.h.b16 %v871
        %v1715 = vunpack.c.l.b16 %v872
        %v1716 = vunpack.c.h.b16 %v872
        %v1717 = vunpack.c.l.b16 %v873
        %v1718 = vunpack.c.h.b16 %v873
        %v1719 = vunpack.c.l.b16 %v874
        %v1720 = vunpack.c.h.b16 %v874
        %v1721 = vunpack.c.l.b16 %v875
        %v1722 = vunpack.c.h.b16 %v875
        %v1723 = vunpack.c.l.b16 %v876
        %v1724 = vunpack.c.h.b16 %v876
        %v1725 = vunpack.c.l.b16 %v877
        %v1726 = vunpack.c.h.b16 %v877
        %v1727 = vunpack.c.l.b16 %v878
        %v1728 = vunpack.c.h.b16 %v878
        %v1729 = vunpack.c.l.b16 %v879
        %v1730 = vunpack.c.h.b16 %v879
        %v1731 = vunpack.c.l.b16 %v880
        %v1732 = vunpack.c.h.b16 %v880
        %v1733 = vunpack.c.l.b16 %v881
        %v1734 = vunpack.c.h.b16 %v881
        %v1735 = vunpack.c.l.b16 %v882
        %v1736 = vunpack.c.h.b16 %v882
        %v1737 = vunpack.c.l.b16 %v883
        %v1738 = vunpack.c.h.b16 %v883
        %v1739 = vunpack.c.l.b16 %v884
        %v1740 = vunpack.c.h.b16 %v884
        %v1741 = vunpack.c.l.b16 %v885
        %v1742 = vunpack.c.h.b16 %v885
        %v1743 = vunpack.c.l.b16 %v886
        %v1744 = vunpack.c.h.b16 %v886
        %v1745 = vunpack.c.l.b16 %v887
        %v1746 = vunpack.c.h.b16 %v887
        %v1747 = vunpack.c.l.b16 %v888
        %v1748 = vunpack.c.h.b16 %v888
        %v1749 = vunpack.c.l.b16 %v889
        %v1750 = vunpack.c.h.b16 %v889
        %v1751 = vunpack.c.l.b16 %v890
        %v1752 = vunpack.c.h.b16 %v890
        %v1753 = vunpack.c.l.b16 %v891
        %v1754 = vunpack.c.h.b16 %v891
        %v1755 = vunpack.c.l.b16 %v892
        %v1756 = vunpack.c.h.b16 %v892
        %v1757 = vunpack.c.l.b16 %v893
        %v1758 = vunpack.c.h.b16 %v893
        %v1759 = vunpack.c.l.b16 %v894
        %v1760 = vunpack.c.h.b16 %v894
        %v1761 = vunpack.c.l.b16 %v895
        %v1762 = vunpack.c.h.b16 %v895
        %v1763 = vunpack.c.l.b16 %v896
        %v1764 = vunpack.c.h.b16 %v896
        %v1765 = vunpack.c.l.b16 %v897
        %v1766 = vunpack.c.h.b16 %v897
        %v1767 = vunpack.c.l.b16 %v898
        %v1768 = vunpack.c.h.b16 %v898
        %v1769 = vunpack.c.l.b16 %v899
        %v1770 = vunpack.c.h.b16 %v899
        %v1771 = vunpack.c.l.b16 %v900
        %v1772 = vunpack.c.h.b16 %v900
        %v1773 = vunpack.c.l.b16 %v901
        %v1774 = vunpack.c.h.b16 %v901
        %v1775 = vunpack.c.l.b16 %v902
        %v1776 = vunpack.c.h.b16 %v902
        %v1777 = vunpack.c.l.b16 %v903
        %v1778 = vunpack.c.h.b16 %v903
        %v1779 = vunpack.c.l.b16 %v904
        %v1780 = vunpack.c.h.b16 %v904
        %v1781 = vunpack.c.l.b16 %v905
        %v1782 = vunpack.c.h.b16 %v905
        %v1783 = vunpack.c.l.b16 %v906
        %v1784 = vunpack.c.h.b16 %v906
        %v1785 = vunpack.c.l.b16 %v907
        %v1786 = vunpack.c.h.b16 %v907
        %v1787 = vunpack.c.l.b16 %v908
        %v1788 = vunpack.c.h.b16 %v908
        %v1789 = vunpack.c.l.b16 %v909
        %v1790 = vunpack.c.h.b16 %v909
        %v1791 = vunpack.c.l.b16 %v910
        %v1792 = vunpack.c.h.b16 %v910
        %v1793 = vunpack.c.l.b16 %v911
        %v1794 = vunpack.c.h.b16 %v911
        %v1795 = vunpack.c.l.b16 %v912
        %v1796 = vunpack.c.h.b16 %v912
        %v1797 = vunpack.c.l.b16 %v913
        %v1798 = vunpack.c.h.b16 %v913
        %v1799 = vunpack.c.l.b16 %v914
        %v1800 = vunpack.c.h.b16 %v914
        %v1801 = vunpack.c.l.b16 %v915
        %v1802 = vunpack.c.h.b16 %v915
        %v1803 = vunpack.c.l.b16 %v916
        %v1804 = vunpack.c.h.b16 %v916
        %v1805 = vunpack.c.l.b16 %v917
        %v1806 = vunpack.c.h.b16 %v917
        %v1807 = vunpack.c.l.b16 %v918
        %v1808 = vunpack.c.h.b16 %v918
        %v1809 = vunpack.c.l.b16 %v919
        %v1810 = vunpack.c.h.b16 %v919
        %v1811 = vunpack.c.l.b16 %v920
        %v1812 = vunpack.c.h.b16 %v920
        %v1813 = vunpack.c.l.b16 %v921
        %v1814 = vunpack.c.h.b16 %v921
        %v1815 = vunpack.c.l.b16 %v922
        %v1816 = vunpack.c.h.b16 %v922
        %v1817 = vunpack.c.l.b16 %v923
        %v1818 = vunpack.c.h.b16 %v923
        %v1819 = vunpack.c.l.b16 %v924
        %v1820 = vunpack.c.h.b16 %v924
        %v1821 = vunpack.c.l.b16 %v925
        %v1822 = vunpack.c.h.b16 %v925
        %v1823 = vunpack.c.l.b16 %v926
        %v1824 = vunpack.c.h.b16 %v926
        %v1825 = vunpack.c.l.b16 %v927
        %v1826 = vunpack.c.h.b16 %v927
        %v1827 = vunpack.c.l.b16 %v928
        %v1828 = vunpack.c.h.b16 %v928
        %v1829 = vunpack.c.l.b16 %v929
        %v1830 = vunpack.c.h.b16 %v929
        %v1831 = vunpack.c.l.b16 %v930
        %v1832 = vunpack.c.h.b16 %v930
        %v1833 = vunpack.c.l.b16 %v931
        %v1834 = vunpack.c.h.b16 %v931
        %v1835 = vunpack.c.l.b16 %v932
        %v1836 = vunpack.c.h.b16 %v932
        %v1837 = vunpack.c.l.b16 %v933
        %v1838 = vunpack.c.h.b16 %v933
        %v1839 = vunpack.c.l.b16 %v934
        %v1840 = vunpack.c.h.b16 %v934
        %v1841 = vunpack.c.l.b16 %v935
        %v1842 = vunpack.c.h.b16 %v935
        %v1843 = vunpack.c.l.b16 %v936
        %v1844 = vunpack.c.h.b16 %v936
        %v1845 = vunpack.c.l.b16 %v937
        %v1846 = vunpack.c.h.b16 %v937
        %v1847 = vunpack.c.l.b16 %v938
        %v1848 = vunpack.c.h.b16 %v938
        %v1849 = vunpack.c.l.b16 %v939
        %v1850 = vunpack.c.h.b16 %v939
        %v1851 = vunpack.c.l.b16 %v940
        %v1852 = vunpack.c.h.b16 %v940
        %v1853 = vunpack.c.l.b16 %v941
        %v1854 = vunpack.c.h.b16 %v941
        %v1855 = vunpack.c.l.b16 %v942
        %v1856 = vunpack.c.h.b16 %v942
        %v1857 = vunpack.c.l.b16 %v943
        %v1858 = vunpack.c.h.b16 %v943
        %v1859 = vunpack.c.l.b16 %v944
        %v1860 = vunpack.c.h.b16 %v944
        %v1861 = vunpack.c.l.b16 %v945
        %v1862 = vunpack.c.h.b16 %v945
        %v1863 = vunpack.c.l.b16 %v946
        %v1864 = vunpack.c.h.b16 %v946
        %v1865 = vunpack.c.l.b16 %v947
        %v1866 = vunpack.c.h.b16 %v947
        %v1867 = vunpack.c.l.b16 %v948
        %v1868 = vunpack.c.h.b16 %v948
        %v1869 = vunpack.c.l.b16 %v949
        %v1870 = vunpack.c.h.b16 %v949
        %v1871 = vunpack.c.l.b16 %v950
        %v1872 = vunpack.c.h.b16 %v950
        %v1873 = vunpack.c.l.b16 %v951
        %v1874 = vunpack.c.h.b16 %v951
        %v1875 = vunpack.c.l.b16 %v952
        %v1876 = vunpack.c.h.b16 %v952
        %v1877 = vunpack.c.l.b16 %v953
        %v1878 = vunpack.c.h.b16 %v953
        %v1879 = vunpack.c.l.b16 %v954
        %v1880 = vunpack.c.h.b16 %v954
        %v1881 = vunpack.c.l.b16 %v955
        %v1882 = vunpack.c.h.b16 %v955
        %v1883 = vunpack.c.l.b16 %v956
        %v1884 = vunpack.c.h.b16 %v956
        %v1885 = vunpack.c.l.b16 %v957
        %v1886 = vunpack.c.h.b16 %v957
        %v1887 = vunpack.c.l.b16 %v958
        %v1888 = vunpack.c.h.b16 %v958
        %v1889 = vunpack.c.l.b16 %v959
        %v1890 = vunpack.c.h.b16 %v959
        %v1891 = vunpack.c.l.b16 %v960
        %v1892 = vunpack.c.h.b16 %v960
        %v1893 = vunpack.c.l.b16 %v961
        %v1894 = vunpack.c.h.b16 %v961
        %v1895 = vunpack.c.l.b16 %v962
        %v1896 = vunpack.c.h.b16 %v962
        %v1897 = vunpack.c.l.b16 %v963
        %v1898 = vunpack.c.h.b16 %v963
        %v1899 = vunpack.c.l.b16 %v964
        %v1900 = vunpack.c.h.b16 %v964
        %v1901 = vunpack.c.l.b16 %v965
        %v1902 = vunpack.c.h.b16 %v965
        %v1903 = vunpack.c.l.b16 %v966
        %v1904 = vunpack.c.h.b16 %v966
        %v1905 = vunpack.c.l.b16 %v967
        %v1906 = vunpack.c.h.b16 %v967
        %v1907 = vunpack.c.l.b16 %v968
        %v1908 = vunpack.c.h.b16 %v968
        %v1909 = vunpack.c.l.b16 %v969
        %v1910 = vunpack.c.h.b16 %v969
        %v1911 = vunpack.c.l.b16 %v970
        %v1912 = vunpack.c.h.b16 %v970
        %v1913 = vunpack.c.l.b16 %v971
        %v1914 = vunpack.c.h.b16 %v971
        %v1915 = vunpack.c.l.b16 %v972
        %v1916 = vunpack.c.h.b16 %v972
        %v1917 = vunpack.c.l.b16 %v973
        %v1918 = vunpack.c.h.b16 %v973
        %v1919 = vunpack.c.l.b16 %v974
        %v1920 = vunpack.c.h.b16 %v974
        %v1921 = vunpack.c.l.b16 %v975
        %v1922 = vunpack.c.h.b16 %v975
        %v1923 = vunpack.c.l.b16 %v976
        %v1924 = vunpack.c.h.b16 %v976
        %v1925 = vunpack.c.l.b16 %v977
        %v1926 = vunpack.c.h.b16 %v977
        %v1927 = vunpack.c.l.b16 %v978
        %v1928 = vunpack.c.h.b16 %v978
        %v1929 = vunpack.c.l.b16 %v979
        %v1930 = vunpack.c.h.b16 %v979
        %v1931 = vunpack.c.l.b16 %v980
        %v1932 = vunpack.c.h.b16 %v980
        %v1933 = vunpack.c.l.b16 %v981
        %v1934 = vunpack.c.h.b16 %v981
        %v1935 = vunpack.c.l.b16 %v982
        %v1936 = vunpack.c.h.b16 %v982
        %v1937 = vunpack.c.l.b16 %v983
        %v1938 = vunpack.c.h.b16 %v983
        %v1939 = vunpack.c.l.b16 %v984
        %v1940 = vunpack.c.h.b16 %v984
        %v1941 = vunpack.c.l.b16 %v985
        %v1942 = vunpack.c.h.b16 %v985
        %v1943 = vunpack.c.l.b16 %v986
        %v1944 = vunpack.c.h.b16 %v986
        %v1945 = vunpack.c.l.b16 %v987
        %v1946 = vunpack.c.h.b16 %v987
        %v1947 = vunpack.c.l.b16 %v988
        %v1948 = vunpack.c.h.b16 %v988
        %v1949 = vunpack.c.l.b16 %v989
        %v1950 = vunpack.c.h.b16 %v989
        %v1951 = vunpack.c.l.b16 %v990
        %v1952 = vunpack.c.h.b16 %v990
        %v1953 = vunpack.c.l.b16 %v991
        %v1954 = vunpack.c.h.b16 %v991
        %v1955 = vunpack.c.l.b16 %v992
        %v1956 = vunpack.c.h.b16 %v992
        %v1957 = vunpack.c.l.b16 %v993
        %v1958 = vunpack.c.h.b16 %v993
        %v1959 = vunpack.c.l.b16 %v994
        %v1960 = vunpack.c.h.b16 %v994
        %v1961 = vunpack.c.l.b16 %v995
        %v1962 = vunpack.c.h.b16 %v995
        %v1963 = vunpack.c.l.b16 %v996
        %v1964 = vunpack.c.h.b16 %v996
        %v1965 = vunpack.c.l.b16 %v997
        %v1966 = vunpack.c.h.b16 %v997
        %v1967 = vunpack.c.l.b16 %v998
        %v1968 = vunpack.c.h.b16 %v998
        %v1969 = vunpack.c.l.b16 %v999
        %v1970 = vunpack.c.h.b16 %v999
        %v1971 = vunpack.c.l.b16 %v1000
        %v1972 = vunpack.c.h.b16 %v1000
        %v1973 = vunpack.c.l.b16 %v1001
        %v1974 = vunpack.c.h.b16 %v1001
        %v1975 = vunpack.c.l.b16 %v1002
        %v1976 = vunpack.c.h.b16 %v1002
        %v1977 = vunpack.c.l.b16 %v1003
        %v1978 = vunpack.c.h.b16 %v1003
        %v1979 = vunpack.c.l.b16 %v1004
        %v1980 = vunpack.c.h.b16 %v1004
        %v1981 = vunpack.c.l.b16 %v1005
        %v1982 = vunpack.c.h.b16 %v1005
        %v1983 = vunpack.c.l.b16 %v1006
        %v1984 = vunpack.c.h.b16 %v1006
        %v1985 = vunpack.c.l.b16 %v1007
        %v1986 = vunpack.c.h.b16 %v1007
        %v1987 = vunpack.c.l.b16 %v1008
        %v1988 = vunpack.c.h.b16 %v1008
        %v1989 = vunpack.c.l.b16 %v1009
        %v1990 = vunpack.c.h.b16 %v1009
        %v1991 = vunpack.c.l.b16 %v1010
        %v1992 = vunpack.c.h.b16 %v1010
        %v1993 = vunpack.c.l.b16 %v1011
        %v1994 = vunpack.c.h.b16 %v1011
        %v1995 = vunpack.c.l.b16 %v1012
        %v1996 = vunpack.c.h.b16 %v1012
        %v1997 = vunpack.c.l.b16 %v1013
        %v1998 = vunpack.c.h.b16 %v1013
        %v1999 = vunpack.c.l.b16 %v1014
        %v2000 = vunpack.c.h.b16 %v1014
        %v2001 = vunpack.c.l.b16 %v1015
        %v2002 = vunpack.c.h.b16 %v1015
        %v2003 = vunpack.c.l.b16 %v1016
        %v2004 = vunpack.c.h.b16 %v1016
        %v2005 = vunpack.c.l.b16 %v1017
        %v2006 = vunpack.c.h.b16 %v1017
        %v2007 = vunpack.c.l.b16 %v1018
        %v2008 = vunpack.c.h.b16 %v1018
        %v2009 = vunpack.c.l.b16 %v1019
        %v2010 = vunpack.c.h.b16 %v1019
        %v2011 = vunpack.c.l.b16 %v1020
        %v2012 = vunpack.c.h.b16 %v1020
        %v2013 = vunpack.c.l.b16 %v1021
        %v2014 = vunpack.c.h.b16 %v1021
        %v2015 = vunpack.c.l.b16 %v1022
        %v2016 = vunpack.c.h.b16 %v1022
        %v2017 = vunpack.c.l.b16 %v1023
        %v2018 = vunpack.c.h.b16 %v1023
        %v2019 = vunpack.c.l.b16 %v1024
        %v2020 = vunpack.c.h.b16 %v1024
        %v2021 = vunpack.c.l.b16 %v1025
        %v2022 = vunpack.c.h.b16 %v1025
        %v2023 = vunpack.c.l.b16 %v1026
        %v2024 = vunpack.c.h.b16 %v1026
        %v2025 = vunpack.c.l.b16 %v1027
        %v2026 = vunpack.c.h.b16 %v1027
        %v2027 = vunpack.c.l.b16 %v1028
        %v2028 = vunpack.c.h.b16 %v1028
        %v2029 = vunpack.c.l.b16 %v1029
        %v2030 = vunpack.c.h.b16 %v1029
        %v2031 = vunpack.c.l.b16 %v1030
        %v2032 = vunpack.c.h.b16 %v1030
        %v2033 = vunpack.c.l.b16 %v1031
        %v2034 = vunpack.c.h.b16 %v1031
        %v2035 = vunpack.c.l.b16 %v1032
        %v2036 = vunpack.c.h.b16 %v1032
        %v2037 = vunpack.c.l.b16 %v1033
        %v2038 = vunpack.c.h.b16 %v1033
        %v2039 = vunpack.c.l.b16 %v1034
        %v2040 = vunpack.c.h.b16 %v1034
        %v2041 = vunpack.c.l.b16 %v1035
        %v2042 = vunpack.c.h.b16 %v1035
        %v2043 = vunpack.c.l.b16 %v1036
        %v2044 = vunpack.c.h.b16 %v1036
        %v2045 = vunpack.c.l.b16 %v1037
        %v2046 = vunpack.c.h.b16 %v1037
        %v2047 = vunpack.c.l.b16 %v1038
        %v2048 = vunpack.c.h.b16 %v1038
        %v2049 = vunpack.c.l.b16 %v1039
        %v2050 = vunpack.c.h.b16 %v1039
        %v2051 = vunpack.c.l.b16 %v1040
        %v2052 = vunpack.c.h.b16 %v1040
        %v2053 = vunpack.c.l.b16 %v1041
        %v2054 = vunpack.c.h.b16 %v1041
        %v2055 = vunpack.c.l.b16 %v1042
        %v2056 = vunpack.c.h.b16 %v1042
        %v2057 = vunpack.c.l.b16 %v1043
        %v2058 = vunpack.c.h.b16 %v1043
        %v2059 = vunpack.c.l.b16 %v1044
        %v2060 = vunpack.c.h.b16 %v1044
        %v2061 = vunpack.c.l.b16 %v1045
        %v2062 = vunpack.c.h.b16 %v1045
        %v2063 = vunpack.c.l.b16 %v1046
        %v2064 = vunpack.c.h.b16 %v1046
        %v2065 = vunpack.c.l.b16 %v1047
        %v2066 = vunpack.c.h.b16 %v1047
        %v2067 = vunpack.c.l.b16 %v1048
        %v2068 = vunpack.c.h.b16 %v1048
        %v2069 = vunpack.c.l.b16 %v1049
        %v2070 = vunpack.c.h.b16 %v1049
        %v2071 = vunpack.c.l.b16 %v1050
        %v2072 = vunpack.c.h.b16 %v1050
        %v2073 = vunpack.c.l.b16 %v1051
        %v2074 = vunpack.c.h.b16 %v1051
        %v2075 = vunpack.c.l.b16 %v1052
        %v2076 = vunpack.c.h.b16 %v1052
        %v2077 = vunpack.c.l.b16 %v1053
        %v2078 = vunpack.c.h.b16 %v1053
        %v2079 = vunpack.c.l.b16 %v1054
        %v2080 = vunpack.c.h.b16 %v1054
        %v2081 = vunpack.c.l.b16 %v1055
        %v2082 = vunpack.c.h.b16 %v1055
        %v2083 = vunpack.c.l.b16 %v1056
        %v2084 = vunpack.c.h.b16 %v1056
        %v2085 = vunpack.c.l.b16 %v1057
        %v2086 = vunpack.c.h.b16 %v1057
        %v2087 = vunpack.c.l.b16 %v1058
        %v2088 = vunpack.c.h.b16 %v1058
        %v2089 = vunpack.c.l.b16 %v1059
        %v2090 = vunpack.c.h.b16 %v1059
        %v2091 = vunpack.c.l.b16 %v1060
        %v2092 = vunpack.c.h.b16 %v1060
        %v2093 = vunpack.c.l.b16 %v1061
        %v2094 = vunpack.c.h.b16 %v1061
        %v2095 = vunpack.c.l.b16 %v1062
        %v2096 = vunpack.c.h.b16 %v1062
        %v2097 = vunpack.c.l.b16 %v1063
        %v2098 = vunpack.c.h.b16 %v1063
        %v2099 = vunpack.c.l.b16 %v1064
        %v2100 = vunpack.c.h.b16 %v1064
        %v2101 = vunpack.c.l.b16 %v1065
        %v2102 = vunpack.c.h.b16 %v1065
        %v2103 = vunpack.c.l.b16 %v1066
        %v2104 = vunpack.c.h.b16 %v1066
        %v2105 = vunpack.c.l.b16 %v1067
        %v2106 = vunpack.c.h.b16 %v1067
        %v2107 = vunpack.c.l.b16 %v1068
        %v2108 = vunpack.c.h.b16 %v1068
        %v2109 = vunpack.c.l.b16 %v1069
        %v2110 = vunpack.c.h.b16 %v1069
        %v2111 = vunpack.c.l.b16 %v1070
        %v2112 = vunpack.c.h.b16 %v1070
        %v2113 = vunpack.c.l.b16 %v1071
        %v2114 = vunpack.c.h.b16 %v1071
        %v2115 = vunpack.c.l.b16 %v1072
        %v2116 = vunpack.c.h.b16 %v1072
        %v2117 = vunpack.c.l.b16 %v1073
        %v2118 = vunpack.c.h.b16 %v1073
        %v2119 = vunpack.c.l.b16 %v1074
        %v2120 = vunpack.c.h.b16 %v1074
        %v2121 = vunpack.c.l.b16 %v1075
        %v2122 = vunpack.c.h.b16 %v1075
        %v2123 = vunpack.c.l.b16 %v1076
        %v2124 = vunpack.c.h.b16 %v1076
        %v2125 = vunpack.c.l.b16 %v1077
        %v2126 = vunpack.c.h.b16 %v1077
        %v2127 = vunpack.c.l.b16 %v1078
        %v2128 = vunpack.c.h.b16 %v1078
        %v2129 = vunpack.c.l.b16 %v1079
        %v2130 = vunpack.c.h.b16 %v1079
        %v2131 = vunpack.c.l.b16 %v1080
        %v2132 = vunpack.c.h.b16 %v1080
        %v2133 = vunpack.c.l.b16 %v1081
        %v2134 = vunpack.c.h.b16 %v1081
        %v2135 = vunpack.c.l.b16 %v1082
        %v2136 = vunpack.c.h.b16 %v1082
        %v2137 = vunpack.c.l.b16 %v1083
        %v2138 = vunpack.c.h.b16 %v1083
        %v2139 = vunpack.c.l.b16 %v1084
        %v2140 = vunpack.c.h.b16 %v1084
        %v2141 = vunpack.c.l.b16 %v1085
        %v2142 = vunpack.c.h.b16 %v1085
        %v2143 = vunpack.c.l.b16 %v1086
        %v2144 = vunpack.c.h.b16 %v1086
        %v2145 = vunpack.c.l.b16 %v1087
        %v2146 = vunpack.c.h.b16 %v1087
        %v2147 = vunpack.c.l.b16 %v1088
        %v2148 = vunpack.c.h.b16 %v1088
        %v2149 = vunpack.c.l.b16 %v1089
        %v2150 = vunpack.c.h.b16 %v1089
        %v2151 = vunpack.c.l.b16 %v1090
        %v2152 = vunpack.c.h.b16 %v1090
        %v2153 = vunpack.c.l.b16 %v1091
        %v2154 = vunpack.c.h.b16 %v1091
        %v2155 = vunpack.c.l.b16 %v1092
        %v2156 = vunpack.c.h.b16 %v1092
        %v2157 = vunpack.c.l.b16 %v1093
        %v2158 = vunpack.c.h.b16 %v1093
        %v2159 = vunpack.c.l.b16 %v1094
        %v2160 = vunpack.c.h.b16 %v1094
        %v2161 = vunpack.c.l.b16 %v1095
        %v2162 = vunpack.c.h.b16 %v1095
        %v2163 = vunpack.c.l.b16 %v1096
        %v2164 = vunpack.c.h.b16 %v1096
        %v2165 = vunpack.c.l.b16 %v1097
        %v2166 = vunpack.c.h.b16 %v1097
        %v2167 = vunpack.c.l.b16 %v1098
        %v2168 = vunpack.c.h.b16 %v1098
        %v2169 = vunpack.c.l.b16 %v1099
        %v2170 = vunpack.c.h.b16 %v1099
        %v2171 = vunpack.c.l.b16 %v1100
        %v2172 = vunpack.c.h.b16 %v1100
        %v2173 = vunpack.c.l.b16 %v1101
        %v2174 = vunpack.c.h.b16 %v1101
        %v2175 = vunpack.c.l.b16 %v1102
        %v2176 = vunpack.c.h.b16 %v1102
        %v2177 = vunpack.c.l.b16 %v1103
        %v2178 = vunpack.c.h.b16 %v1103
        %v2179 = vunpack.c.l.b16 %v1104
        %v2180 = vunpack.c.h.b16 %v1104
        %v2181 = vunpack.c.l.b16 %v1105
        %v2182 = vunpack.c.h.b16 %v1105
        %v2183 = vunpack.c.l.b16 %v1106
        %v2184 = vunpack.c.h.b16 %v1106
        %v2185 = vunpack.c.l.b16 %v1107
        %v2186 = vunpack.c.h.b16 %v1107
        %v2187 = vunpack.c.l.b16 %v1108
        %v2188 = vunpack.c.h.b16 %v1108
        %v2189 = vunpack.c.l.b16 %v1109
        %v2190 = vunpack.c.h.b16 %v1109
        %v2191 = vunpack.c.l.b16 %v1110
        %v2192 = vunpack.c.h.b16 %v1110
        %v2193 = vunpack.c.l.b16 %v1111
        %v2194 = vunpack.c.h.b16 %v1111
        %v2195 = vunpack.c.l.b16 %v1112
        %v2196 = vunpack.c.h.b16 %v1112
        %v2197 = vunpack.c.l.b16 %v1113
        %v2198 = vunpack.c.h.b16 %v1113
        %v2199 = vunpack.c.l.b16 %v1114
        %v2200 = vunpack.c.h.b16 %v1114
        %v2201 = vunpack.c.l.b16 %v1115
        %v2202 = vunpack.c.h.b16 %v1115
        %v2203 = vunpack.c.l.b16 %v1116
        %v2204 = vunpack.c.h.b16 %v1116
        %v2205 = vunpack.c.l.b16 %v1117
        %v2206 = vunpack.c.h.b16 %v1117
        %v2207 = vunpack.c.l.b16 %v1118
        %v2208 = vunpack.c.h.b16 %v1118
        %v2209 = vunpack.c.l.b16 %v1119
        %v2210 = vunpack.c.h.b16 %v1119
        %v2211 = vunpack.c.l.b16 %v1120
        %v2212 = vunpack.c.h.b16 %v1120
        %v2213 = vunpack.c.l.b16 %v1121
        %v2214 = vunpack.c.h.b16 %v1121
        %v2215 = vunpack.c.l.b16 %v1122
        %v2216 = vunpack.c.h.b16 %v1122
        %v2217 = vunpack.c.l.b16 %v1123
        %v2218 = vunpack.c.h.b16 %v1123
        %v2219 = vunpack.c.l.b16 %v1124
        %v2220 = vunpack.c.h.b16 %v1124
        %v2221 = vunpack.c.l.b16 %v1125
        %v2222 = vunpack.c.h.b16 %v1125
        %v2223 = vunpack.c.l.b16 %v1126
        %v2224 = vunpack.c.h.b16 %v1126
        %v2225 = vunpack.c.l.b16 %v1127
        %v2226 = vunpack.c.h.b16 %v1127
        %v2227 = vunpack.c.l.b16 %v1128
        %v2228 = vunpack.c.h.b16 %v1128
        %v2229 = vunpack.c.l.b16 %v1129
        %v2230 = vunpack.c.h.b16 %v1129
        %v2231 = vunpack.c.l.b16 %v1130
        %v2232 = vunpack.c.h.b16 %v1130
        %v2233 = vunpack.c.l.b16 %v1131
        %v2234 = vunpack.c.h.b16 %v1131
        %v2235 = vunpack.c.l.b16 %v1132
        %v2236 = vunpack.c.h.b16 %v1132
        %v2237 = vunpack.c.l.b16 %v1133
        %v2238 = vunpack.c.h.b16 %v1133
        %v2239 = vunpack.c.l.b16 %v1134
        %v2240 = vunpack.c.h.b16 %v1134
        %v2241 = vunpack.c.l.b16 %v1135
        %v2242 = vunpack.c.h.b16 %v1135
        %v2243 = vunpack.c.l.b16 %v1136
        %v2244 = vunpack.c.h.b16 %v1136
        %v2245 = vunpack.c.l.b16 %v1137
        %v2246 = vunpack.c.h.b16 %v1137
        %v2247 = vunpack.c.l.b16 %v1138
        %v2248 = vunpack.c.h.b16 %v1138
        %v2249 = vunpack.c.l.b16 %v1139
        %v2250 = vunpack.c.h.b16 %v1139
        %v2251 = vunpack.c.l.b16 %v1140
        %v2252 = vunpack.c.h.b16 %v1140
        %v2253 = vunpack.c.l.b16 %v1141
        %v2254 = vunpack.c.h.b16 %v1141
        %v2255 = vunpack.c.l.b16 %v1142
        %v2256 = vunpack.c.h.b16 %v1142
        %v2257 = vunpack.c.l.b16 %v1143
        %v2258 = vunpack.c.h.b16 %v1143
        %v2259 = vunpack.c.l.b16 %v1144
        %v2260 = vunpack.c.h.b16 %v1144
        %v2261 = vunpack.c.l.b16 %v1145
        %v2262 = vunpack.c.h.b16 %v1145
        %v2263 = vunpack.c.l.b16 %v1146
        %v2264 = vunpack.c.h.b16 %v1146
        %v2265 = vunpack.c.l.b16 %v1147
        %v2266 = vunpack.c.h.b16 %v1147
        %v2267 = vunpack.c.l.b16 %v1148
        %v2268 = vunpack.c.h.b16 %v1148
        %v2269 = vunpack.c.l.b16 %v1149
        %v2270 = vunpack.c.h.b16 %v1149
        %v2271 = vunpack.c.l.b16 %v1150
        %v2272 = vunpack.c.h.b16 %v1150
        %v2273 = vunpack.c.l.b16 %v1151
        %v2274 = vunpack.c.h.b16 %v1151
        %v2275 = vunpack.c.l.b16 %v1152
        %v2276 = vunpack.c.h.b16 %v1152
        %v2277 = vunpack.c.l.b16 %v1153
        %v2278 = vunpack.c.h.b16 %v1153
        %v2279 = vunpack.c.l.b16 %v1154
        %v2280 = vunpack.c.h.b16 %v1154
        %v2281 = vunpack.c.l.b16 %v1155
        %v2282 = vunpack.c.h.b16 %v1155
        %v2283 = vunpack.c.l.b16 %v1156
        %v2284 = vunpack.c.h.b16 %v1156
        %v2285 = vunpack.c.l.b16 %v1157
        %v2286 = vunpack.c.h.b16 %v1157
        %v2287 = vunpack.c.l.b16 %v1158
        %v2288 = vunpack.c.h.b16 %v1158
        %v2289 = vunpack.c.l.b16 %v1159
        %v2290 = vunpack.c.h.b16 %v1159
        %v2291 = vunpack.c.l.b16 %v1160
        %v2292 = vunpack.c.h.b16 %v1160
        %v2293 = vunpack.c.l.b16 %v1161
        %v2294 = vunpack.c.h.b16 %v1161
        %v2295 = vunpack.c.l.b16 %v1162
        %v2296 = vunpack.c.h.b16 %v1162
        %v2297 = vunpack.c.l.b16 %v1163
        %v2298 = vunpack.c.h.b16 %v1163
        %v2299 = vunpack.c.l.b16 %v1164
        %v2300 = vunpack.c.h.b16 %v1164
        %v2301 = vunpack.c.l.b16 %v1165
        %v2302 = vunpack.c.h.b16 %v1165
        %v2303 = vunpack.c.l.b16 %v1166
        %v2304 = vunpack.c.h.b16 %v1166
        %v2305 = vunpack.c.l.b16 %v1167
        %v2306 = vunpack.c.h.b16 %v1167
        %v2307 = vunpack.c.l.b16 %v1168
        %v2308 = vunpack.c.h.b16 %v1168
        %v2309 = vunpack.c.l.b16 %v1169
        %v2310 = vunpack.c.h.b16 %v1169
        %v2311 = vunpack.c.l.b16 %v1170
        %v2312 = vunpack.c.h.b16 %v1170
        %v2313 = vunpack.c.l.b16 %v1171
        %v2314 = vunpack.c.h.b16 %v1171
        %v2315 = vunpack.c.l.b16 %v1172
        %v2316 = vunpack.c.h.b16 %v1172
        %v2317 = vunpack.c.l.b16 %v1173
        %v2318 = vunpack.c.h.b16 %v1173
        %v2319 = vunpack.c.l.b16 %v1174
        %v2320 = vunpack.c.h.b16 %v1174
        %v2321 = vunpack.c.l.b16 %v1175
        %v2322 = vunpack.c.h.b16 %v1175
        %v2323 = vunpack.c.l.b16 %v1176
        %v2324 = vunpack.c.h.b16 %v1176
        %v2325 = vunpack.c.l.b16 %v1177
        %v2326 = vunpack.c.h.b16 %v1177
        %v2327 = vunpack.c.l.b16 %v1178
        %v2328 = vunpack.c.h.b16 %v1178
        %v2329 = vunpack.c.l.b16 %v1179
        %v2330 = vunpack.c.h.b16 %v1179
        %v2331 = vunpack.c.l.b16 %v1180
        %v2332 = vunpack.c.h.b16 %v1180
        %v2333 = vpack.c.b16 %v1571, %v1565
        %v2334 = vpack.c.b16 %v1572, %v1566
        %v2335 = vpack.c.b16 %v1573, %v1567
        %v2336 = vpack.c.b16 %v1574, %v1568
        %v2337 = vpack.c.b16 %v1575, %v1569
        %v2338 = vpack.c.b16 %v1576, %v1570
        %v2339 = vpack.c.b16 %v1583, %v1577
        %v2340 = vpack.c.b16 %v1584, %v1578
        %v2341 = vpack.c.b16 %v1585, %v1579
        %v2342 = vpack.c.b16 %v1586, %v1580
        %v2343 = vpack.c.b16 %v1587, %v1581
        %v2344 = vpack.c.b16 %v1588, %v1582
        %v2345 = vpack.c.b16 %v1595, %v1589
        %v2346 = vpack.c.b16 %v1596, %v1590
        %v2347 = vpack.c.b16 %v1597, %v1591
        %v2348 = vpack.c.b16 %v1598, %v1592
        %v2349 = vpack.c.b16 %v1599, %v1593
        %v2350 = vpack.c.b16 %v1600, %v1594
        %v2351 = vpack.c.b16 %v1607, %v1601
        %v2352 = vpack.c.b16 %v1608, %v1602
        %v2353 = vpack.c.b16 %v1609, %v1603
        %v2354 = vpack.c.b16 %v1610, %v1604
        %v2355 = vpack.c.b16 %v1611, %v1605
        %v2356 = vpack.c.b16 %v1612, %v1606
        %v2357 = vpack.c.b16 %v1619, %v1613
        %v2358 = vpack.c.b16 %v1620, %v1614
        %v2359 = vpack.c.b16 %v1621, %v1615
        %v2360 = vpack.c.b16 %v1622, %v1616
        %v2361 = vpack.c.b16 %v1623, %v1617
        %v2362 = vpack.c.b16 %v1624, %v1618
        %v2363 = vpack.c.b16 %v1631, %v1625
        %v2364 = vpack.c.b16 %v1632, %v1626
        %v2365 = vpack.c.b16 %v1633, %v1627
        %v2366 = vpack.c.b16 %v1634, %v1628
        %v2367 = vpack.c.b16 %v1635, %v1629
        %v2368 = vpack.c.b16 %v1636, %v1630
        %v2369 = vpack.c.b16 %v1643, %v1637
        %v2370 = vpack.c.b16 %v1644, %v1638
        %v2371 = vpack.c.b16 %v1645, %v1639
        %v2372 = vpack.c.b16 %v1646, %v1640
        %v2373 = vpack.c.b16 %v1647, %v1641
        %v2374 = vpack.c.b16 %v1648, %v1642
        %v2375 = vpack.c.b16 %v1655, %v1649
        %v2376 = vpack.c.b16 %v1656, %v1650
        %v2377 = vpack.c.b16 %v1657, %v1651
        %v2378 = vpack.c.b16 %v1658, %v1652
        %v2379 = vpack.c.b16 %v1659, %v1653
        %v2380 = vpack.c.b16 %v1660, %v1654
        %v2381 = vpack.c.b16 %v1667, %v1661
        %v2382 = vpack.c.b16 %v1668, %v1662
        %v2383 = vpack.c.b16 %v1669, %v1663
        %v2384 = vpack.c.b16 %v1670, %v1664
        %v2385 = vpack.c.b16 %v1671, %v1665
        %v2386 = vpack.c.b16 %v1672, %v1666
        %v2387 = vpack.c.b16 %v1679, %v1673
        %v2388 = vpack.c.b16 %v1680, %v1674
        %v2389 = vpack.c.b16 %v1681, %v1675
        %v2390 = vpack.c.b16 %v1682, %v1676
        %v2391 = vpack.c.b16 %v1683, %v1677
        %v2392 = vpack.c.b16 %v1684, %v1678
        %v2393 = vpack.c.b16 %v1691, %v1685
        %v2394 = vpack.c.b16 %v1692, %v1686
        %v2395 = vpack.c.b16 %v1693, %v1687
        %v2396 = vpack.c.b16 %v1694, %v1688
        %v2397 = vpack.c.b16 %v1695, %v1689
        %v2398 = vpack.c.b16 %v1696, %v1690
        %v2399 = vpack.c.b16 %v1703, %v1697
        %v2400 = vpack.c.b16 %v1704, %v1698
        %v2401 = vpack.c.b16 %v1705, %v1699
        %v2402 = vpack.c.b16 %v1706, %v1700
        %v2403 = vpack.c.b16 %v1707, %v1701
        %v2404 = vpack.c.b16 %v1708, %v1702
        %v2405 = vpack.c.b16 %v1715, %v1709
        %v2406 = vpack.c.b16 %v1716, %v1710
        %v2407 = vpack.c.b16 %v1717, %v1711
        %v2408 = vpack.c.b16 %v1718, %v1712
        %v2409 = vpack.c.b16 %v1719, %v1713
        %v2410 = vpack.c.b16 %v1720, %v1714
        %v2411 = vpack.c.b16 %v1727, %v1721
        %v2412 = vpack.c.b16 %v1728, %v1722
        %v2413 = vpack.c.b16 %v1729, %v1723
        %v2414 = vpack.c.b16 %v1730, %v1724
        %v2415 = vpack.c.b16 %v1731, %v1725
        %v2416 = vpack.c.b16 %v1732, %v1726
        %v2417 = vpack.c.b16 %v1739, %v1733
        %v2418 = vpack.c.b16 %v1740, %v1734
        %v2419 = vpack.c.b16 %v1741, %v1735
        %v2420 = vpack.c.b16 %v1742, %v1736
        %v2421 = vpack.c.b16 %v1743, %v1737
        %v2422 = vpack.c.b16 %v1744, %v1738
        %v2423 = vpack.c.b16 %v1751, %v1745
        %v2424 = vpack.c.b16 %v1752, %v1746
        %v2425 = vpack.c.b16 %v1753, %v1747
        %v2426 = vpack.c.b16 %v1754, %v1748
        %v2427 = vpack.c.b16 %v1755, %v1749
        %v2428 = vpack.c.b16 %v1756, %v1750
        %v2429 = vpack.c.b16 %v1763, %v1757
        %v2430 = vpack.c.b16 %v1764, %v1758
        %v2431 = vpack.c.b16 %v1765, %v1759
        %v2432 = vpack.c.b16 %v1766, %v1760
        %v2433 = vpack.c.b16 %v1767, %v1761
        %v2434 = vpack.c.b16 %v1768, %v1762
        %v2435 = vpack.c.b16 %v1775, %v1769
        %v2436 = vpack.c.b16 %v1776, %v1770
        %v2437 = vpack.c.b16 %v1777, %v1771
        %v2438 = vpack.c.b16 %v1778, %v1772
        %v2439 = vpack.c.b16 %v1779, %v1773
        %v2440 = vpack.c.b16 %v1780, %v1774
        %v2441 = vpack.c.b16 %v1787, %v1781
        %v2442 = vpack.c.b16 %v1788, %v1782
        %v2443 = vpack.c.b16 %v1789, %v1783
        %v2444 = vpack.c.b16 %v1790, %v1784
        %v2445 = vpack.c.b16 %v1791, %v1785
        %v2446 = vpack.c.b16 %v1792, %v1786
        %v2447 = vpack.c.b16 %v1799, %v1793
        %v2448 = vpack.c.b16 %v1800, %v1794
        %v2449 = vpack.c.b16 %v1801, %v1795
        %v2450 = vpack.c.b16 %v1802, %v1796
        %v2451 = vpack.c.b16 %v1803, %v1797
        %v2452 = vpack.c.b16 %v1804, %v1798
        %v2453 = vpack.c.b16 %v1811, %v1805
        %v2454 = vpack.c.b16 %v1812, %v1806
        %v2455 = vpack.c.b16 %v1813, %v1807
        %v2456 = vpack.c.b16 %v1814, %v1808
        %v2457 = vpack.c.b16 %v1815, %v1809
        %v2458 = vpack.c.b16 %v1816, %v1810
        %v2459 = vpack.c.b16 %v1823, %v1817
        %v2460 = vpack.c.b16 %v1824, %v1818
        %v2461 = vpack.c.b16 %v1825, %v1819
        %v2462 = vpack.c.b16 %v1826, %v1820
        %v2463 = vpack.c.b16 %v1827, %v1821
        %v2464 = vpack.c.b16 %v1828, %v1822
        %v2465 = vpack.c.b16 %v1835, %v1829
        %v2466 = vpack.c.b16 %v1836, %v1830
        %v2467 = vpack.c.b16 %v1837, %v1831
        %v2468 = vpack.c.b16 %v1838, %v1832
        %v2469 = vpack.c.b16 %v1839, %v1833
        %v2470 = vpack.c.b16 %v1840, %v1834
        %v2471 = vpack.c.b16 %v1847, %v1841
        %v2472 = vpack.c.b16 %v1848, %v1842
        %v2473 = vpack.c.b16 %v1849, %v1843
        %v2474 = vpack.c.b16 %v1850, %v1844
        %v2475 = vpack.c.b16 %v1851, %v1845
        %v2476 = vpack.c.b16 %v1852, %v1846
        %v2477 = vpack.c.b16 %v1859, %v1853
        %v2478 = vpack.c.b16 %v1860, %v1854
        %v2479 = vpack.c.b16 %v1861, %v1855
        %v2480 = vpack.c.b16 %v1862, %v1856
        %v2481 = vpack.c.b16 %v1863, %v1857
        %v2482 = vpack.c.b16 %v1864, %v1858
        %v2483 = vpack.c.b16 %v1871, %v1865
        %v2484 = vpack.c.b16 %v1872, %v1866
        %v2485 = vpack.c.b16 %v1873, %v1867
        %v2486 = vpack.c.b16 %v1874, %v1868
        %v2487 = vpack.c.b16 %v1875, %v1869
        %v2488 = vpack.c.b16 %v1876, %v1870
        %v2489 = vpack.c.b16 %v1883, %v1877
        %v2490 = vpack.c.b16 %v1884, %v1878
        %v2491 = vpack.c.b16 %v1885, %v1879
        %v2492 = vpack.c.b16 %v1886, %v1880
        %v2493 = vpack.c.b16 %v1887, %v1881
        %v2494 = vpack.c.b16 %v1888, %v1882
        %v2495 = vpack.c.b16 %v1895, %v1889
        %v2496 = vpack.c.b16 %v1896, %v1890
        %v2497 = vpack.c.b16 %v1897, %v1891
        %v2498 = vpack.c.b16 %v1898, %v1892
        %v2499 = vpack.c.b16 %v1899, %v1893
        %v2500 = vpack.c.b16 %v1900, %v1894
        %v2501 = vpack.c.b16 %v1907, %v1901
        %v2502 = vpack.c.b16 %v1908, %v1902
        %v2503 = vpack.c.b16 %v1909, %v1903
        %v2504 = vpack.c.b16 %v1910, %v1904
        %v2505 = vpack.c.b16 %v1911, %v1905
        %v2506 = vpack.c.b16 %v1912, %v1906
        %v2507 = vpack.c.b16 %v1919, %v1913
        %v2508 = vpack.c.b16 %v1920, %v1914
        %v2509 = vpack.c.b16 %v1921, %v1915
        %v2510 = vpack.c.b16 %v1922, %v1916
        %v2511 = vpack.c.b16 %v1923, %v1917
        %v2512 = vpack.c.b16 %v1924, %v1918
        %v2513 = vpack.c.b16 %v1931, %v1925
        %v2514 = vpack.c.b16 %v1932, %v1926
        %v2515 = vpack.c.b16 %v1933, %v1927
        %v2516 = vpack.c.b16 %v1934, %v1928
        %v2517 = vpack.c.b16 %v1935, %v1929
        %v2518 = vpack.c.b16 %v1936, %v1930
        %v2519 = vpack.c.b16 %v1943, %v1937
        %v2520 = vpack.c.b16 %v1944, %v1938
        %v2521 = vpack.c.b16 %v1945, %v1939
        %v2522 = vpack.c.b16 %v1946, %v1940
        %v2523 = vpack.c.b16 %v1947, %v1941
        %v2524 = vpack.c.b16 %v1948, %v1942
        %v2525 = vpack.c.b16 %v1955, %v1949
        %v2526 = vpack.c.b16 %v1956, %v1950
        %v2527 = vpack.c.b16 %v1957, %v1951
        %v2528 = vpack.c.b16 %v1958, %v1952
        %v2529 = vpack.c.b16 %v1959, %v1953
        %v2530 = vpack.c.b16 %v1960, %v1954
        %v2531 = vpack.c.b16 %v1967, %v1961
        %v2532 = vpack.c.b16 %v1968, %v1962
        %v2533 = vpack.c.b16 %v1969, %v1963
        %v2534 = vpack.c.b16 %v1970, %v1964
        %v2535 = vpack.c.b16 %v1971, %v1965
        %v2536 = vpack.c.b16 %v1972, %v1966
        %v2537 = vpack.c.b16 %v1979, %v1973
        %v2538 = vpack.c.b16 %v1980, %v1974
        %v2539 = vpack.c.b16 %v1981, %v1975
        %v2540 = vpack.c.b16 %v1982, %v1976
        %v2541 = vpack.c.b16 %v1983, %v1977
        %v2542 = vpack.c.b16 %v1984, %v1978
        %v2543 = vpack.c.b16 %v1991, %v1985
        %v2544 = vpack.c.b16 %v1992, %v1986
        %v2545 = vpack.c.b16 %v1993, %v1987
        %v2546 = vpack.c.b16 %v1994, %v1988
        %v2547 = vpack.c.b16 %v1995, %v1989
        %v2548 = vpack.c.b16 %v1996, %v1990
        %v2549 = vpack.c.b16 %v2003, %v1997
        %v2550 = vpack.c.b16 %v2004, %v1998
        %v2551 = vpack.c.b16 %v2005, %v1999
        %v2552 = vpack.c.b16 %v2006, %v2000
        %v2553 = vpack.c.b16 %v2007, %v2001
        %v2554 = vpack.c.b16 %v2008, %v2002
        %v2555 = vpack.c.b16 %v2015, %v2009
        %v2556 = vpack.c.b16 %v2016, %v2010
        %v2557 = vpack.c.b16 %v2017, %v2011
        %v2558 = vpack.c.b16 %v2018, %v2012
        %v2559 = vpack.c.b16 %v2019, %v2013
        %v2560 = vpack.c.b16 %v2020, %v2014
        %v2561 = vpack.c.b16 %v2027, %v2021
        %v2562 = vpack.c.b16 %v2028, %v2022
        %v2563 = vpack.c.b16 %v2029, %v2023
        %v2564 = vpack.c.b16 %v2030, %v2024
        %v2565 = vpack.c.b16 %v2031, %v2025
        %v2566 = vpack.c.b16 %v2032, %v2026
        %v2567 = vpack.c.b16 %v2039, %v2033
        %v2568 = vpack.c.b16 %v2040, %v2034
        %v2569 = vpack.c.b16 %v2041, %v2035
        %v2570 = vpack.c.b16 %v2042, %v2036
        %v2571 = vpack.c.b16 %v2043, %v2037
        %v2572 = vpack.c.b16 %v2044, %v2038
        %v2573 = vpack.c.b16 %v2051, %v2045
        %v2574 = vpack.c.b16 %v2052, %v2046
        %v2575 = vpack.c.b16 %v2053, %v2047
        %v2576 = vpack.c.b16 %v2054, %v2048
        %v2577 = vpack.c.b16 %v2055, %v2049
        %v2578 = vpack.c.b16 %v2056, %v2050
        %v2579 = vpack.c.b16 %v2063, %v2057
        %v2580 = vpack.c.b16 %v2064, %v2058
        %v2581 = vpack.c.b16 %v2065, %v2059
        %v2582 = vpack.c.b16 %v2066, %v2060
        %v2583 = vpack.c.b16 %v2067, %v2061
        %v2584 = vpack.c.b16 %v2068, %v2062
        %v2585 = vpack.c.b16 %v2075, %v2069
        %v2586 = vpack.c.b16 %v2076, %v2070
        %v2587 = vpack.c.b16 %v2077, %v2071
        %v2588 = vpack.c.b16 %v2078, %v2072
        %v2589 = vpack.c.b16 %v2079, %v2073
        %v2590 = vpack.c.b16 %v2080, %v2074
        %v2591 = vpack.c.b16 %v2087, %v2081
        %v2592 = vpack.c.b16 %v2088, %v2082
        %v2593 = vpack.c.b16 %v2089, %v2083
        %v2594 = vpack.c.b16 %v2090, %v2084
        %v2595 = vpack.c.b16 %v2091, %v2085
        %v2596 = vpack.c.b16 %v2092, %v2086
        %v2597 = vpack.c.b16 %v2099, %v2093
        %v2598 = vpack.c.b16 %v2100, %v2094
        %v2599 = vpack.c.b16 %v2101, %v2095
        %v2600 = vpack.c.b16 %v2102, %v2096
        %v2601 = vpack.c.b16 %v2103, %v2097
        %v2602 = vpack.c.b16 %v2104, %v2098
        %v2603 = vpack.c.b16 %v2111, %v2105
        %v2604 = vpack.c.b16 %v2112, %v2106
        %v2605 = vpack.c.b16 %v2113, %v2107
        %v2606 = vpack.c.b16 %v2114, %v2108
        %v2607 = vpack.c.b16 %v2115, %v2109
        %v2608 = vpack.c.b16 %v2116, %v2110
        %v2609 = vpack.c.b16 %v2123, %v2117
        %v2610 = vpack.c.b16 %v2124, %v2118
        %v2611 = vpack.c.b16 %v2125, %v2119
        %v2612 = vpack.c.b16 %v2126, %v2120
        %v2613 = vpack.c.b16 %v2127, %v2121
        %v2614 = vpack.c.b16 %v2128, %v2122
        %v2615 = vpack.c.b16 %v2135, %v2129
        %v2616 = vpack.c.b16 %v2136, %v2130
        %v2617 = vpack.c.b16 %v2137, %v2131
        %v2618 = vpack.c.b16 %v2138, %v2132
        %v2619 = vpack.c.b16 %v2139, %v2133
        %v2620 = vpack.c.b16 %v2140, %v2134
        %v2621 = vpack.c.b16 %v2147, %v2141
        %v2622 = vpack.c.b16 %v2148, %v2142
        %v2623 = vpack.c.b16 %v2149, %v2143
        %v2624 = vpack.c.b16 %v2150, %v2144
        %v2625 = vpack.c.b16 %v2151, %v2145
        %v2626 = vpack.c.b16 %v2152, %v2146
        %v2627 = vpack.c.b16 %v2159, %v2153
        %v2628 = vpack.c.b16 %v2160, %v2154
        %v2629 = vpack.c.b16 %v2161, %v2155
        %v2630 = vpack.c.b16 %v2162, %v2156
        %v2631 = vpack.c.b16 %v2163, %v2157
        %v2632 = vpack.c.b16 %v2164, %v2158
        %v2633 = vpack.c.b16 %v2171, %v2165
        %v2634 = vpack.c.b16 %v2172, %v2166
        %v2635 = vpack.c.b16 %v2173, %v2167
        %v2636 = vpack.c.b16 %v2174, %v2168
        %v2637 = vpack.c.b16 %v2175, %v2169
        %v2638 = vpack.c.b16 %v2176, %v2170
        %v2639 = vpack.c.b16 %v2183, %v2177
        %v2640 = vpack.c.b16 %v2184, %v2178
        %v2641 = vpack.c.b16 %v2185, %v2179
        %v2642 = vpack.c.b16 %v2186, %v2180
        %v2643 = vpack.c.b16 %v2187, %v2181
        %v2644 = vpack.c.b16 %v2188, %v2182
        %v2645 = vpack.c.b16 %v2195, %v2189
        %v2646 = vpack.c.b16 %v2196, %v2190
        %v2647 = vpack.c.b16 %v2197, %v2191
        %v2648 = vpack.c.b16 %v2198, %v2192
        %v2649 = vpack.c.b16 %v2199, %v2193
        %v2650 = vpack.c.b16 %v2200, %v2194
        %v2651 = vpack.c.b16 %v2207, %v2201
        %v2652 = vpack.c.b16 %v2208, %v2202
        %v2653 = vpack.c.b16 %v2209, %v2203
        %v2654 = vpack.c.b16 %v2210, %v2204
        %v2655 = vpack.c.b16 %v2211, %v2205
        %v2656 = vpack.c.b16 %v2212, %v2206
        %v2657 = vpack.c.b16 %v2219, %v2213
        %v2658 = vpack.c.b16 %v2220, %v2214
        %v2659 = vpack.c.b16 %v2221, %v2215
        %v2660 = vpack.c.b16 %v2222, %v2216
        %v2661 = vpack.c.b16 %v2223, %v2217
        %v2662 = vpack.c.b16 %v2224, %v2218
        %v2663 = vpack.c.b16 %v2231, %v2225
        %v2664 = vpack.c.b16 %v2232, %v2226
        %v2665 = vpack.c.b16 %v2233, %v2227
        %v2666 = vpack.c.b16 %v2234, %v2228
        %v2667 = vpack.c.b16 %v2235, %v2229
        %v2668 = vpack.c.b16 %v2236, %v2230
        %v2669 = vpack.c.b16 %v2243, %v2237
        %v2670 = vpack.c.b16 %v2244, %v2238
        %v2671 = vpack.c.b16 %v2245, %v2239
        %v2672 = vpack.c.b16 %v2246, %v2240
        %v2673 = vpack.c.b16 %v2247, %v2241
        %v2674 = vpack.c.b16 %v2248, %v2242
        %v2675 = vpack.c.b16 %v2255, %v2249
        %v2676 = vpack.c.b16 %v2256, %v2250
        %v2677 = vpack.c.b16 %v2257, %v2251
        %v2678 = vpack.c.b16 %v2258, %v2252
        %v2679 = vpack.c.b16 %v2259, %v2253
        %v2680 = vpack.c.b16 %v2260, %v2254
        %v2681 = vpack.c.b16 %v2267, %v2261
        %v2682 = vpack.c.b16 %v2268, %v2262
        %v2683 = vpack.c.b16 %v2269, %v2263
        %v2684 = vpack.c.b16 %v2270, %v2264
        %v2685 = vpack.c.b16 %v2271, %v2265
        %v2686 = vpack.c.b16 %v2272, %v2266
        %v2687 = vpack.c.b16 %v2279, %v2273
        %v2688 = vpack.c.b16 %v2280, %v2274
        %v2689 = vpack.c.b16 %v2281, %v2275
        %v2690 = vpack.c.b16 %v2282, %v2276
        %v2691 = vpack.c.b16 %v2283, %v2277
        %v2692 = vpack.c.b16 %v2284, %v2278
        %v2693 = vpack.c.b16 %v2291, %v2285
        %v2694 = vpack.c.b16 %v2292, %v2286
        %v2695 = vpack.c.b16 %v2293, %v2287
        %v2696 = vpack.c.b16 %v2294, %v2288
        %v2697 = vpack.c.b16 %v2295, %v2289
        %v2698 = vpack.c.b16 %v2296, %v2290
        %v2699 = vpack.c.b16 %v2303, %v2297
        %v2700 = vpack.c.b16 %v2304, %v2298
        %v2701 = vpack.c.b16 %v2305, %v2299
        %v2702 = vpack.c.b16 %v2306, %v2300
        %v2703 = vpack.c.b16 %v2307, %v2301
        %v2704 = vpack.c.b16 %v2308, %v2302
        %v2705 = vpack.c.b16 %v2315, %v2309
        %v2706 = vpack.c.b16 %v2316, %v2310
        %v2707 = vpack.c.b16 %v2317, %v2311
        %v2708 = vpack.c.b16 %v2318, %v2312
        %v2709 = vpack.c.b16 %v2319, %v2313
        %v2710 = vpack.c.b16 %v2320, %v2314
        %v2711 = vpack.c.b16 %v2327, %v2321
        %v2712 = vpack.c.b16 %v2328, %v2322
        %v2713 = vpack.c.b16 %v2329, %v2323
        %v2714 = vpack.c.b16 %v2330, %v2324
        %v2715 = vpack.c.b16 %v2331, %v2325
        %v2716 = vpack.c.b16 %v2332, %v2326
        %3101 = vmatprep.subr.bf16.mxu0 %v2334
        %3102 = vmatpush1.bf16.msra.mxu0 %v2333
        %3103 = vmatprep.subr.bf16.mxu0 %v2340
        %3104 = vmatpush1.bf16.msra.mxu0 %v2339
        %3105 = vmatprep.subr.bf16.mxu0 %v2346
        %3106 = vmatpush1.bf16.msra.mxu0 %v2345
        %3107 = vmatprep.subr.bf16.mxu0 %v2352
        %3108 = vmatpush1.bf16.msra.mxu0 %v2351
        %3109 = vmatprep.subr.bf16.mxu0 %v2358
        %3110 = vmatpush1.bf16.msra.mxu0 %v2357
        %3111 = vmatprep.subr.bf16.mxu0 %v2364
        %3112 = vmatpush1.bf16.msra.mxu0 %v2363
        %3113 = vmatprep.subr.bf16.mxu0 %v2370
        %3114 = vmatpush1.bf16.msra.mxu0 %v2369
        %3115 = vmatprep.subr.bf16.mxu0 %v2376
        %3116 = vmatpush1.bf16.msra.mxu0 %v2375
        %3117 = vmatprep.subr.bf16.mxu0 %v2382
        %3118 = vmatpush1.bf16.msra.mxu0 %v2381
        %3119 = vmatprep.subr.bf16.mxu0 %v2388
        %3120 = vmatpush1.bf16.msra.mxu0 %v2387
        %3121 = vmatprep.subr.bf16.mxu0 %v2394
        %3122 = vmatpush1.bf16.msra.mxu0 %v2393
        %3123 = vmatprep.subr.bf16.mxu0 %v2400
        %3124 = vmatpush1.bf16.msra.mxu0 %v2399
        %3125 = vmatprep.subr.bf16.mxu0 %v2406
        %3126 = vmatpush1.bf16.msra.mxu0 %v2405
        %3127 = vmatprep.subr.bf16.mxu0 %v2412
        %3128 = vmatpush1.bf16.msra.mxu0 %v2411
        %3129 = vmatprep.subr.bf16.mxu0 %v2418
        %3130 = vmatpush1.bf16.msra.mxu0 %v2417
        %3131 = vmatprep.subr.bf16.mxu0 %v2424
        %3132 = vmatpush1.bf16.msra.mxu0 %v2423
        %3133 = vmatprep.mubr.bf16.mxu0 %v734
        %3134 = vmatmul.mubr.bf16.gmra.mrb[0].mxu0 %v733
        %v3135 = vpop.f32.mrb[0].mxu0
        %v3136 = vadd.f32 0.0, %v3135
        %v3137 = vpop.f32.mrb[0].mxu0
        %v3138 = vadd.f32 0.0, %v3137
        %v3139 = vpop.f32.mrb[0].mxu0
        %v3140 = vadd.f32 0.0, %v3139
        %v3141 = vpop.f32.mrb[0].mxu0
        %v3142 = vadd.f32 0.0, %v3141
        %3143 = vmatprep.mubr.bf16.mxu0 %v742
        %3144 = vmatmul.mubr.bf16.gmra.mrb[0].mxu0 %v741
        %v3145 = vpop.f32.mrb[0].mxu0
        %v3146 = vadd.f32 0.0, %v3145
        %v3147 = vpop.f32.mrb[0].mxu0
        %v3148 = vadd.f32 0.0, %v3147
        %v3149 = vpop.f32.mrb[0].mxu0
        %v3150 = vadd.f32 0.0, %v3149
        %v3151 = vpop.f32.mrb[0].mxu0
        %v3152 = vadd.f32 0.0, %v3151
        %3153 = vmatprep.mubr.bf16.mxu0 %v750
        %3154 = vmatmul.mubr.bf16.gmra.mrb[0].mxu0 %v749
        %v3155 = vpop.f32.mrb[0].mxu0
        %v3156 = vadd.f32 0.0, %v3155
        %v3157 = vpop.f32.mrb[0].mxu0
        %v3158 = vadd.f32 0.0, %v3157
        %v3159 = vpop.f32.mrb[0].mxu0
        %v3160 = vadd.f32 0.0, %v3159
        %v3161 = vpop.f32.mrb[0].mxu0
        %v3162 = vadd.f32 0.0, %v3161
        %3163 = vmatprep.mubr.bf16.mxu0 %v758
        %3164 = vmatmul.mubr.bf16.gmra.mrb[0].mxu0 %v757
        %v3165 = vpop.f32.mrb[0].mxu0
        %v3166 = vadd.f32 0.0, %v3165
        %v3167 = vpop.f32.mrb[0].mxu0
        %v3168 = vadd.f32 0.0, %v3167
        %v3169 = vpop.f32.mrb[0].mxu0
        %v3170 = vadd.f32 0.0, %v3169
        %v3171 = vpop.f32.mrb[0].mxu0
        %v3172 = vadd.f32 0.0, %v3171
        %3173 = vmatprep.mubr.bf16.mxu0 %v766
        %3174 = vmatmul.mubr.bf16.gmra.mrb[0].mxu0 %v765
        %v3175 = vpop.f32.mrb[0].mxu0
        %v3176 = vadd.f32 0.0, %v3175
        %v3177 = vpop.f32.mrb[0].mxu0
        %v3178 = vadd.f32 0.0, %v3177
        %v3179 = vpop.f32.mrb[0].mxu0
        %v3180 = vadd.f32 0.0, %v3179
        %v3181 = vpop.f32.mrb[0].mxu0
        %v3182 = vadd.f32 0.0, %v3181
        %3183 = vmatprep.mubr.bf16.mxu0 %v774
        %3184 = vmatmul.mubr.bf16.gmra.mrb[0].mxu0 %v773
        %v3185 = vpop.f32.mrb[0].mxu0
        %v3186 = vadd.f32 0.0, %v3185
        %v3187 = vpop.f32.mrb[0].mxu0
        %v3188 = vadd.f32 0.0, %v3187
        %v3189 = vpop.f32.mrb[0].mxu0
        %v3190 = vadd.f32 0.0, %v3189
        %v3191 = vpop.f32.mrb[0].mxu0
        %v3192 = vadd.f32 0.0, %v3191
        %3193 = vmatprep.mubr.bf16.mxu0 %v782
        %3194 = vmatmul.mubr.bf16.gmra.mrb[0].mxu0 %v781
        %v3195 = vpop.f32.mrb[0].mxu0
        %v3196 = vadd.f32 0.0, %v3195
        %v3197 = vpop.f32.mrb[0].mxu0
        %v3198 = vadd.f32 0.0, %v3197
        %v3199 = vpop.f32.mrb[0].mxu0
        %v3200 = vadd.f32 0.0, %v3199
        %v3201 = vpop.f32.mrb[0].mxu0
        %v3202 = vadd.f32 0.0, %v3201
        %3203 = vmatprep.mubr.bf16.mxu0 %v790
        %3204 = vmatmul.mubr.bf16.gmra.mrb[0].mxu0 %v789
        %v3205 = vpop.f32.mrb[0].mxu0
        %v3206 = vadd.f32 0.0, %v3205
        %v3207 = vpop.f32.mrb[0].mxu0
        %v3208 = vadd.f32 0.0, %v3207
        %v3209 = vpop.f32.mrb[0].mxu0
        %v3210 = vadd.f32 0.0, %v3209
        %v3211 = vpop.f32.mrb[0].mxu0
        %v3212 = vadd.f32 0.0, %v3211
        %3213 = vdwg.mxu0
        %3214 = vmatprep.subr.bf16.mxu0 %v2430
        %3215 = vmatpush1.bf16.msra.mxu0 %v2429
        %3216 = vmatprep.subr.bf16.mxu0 %v2436
        %3217 = vmatpush1.bf16.msra.mxu0 %v2435
        %3218 = vmatprep.subr.bf16.mxu0 %v2442
        %3219 = vmatpush1.bf16.msra.mxu0 %v2441
        %3220 = vmatprep.subr.bf16.mxu0 %v2448
        %3221 = vmatpush1.bf16.msra.mxu0 %v2447
        %3222 = vmatprep.subr.bf16.mxu0 %v2454
        %3223 = vmatpush1.bf16.msra.mxu0 %v2453
        %3224 = vmatprep.subr.bf16.mxu0 %v2460
        %3225 = vmatpush1.bf16.msra.mxu0 %v2459
        %3226 = vmatprep.subr.bf16.mxu0 %v2466
        %3227 = vmatpush1.bf16.msra.mxu0 %v2465
        %3228 = vmatprep.subr.bf16.mxu0 %v2472
        %3229 = vmatpush1.bf16.msra.mxu0 %v2471
        %3230 = vmatprep.subr.bf16.mxu0 %v2478
        %3231 = vmatpush1.bf16.msra.mxu0 %v2477
        %3232 = vmatprep.subr.bf16.mxu0 %v2484
        %3233 = vmatpush1.bf16.msra.mxu0 %v2483
        %3234 = vmatprep.subr.bf16.mxu0 %v2490
        %3235 = vmatpush1.bf16.msra.mxu0 %v2489
        %3236 = vmatprep.subr.bf16.mxu0 %v2496
        %3237 = vmatpush1.bf16.msra.mxu0 %v2495
        %3238 = vmatprep.subr.bf16.mxu0 %v2502
        %3239 = vmatpush1.bf16.msra.mxu0 %v2501
        %3240 = vmatprep.subr.bf16.mxu0 %v2508
        %3241 = vmatpush1.bf16.msra.mxu0 %v2507
        %3242 = vmatprep.subr.bf16.mxu0 %v2514
        %3243 = vmatpush1.bf16.msra.mxu0 %v2513
        %3244 = vmatprep.subr.bf16.mxu0 %v2520
        %3245 = vmatpush1.bf16.msra.mxu0 %v2519
        %3246 = vmatprep.mubr.bf16.mxu0 %v736
        %3247 = vmatmul.mubr.bf16.gmra.mrb[0].mxu0 %v735
        %v3248 = vpop.f32.mrb[0].mxu0
        %v3249 = vadd.f32 %v3136, %v3248
        %v3250 = vpop.f32.mrb[0].mxu0
        %v3251 = vadd.f32 %v3138, %v3250
        %v3252 = vpop.f32.mrb[0].mxu0
        %v3253 = vadd.f32 %v3140, %v3252
        %v3254 = vpop.f32.mrb[0].mxu0
        %v3255 = vadd.f32 %v3142, %v3254
        %3256 = vmatprep.mubr.bf16.mxu0 %v744
        %3257 = vmatmul.mubr.bf16.gmra.mrb[0].mxu0 %v743
        %v3258 = vpop.f32.mrb[0].mxu0
        %v3259 = vadd.f32 %v3146, %v3258
        %v3260 = vpop.f32.mrb[0].mxu0
        %v3261 = vadd.f32 %v3148, %v3260
        %v3262 = vpop.f32.mrb[0].mxu0
        %v3263 = vadd.f32 %v3150, %v3262
        %v3264 = vpop.f32.mrb[0].mxu0
        %v3265 = vadd.f32 %v3152, %v3264
        %3266 = vmatprep.mubr.bf16.mxu0 %v752
        %3267 = vmatmul.mubr.bf16.gmra.mrb[0].mxu0 %v751
        %v3268 = vpop.f32.mrb[0].mxu0
        %v3269 = vadd.f32 %v3156, %v3268
        %v3270 = vpop.f32.mrb[0].mxu0
        %v3271 = vadd.f32 %v3158, %v3270
        %v3272 = vpop.f32.mrb[0].mxu0
        %v3273 = vadd.f32 %v3160, %v3272
        %v3274 = vpop.f32.mrb[0].mxu0
        %v3275 = vadd.f32 %v3162, %v3274
        %3276 = vmatprep.mubr.bf16.mxu0 %v760
        %3277 = vmatmul.mubr.bf16.gmra.mrb[0].mxu0 %v759
        %v3278 = vpop.f32.mrb[0].mxu0
        %v3279 = vadd.f32 %v3166, %v3278
        %v3280 = vpop.f32.mrb[0].mxu0
        %v3281 = vadd.f32 %v3168, %v3280
        %v3282 = vpop.f32.mrb[0].mxu0
        %v3283 = vadd.f32 %v3170, %v3282
        %v3284 = vpop.f32.mrb[0].mxu0
        %v3285 = vadd.f32 %v3172, %v3284
        %3286 = vmatprep.mubr.bf16.mxu0 %v768
        %3287 = vmatmul.mubr.bf16.gmra.mrb[0].mxu0 %v767
        %v3288 = vpop.f32.mrb[0].mxu0
        %v3289 = vadd.f32 %v3176, %v3288
        %v3290 = vpop.f32.mrb[0].mxu0
        %v3291 = vadd.f32 %v3178, %v3290
        %v3292 = vpop.f32.mrb[0].mxu0
        %v3293 = vadd.f32 %v3180, %v3292
        %v3294 = vpop.f32.mrb[0].mxu0
        %v3295 = vadd.f32 %v3182, %v3294
        %3296 = vmatprep.mubr.bf16.mxu0 %v776
        %3297 = vmatmul.mubr.bf16.gmra.mrb[0].mxu0 %v775
        %v3298 = vpop.f32.mrb[0].mxu0
        %v3299 = vadd.f32 %v3186, %v3298
        %v3300 = vpop.f32.mrb[0].mxu0
        %v3301 = vadd.f32 %v3188, %v3300
        %v3302 = vpop.f32.mrb[0].mxu0
        %v3303 = vadd.f32 %v3190, %v3302
        %v3304 = vpop.f32.mrb[0].mxu0
        %v3305 = vadd.f32 %v3192, %v3304
        %3306 = vmatprep.mubr.bf16.mxu0 %v784
        %3307 = vmatmul.mubr.bf16.gmra.mrb[0].mxu0 %v783
        %v3308 = vpop.f32.mrb[0].mxu0
        %v3309 = vadd.f32 %v3196, %v3308
        %v3310 = vpop.f32.mrb[0].mxu0
        %v3311 = vadd.f32 %v3198, %v3310
        %v3312 = vpop.f32.mrb[0].mxu0
        %v3313 = vadd.f32 %v3200, %v3312
        %v3314 = vpop.f32.mrb[0].mxu0
        %v3315 = vadd.f32 %v3202, %v3314
        %3316 = vmatprep.mubr.bf16.mxu0 %v792
        %3317 = vmatmul.mubr.bf16.gmra.mrb[0].mxu0 %v791
        %v3318 = vpop.f32.mrb[0].mxu0
        %v3319 = vadd.f32 %v3206, %v3318
        %v3320 = vpop.f32.mrb[0].mxu0
        %v3321 = vadd.f32 %v3208, %v3320
        %v3322 = vpop.f32.mrb[0].mxu0
        %v3323 = vadd.f32 %v3210, %v3322
        %v3324 = vpop.f32.mrb[0].mxu0
        %v3325 = vadd.f32 %v3212, %v3324
        %3326 = vdwg.mxu0
        %3327 = vmatprep.subr.bf16.mxu0 %v2526
        %3328 = vmatpush1.bf16.msra.mxu0 %v2525
        %3329 = vmatprep.subr.bf16.mxu0 %v2532
        %3330 = vmatpush1.bf16.msra.mxu0 %v2531
        %3331 = vmatprep.subr.bf16.mxu0 %v2538
        %3332 = vmatpush1.bf16.msra.mxu0 %v2537
        %3333 = vmatprep.subr.bf16.mxu0 %v2544
        %3334 = vmatpush1.bf16.msra.mxu0 %v2543
        %3335 = vmatprep.subr.bf16.mxu0 %v2550
        %3336 = vmatpush1.bf16.msra.mxu0 %v2549
        %3337 = vmatprep.subr.bf16.mxu0 %v2556
        %3338 = vmatpush1.bf16.msra.mxu0 %v2555
        %3339 = vmatprep.subr.bf16.mxu0 %v2562
        %3340 = vmatpush1.bf16.msra.mxu0 %v2561
        %3341 = vmatprep.subr.bf16.mxu0 %v2568
        %3342 = vmatpush1.bf16.msra.mxu0 %v2567
        %3343 = vmatprep.subr.bf16.mxu0 %v2574
        %3344 = vmatpush1.bf16.msra.mxu0 %v2573
        %3345 = vmatprep.subr.bf16.mxu0 %v2580
        %3346 = vmatpush1.bf16.msra.mxu0 %v2579
        %3347 = vmatprep.subr.bf16.mxu0 %v2586
        %3348 = vmatpush1.bf16.msra.mxu0 %v2585
        %3349 = vmatprep.subr.bf16.mxu0 %v2592
        %3350 = vmatpush1.bf16.msra.mxu0 %v2591
        %3351 = vmatprep.subr.bf16.mxu0 %v2598
        %3352 = vmatpush1.bf16.msra.mxu0 %v2597
        %3353 = vmatprep.subr.bf16.mxu0 %v2604
        %3354 = vmatpush1.bf16.msra.mxu0 %v2603
        %3355 = vmatprep.subr.bf16.mxu0 %v2610
        %3356 = vmatpush1.bf16.msra.mxu0 %v2609
        %3357 = vmatprep.subr.bf16.mxu0 %v2616
        %3358 = vmatpush1.bf16.msra.mxu0 %v2615
        %3359 = vmatprep.mubr.bf16.mxu0 %v738
        %3360 = vmatmul.mubr.bf16.gmra.mrb[0].mxu0 %v737
        %v3361 = vpop.f32.mrb[0].mxu0
        %v3362 = vadd.f32 %v3249, %v3361
        %v3363 = vpop.f32.mrb[0].mxu0
        %v3364 = vadd.f32 %v3251, %v3363
        %v3365 = vpop.f32.mrb[0].mxu0
        %v3366 = vadd.f32 %v3253, %v3365
        %v3367 = vpop.f32.mrb[0].mxu0
        %v3368 = vadd.f32 %v3255, %v3367
        %3369 = vmatprep.mubr.bf16.mxu0 %v746
        %3370 = vmatmul.mubr.bf16.gmra.mrb[0].mxu0 %v745
        %v3371 = vpop.f32.mrb[0].mxu0
        %v3372 = vadd.f32 %v3259, %v3371
        %v3373 = vpop.f32.mrb[0].mxu0
        %v3374 = vadd.f32 %v3261, %v3373
        %v3375 = vpop.f32.mrb[0].mxu0
        %v3376 = vadd.f32 %v3263, %v3375
        %v3377 = vpop.f32.mrb[0].mxu0
        %v3378 = vadd.f32 %v3265, %v3377
        %3379 = vmatprep.mubr.bf16.mxu0 %v754
        %3380 = vmatmul.mubr.bf16.gmra.mrb[0].mxu0 %v753
        %v3381 = vpop.f32.mrb[0].mxu0
        %v3382 = vadd.f32 %v3269, %v3381
        %v3383 = vpop.f32.mrb[0].mxu0
        %v3384 = vadd.f32 %v3271, %v3383
        %v3385 = vpop.f32.mrb[0].mxu0
        %v3386 = vadd.f32 %v3273, %v3385
        %v3387 = vpop.f32.mrb[0].mxu0
        %v3388 = vadd.f32 %v3275, %v3387
        %3389 = vmatprep.mubr.bf16.mxu0 %v762
        %3390 = vmatmul.mubr.bf16.gmra.mrb[0].mxu0 %v761
        %v3391 = vpop.f32.mrb[0].mxu0
        %v3392 = vadd.f32 %v3279, %v3391
        %v3393 = vpop.f32.mrb[0].mxu0
        %v3394 = vadd.f32 %v3281, %v3393
        %v3395 = vpop.f32.mrb[0].mxu0
        %v3396 = vadd.f32 %v3283, %v3395
        %v3397 = vpop.f32.mrb[0].mxu0
        %v3398 = vadd.f32 %v3285, %v3397
        %3399 = vmatprep.mubr.bf16.mxu0 %v770
        %3400 = vmatmul.mubr.bf16.gmra.mrb[0].mxu0 %v769
        %v3401 = vpop.f32.mrb[0].mxu0
        %v3402 = vadd.f32 %v3289, %v3401
        %v3403 = vpop.f32.mrb[0].mxu0
        %v3404 = vadd.f32 %v3291, %v3403
        %v3405 = vpop.f32.mrb[0].mxu0
        %v3406 = vadd.f32 %v3293, %v3405
        %v3407 = vpop.f32.mrb[0].mxu0
        %v3408 = vadd.f32 %v3295, %v3407
        %3409 = vmatprep.mubr.bf16.mxu0 %v778
        %3410 = vmatmul.mubr.bf16.gmra.mrb[0].mxu0 %v777
        %v3411 = vpop.f32.mrb[0].mxu0
        %v3412 = vadd.f32 %v3299, %v3411
        %v3413 = vpop.f32.mrb[0].mxu0
        %v3414 = vadd.f32 %v3301, %v3413
        %v3415 = vpop.f32.mrb[0].mxu0
        %v3416 = vadd.f32 %v3303, %v3415
        %v3417 = vpop.f32.mrb[0].mxu0
        %v3418 = vadd.f32 %v3305, %v3417
        %3419 = vmatprep.mubr.bf16.mxu0 %v786
        %3420 = vmatmul.mubr.bf16.gmra.mrb[0].mxu0 %v785
        %v3421 = vpop.f32.mrb[0].mxu0
        %v3422 = vadd.f32 %v3309, %v3421
        %v3423 = vpop.f32.mrb[0].mxu0
        %v3424 = vadd.f32 %v3311, %v3423
        %v3425 = vpop.f32.mrb[0].mxu0
        %v3426 = vadd.f32 %v3313, %v3425
        %v3427 = vpop.f32.mrb[0].mxu0
        %v3428 = vadd.f32 %v3315, %v3427
        %3429 = vmatprep.mubr.bf16.mxu0 %v794
        %3430 = vmatmul.mubr.bf16.gmra.mrb[0].mxu0 %v793
        %v3431 = vpop.f32.mrb[0].mxu0
        %v3432 = vadd.f32 %v3319, %v3431
        %v3433 = vpop.f32.mrb[0].mxu0
        %v3434 = vadd.f32 %v3321, %v3433
        %v3435 = vpop.f32.mrb[0].mxu0
        %v3436 = vadd.f32 %v3323, %v3435
        %v3437 = vpop.f32.mrb[0].mxu0
        %v3438 = vadd.f32 %v3325, %v3437
        %3439 = vdwg.mxu0
        %3440 = vmatprep.subr.bf16.mxu0 %v2622
        %3441 = vmatpush1.bf16.msra.mxu0 %v2621
        %3442 = vmatprep.subr.bf16.mxu0 %v2628
        %3443 = vmatpush1.bf16.msra.mxu0 %v2627
        %3444 = vmatprep.subr.bf16.mxu0 %v2634
        %3445 = vmatpush1.bf16.msra.mxu0 %v2633
        %3446 = vmatprep.subr.bf16.mxu0 %v2640
        %3447 = vmatpush1.bf16.msra.mxu0 %v2639
        %3448 = vmatprep.subr.bf16.mxu0 %v2646
        %3449 = vmatpush1.bf16.msra.mxu0 %v2645
        %3450 = vmatprep.subr.bf16.mxu0 %v2652
        %3451 = vmatpush1.bf16.msra.mxu0 %v2651
        %3452 = vmatprep.subr.bf16.mxu0 %v2658
        %3453 = vmatpush1.bf16.msra.mxu0 %v2657
        %3454 = vmatprep.subr.bf16.mxu0 %v2664
        %3455 = vmatpush1.bf16.msra.mxu0 %v2663
        %3456 = vmatprep.subr.bf16.mxu0 %v2670
        %3457 = vmatpush1.bf16.msra.mxu0 %v2669
        %3458 = vmatprep.subr.bf16.mxu0 %v2676
        %3459 = vmatpush1.bf16.msra.mxu0 %v2675
        %3460 = vmatprep.subr.bf16.mxu0 %v2682
        %3461 = vmatpush1.bf16.msra.mxu0 %v2681
        %3462 = vmatprep.subr.bf16.mxu0 %v2688
        %3463 = vmatpush1.bf16.msra.mxu0 %v2687
        %3464 = vmatprep.subr.bf16.mxu0 %v2694
        %3465 = vmatpush1.bf16.msra.mxu0 %v2693
        %3466 = vmatprep.subr.bf16.mxu0 %v2700
        %3467 = vmatpush1.bf16.msra.mxu0 %v2699
        %3468 = vmatprep.subr.bf16.mxu0 %v2706
        %3469 = vmatpush1.bf16.msra.mxu0 %v2705
        %3470 = vmatprep.subr.bf16.mxu0 %v2712
        %3471 = vmatpush1.bf16.msra.mxu0 %v2711
        %3472 = vmatprep.mubr.bf16.mxu0 %v740
        %3473 = vmatmul.mubr.bf16.gmra.mrb[0].mxu0 %v739
        %v3474 = vpop.f32.mrb[0].mxu0
        %v3475 = vadd.f32 %v3362, %v3474
        %v3476 = vpop.f32.mrb[0].mxu0
        %v3477 = vadd.f32 %v3364, %v3476
        %v3478 = vpop.f32.mrb[0].mxu0
        %v3479 = vadd.f32 %v3366, %v3478
        %v3480 = vpop.f32.mrb[0].mxu0
        %v3481 = vadd.f32 %v3368, %v3480
        %3482 = vmatprep.mubr.bf16.mxu0 %v748
        %3483 = vmatmul.mubr.bf16.gmra.mrb[0].mxu0 %v747
        %v3484 = vpop.f32.mrb[0].mxu0
        %v3485 = vadd.f32 %v3372, %v3484
        %v3486 = vpop.f32.mrb[0].mxu0
        %v3487 = vadd.f32 %v3374, %v3486
        %v3488 = vpop.f32.mrb[0].mxu0
        %v3489 = vadd.f32 %v3376, %v3488
        %v3490 = vpop.f32.mrb[0].mxu0
        %v3491 = vadd.f32 %v3378, %v3490
        %3492 = vmatprep.mubr.bf16.mxu0 %v756
        %3493 = vmatmul.mubr.bf16.gmra.mrb[0].mxu0 %v755
        %v3494 = vpop.f32.mrb[0].mxu0
        %v3495 = vadd.f32 %v3382, %v3494
        %v3496 = vpop.f32.mrb[0].mxu0
        %v3497 = vadd.f32 %v3384, %v3496
        %v3498 = vpop.f32.mrb[0].mxu0
        %v3499 = vadd.f32 %v3386, %v3498
        %v3500 = vpop.f32.mrb[0].mxu0
        %v3501 = vadd.f32 %v3388, %v3500
        %3502 = vmatprep.mubr.bf16.mxu0 %v764
        %3503 = vmatmul.mubr.bf16.gmra.mrb[0].mxu0 %v763
        %v3504 = vpop.f32.mrb[0].mxu0
        %v3505 = vadd.f32 %v3392, %v3504
        %v3506 = vpop.f32.mrb[0].mxu0
        %v3507 = vadd.f32 %v3394, %v3506
        %v3508 = vpop.f32.mrb[0].mxu0
        %v3509 = vadd.f32 %v3396, %v3508
        %v3510 = vpop.f32.mrb[0].mxu0
        %v3511 = vadd.f32 %v3398, %v3510
        %3512 = vmatprep.mubr.bf16.mxu0 %v772
        %3513 = vmatmul.mubr.bf16.gmra.mrb[0].mxu0 %v771
        %v3514 = vpop.f32.mrb[0].mxu0
        %v3515 = vadd.f32 %v3402, %v3514
        %v3516 = vpop.f32.mrb[0].mxu0
        %v3517 = vadd.f32 %v3404, %v3516
        %v3518 = vpop.f32.mrb[0].mxu0
        %v3519 = vadd.f32 %v3406, %v3518
        %v3520 = vpop.f32.mrb[0].mxu0
        %v3521 = vadd.f32 %v3408, %v3520
        %3522 = vmatprep.mubr.bf16.mxu0 %v780
        %3523 = vmatmul.mubr.bf16.gmra.mrb[0].mxu0 %v779
        %v3524 = vpop.f32.mrb[0].mxu0
        %v3525 = vadd.f32 %v3412, %v3524
        %v3526 = vpop.f32.mrb[0].mxu0
        %v3527 = vadd.f32 %v3414, %v3526
        %v3528 = vpop.f32.mrb[0].mxu0
        %v3529 = vadd.f32 %v3416, %v3528
        %v3530 = vpop.f32.mrb[0].mxu0
        %v3531 = vadd.f32 %v3418, %v3530
        %3532 = vmatprep.mubr.bf16.mxu0 %v788
        %3533 = vmatmul.mubr.bf16.gmra.mrb[0].mxu0 %v787
        %v3534 = vpop.f32.mrb[0].mxu0
        %v3535 = vadd.f32 %v3422, %v3534
        %v3536 = vpop.f32.mrb[0].mxu0
        %v3537 = vadd.f32 %v3424, %v3536
        %v3538 = vpop.f32.mrb[0].mxu0
        %v3539 = vadd.f32 %v3426, %v3538
        %v3540 = vpop.f32.mrb[0].mxu0
        %v3541 = vadd.f32 %v3428, %v3540
        %3542 = vmatprep.mubr.bf16.mxu0 %v796
        %3543 = vmatmul.mubr.bf16.gmra.mrb[0].mxu0 %v795
        %v3544 = vpop.f32.mrb[0].mxu0
        %v3545 = vadd.f32 %v3432, %v3544
        %v3546 = vpop.f32.mrb[0].mxu0
        %v3547 = vadd.f32 %v3434, %v3546
        %v3548 = vpop.f32.mrb[0].mxu0
        %v3549 = vadd.f32 %v3436, %v3548
        %v3550 = vpop.f32.mrb[0].mxu0
        %v3551 = vadd.f32 %v3438, %v3550
        %3552 = vdwg.mxu0
        %3553 = vmatprep.subr.bf16.mxu0 %v2336
        %3554 = vmatpush1.bf16.msra.mxu0 %v2335
        %3555 = vmatprep.subr.bf16.mxu0 %v2342
        %3556 = vmatpush1.bf16.msra.mxu0 %v2341
        %3557 = vmatprep.subr.bf16.mxu0 %v2348
        %3558 = vmatpush1.bf16.msra.mxu0 %v2347
        %3559 = vmatprep.subr.bf16.mxu0 %v2354
        %3560 = vmatpush1.bf16.msra.mxu0 %v2353
        %3561 = vmatprep.subr.bf16.mxu0 %v2360
        %3562 = vmatpush1.bf16.msra.mxu0 %v2359
        %3563 = vmatprep.subr.bf16.mxu0 %v2366
        %3564 = vmatpush1.bf16.msra.mxu0 %v2365
        %3565 = vmatprep.subr.bf16.mxu0 %v2372
        %3566 = vmatpush1.bf16.msra.mxu0 %v2371
        %3567 = vmatprep.subr.bf16.mxu0 %v2378
        %3568 = vmatpush1.bf16.msra.mxu0 %v2377
        %3569 = vmatprep.subr.bf16.mxu0 %v2384
        %3570 = vmatpush1.bf16.msra.mxu0 %v2383
        %3571 = vmatprep.subr.bf16.mxu0 %v2390
        %3572 = vmatpush1.bf16.msra.mxu0 %v2389
        %3573 = vmatprep.subr.bf16.mxu0 %v2396
        %3574 = vmatpush1.bf16.msra.mxu0 %v2395
        %3575 = vmatprep.subr.bf16.mxu0 %v2402
        %3576 = vmatpush1.bf16.msra.mxu0 %v2401
        %3577 = vmatprep.subr.bf16.mxu0 %v2408
        %3578 = vmatpush1.bf16.msra.mxu0 %v2407
        %3579 = vmatprep.subr.bf16.mxu0 %v2414
        %3580 = vmatpush1.bf16.msra.mxu0 %v2413
        %3581 = vmatprep.subr.bf16.mxu0 %v2420
        %3582 = vmatpush1.bf16.msra.mxu0 %v2419
        %3583 = vmatprep.subr.bf16.mxu0 %v2426
        %3584 = vmatpush1.bf16.msra.mxu0 %v2425
        %3585 = vmatprep.mubr.bf16.mxu0 %v734
        %3586 = vmatmul.mubr.bf16.gmra.mrb[0].mxu0 %v733
        %v3587 = vpop.f32.mrb[0].mxu0
        %v3588 = vadd.f32 0.0, %v3587
        %v3589 = vpop.f32.mrb[0].mxu0
        %v3590 = vadd.f32 0.0, %v3589
        %v3591 = vpop.f32.mrb[0].mxu0
        %v3592 = vadd.f32 0.0, %v3591
        %v3593 = vpop.f32.mrb[0].mxu0
        %v3594 = vadd.f32 0.0, %v3593
        %3595 = vmatprep.mubr.bf16.mxu0 %v742
        %3596 = vmatmul.mubr.bf16.gmra.mrb[0].mxu0 %v741
        %v3597 = vpop.f32.mrb[0].mxu0
        %v3598 = vadd.f32 0.0, %v3597
        %v3599 = vpop.f32.mrb[0].mxu0
        %v3600 = vadd.f32 0.0, %v3599
        %v3601 = vpop.f32.mrb[0].mxu0
        %v3602 = vadd.f32 0.0, %v3601
        %v3603 = vpop.f32.mrb[0].mxu0
        %v3604 = vadd.f32 0.0, %v3603
        %3605 = vmatprep.mubr.bf16.mxu0 %v750
        %3606 = vmatmul.mubr.bf16.gmra.mrb[0].mxu0 %v749
        %v3607 = vpop.f32.mrb[0].mxu0
        %v3608 = vadd.f32 0.0, %v3607
        %v3609 = vpop.f32.mrb[0].mxu0
        %v3610 = vadd.f32 0.0, %v3609
        %v3611 = vpop.f32.mrb[0].mxu0
        %v3612 = vadd.f32 0.0, %v3611
        %v3613 = vpop.f32.mrb[0].mxu0
        %v3614 = vadd.f32 0.0, %v3613
        %3615 = vmatprep.mubr.bf16.mxu0 %v758
        %3616 = vmatmul.mubr.bf16.gmra.mrb[0].mxu0 %v757
        %v3617 = vpop.f32.mrb[0].mxu0
        %v3618 = vadd.f32 0.0, %v3617
        %v3619 = vpop.f32.mrb[0].mxu0
        %v3620 = vadd.f32 0.0, %v3619
        %v3621 = vpop.f32.mrb[0].mxu0
        %v3622 = vadd.f32 0.0, %v3621
        %v3623 = vpop.f32.mrb[0].mxu0
        %v3624 = vadd.f32 0.0, %v3623
        %3625 = vmatprep.mubr.bf16.mxu0 %v766
        %3626 = vmatmul.mubr.bf16.gmra.mrb[0].mxu0 %v765
        %v3627 = vpop.f32.mrb[0].mxu0
        %v3628 = vadd.f32 0.0, %v3627
        %v3629 = vpop.f32.mrb[0].mxu0
        %v3630 = vadd.f32 0.0, %v3629
        %v3631 = vpop.f32.mrb[0].mxu0
        %v3632 = vadd.f32 0.0, %v3631
        %v3633 = vpop.f32.mrb[0].mxu0
        %v3634 = vadd.f32 0.0, %v3633
        %3635 = vmatprep.mubr.bf16.mxu0 %v774
        %3636 = vmatmul.mubr.bf16.gmra.mrb[0].mxu0 %v773
        %v3637 = vpop.f32.mrb[0].mxu0
        %v3638 = vadd.f32 0.0, %v3637
        %v3639 = vpop.f32.mrb[0].mxu0
        %v3640 = vadd.f32 0.0, %v3639
        %v3641 = vpop.f32.mrb[0].mxu0
        %v3642 = vadd.f32 0.0, %v3641
        %v3643 = vpop.f32.mrb[0].mxu0
        %v3644 = vadd.f32 0.0, %v3643
        %3645 = vmatprep.mubr.bf16.mxu0 %v782
        %3646 = vmatmul.mubr.bf16.gmra.mrb[0].mxu0 %v781
        %v3647 = vpop.f32.mrb[0].mxu0
        %v3648 = vadd.f32 0.0, %v3647
        %v3649 = vpop.f32.mrb[0].mxu0
        %v3650 = vadd.f32 0.0, %v3649
        %v3651 = vpop.f32.mrb[0].mxu0
        %v3652 = vadd.f32 0.0, %v3651
        %v3653 = vpop.f32.mrb[0].mxu0
        %v3654 = vadd.f32 0.0, %v3653
        %3655 = vmatprep.mubr.bf16.mxu0 %v790
        %3656 = vmatmul.mubr.bf16.gmra.mrb[0].mxu0 %v789
        %v3657 = vpop.f32.mrb[0].mxu0
        %v3658 = vadd.f32 0.0, %v3657
        %v3659 = vpop.f32.mrb[0].mxu0
        %v3660 = vadd.f32 0.0, %v3659
        %v3661 = vpop.f32.mrb[0].mxu0
        %v3662 = vadd.f32 0.0, %v3661
        %v3663 = vpop.f32.mrb[0].mxu0
        %v3664 = vadd.f32 0.0, %v3663
        %3665 = vdwg.mxu0
        %3666 = vmatprep.subr.bf16.mxu0 %v2432
        %3667 = vmatpush1.bf16.msra.mxu0 %v2431
        %3668 = vmatprep.subr.bf16.mxu0 %v2438
        %3669 = vmatpush1.bf16.msra.mxu0 %v2437
        %3670 = vmatprep.subr.bf16.mxu0 %v2444
        %3671 = vmatpush1.bf16.msra.mxu0 %v2443
        %3672 = vmatprep.subr.bf16.mxu0 %v2450
        %3673 = vmatpush1.bf16.msra.mxu0 %v2449
        %3674 = vmatprep.subr.bf16.mxu0 %v2456
        %3675 = vmatpush1.bf16.msra.mxu0 %v2455
        %3676 = vmatprep.subr.bf16.mxu0 %v2462
        %3677 = vmatpush1.bf16.msra.mxu0 %v2461
        %3678 = vmatprep.subr.bf16.mxu0 %v2468
        %3679 = vmatpush1.bf16.msra.mxu0 %v2467
        %3680 = vmatprep.subr.bf16.mxu0 %v2474
        %3681 = vmatpush1.bf16.msra.mxu0 %v2473
        %3682 = vmatprep.subr.bf16.mxu0 %v2480
        %3683 = vmatpush1.bf16.msra.mxu0 %v2479
        %3684 = vmatprep.subr.bf16.mxu0 %v2486
        %3685 = vmatpush1.bf16.msra.mxu0 %v2485
        %3686 = vmatprep.subr.bf16.mxu0 %v2492
        %3687 = vmatpush1.bf16.msra.mxu0 %v2491
        %3688 = vmatprep.subr.bf16.mxu0 %v2498
        %3689 = vmatpush1.bf16.msra.mxu0 %v2497
        %3690 = vmatprep.subr.bf16.mxu0 %v2504
        %3691 = vmatpush1.bf16.msra.mxu0 %v2503
        %3692 = vmatprep.subr.bf16.mxu0 %v2510
        %3693 = vmatpush1.bf16.msra.mxu0 %v2509
        %3694 = vmatprep.subr.bf16.mxu0 %v2516
        %3695 = vmatpush1.bf16.msra.mxu0 %v2515
        %3696 = vmatprep.subr.bf16.mxu0 %v2522
        %3697 = vmatpush1.bf16.msra.mxu0 %v2521
        %3698 = vmatprep.mubr.bf16.mxu0 %v736
        %3699 = vmatmul.mubr.bf16.gmra.mrb[0].mxu0 %v735
        %v3700 = vpop.f32.mrb[0].mxu0
        %v3701 = vadd.f32 %v3588, %v3700
        %v3702 = vpop.f32.mrb[0].mxu0
        %v3703 = vadd.f32 %v3590, %v3702
        %v3704 = vpop.f32.mrb[0].mxu0
        %v3705 = vadd.f32 %v3592, %v3704
        %v3706 = vpop.f32.mrb[0].mxu0
        %v3707 = vadd.f32 %v3594, %v3706
        %3708 = vmatprep.mubr.bf16.mxu0 %v744
        %3709 = vmatmul.mubr.bf16.gmra.mrb[0].mxu0 %v743
        %v3710 = vpop.f32.mrb[0].mxu0
        %v3711 = vadd.f32 %v3598, %v3710
        %v3712 = vpop.f32.mrb[0].mxu0
        %v3713 = vadd.f32 %v3600, %v3712
        %v3714 = vpop.f32.mrb[0].mxu0
        %v3715 = vadd.f32 %v3602, %v3714
        %v3716 = vpop.f32.mrb[0].mxu0
        %v3717 = vadd.f32 %v3604, %v3716
        %3718 = vmatprep.mubr.bf16.mxu0 %v752
        %3719 = vmatmul.mubr.bf16.gmra.mrb[0].mxu0 %v751
        %v3720 = vpop.f32.mrb[0].mxu0
        %v3721 = vadd.f32 %v3608, %v3720
        %v3722 = vpop.f32.mrb[0].mxu0
        %v3723 = vadd.f32 %v3610, %v3722
        %v3724 = vpop.f32.mrb[0].mxu0
        %v3725 = vadd.f32 %v3612, %v3724
        %v3726 = vpop.f32.mrb[0].mxu0
        %v3727 = vadd.f32 %v3614, %v3726
        %3728 = vmatprep.mubr.bf16.mxu0 %v760
        %3729 = vmatmul.mubr.bf16.gmra.mrb[0].mxu0 %v759
        %v3730 = vpop.f32.mrb[0].mxu0
        %v3731 = vadd.f32 %v3618, %v3730
        %v3732 = vpop.f32.mrb[0].mxu0
        %v3733 = vadd.f32 %v3620, %v3732
        %v3734 = vpop.f32.mrb[0].mxu0
        %v3735 = vadd.f32 %v3622, %v3734
        %v3736 = vpop.f32.mrb[0].mxu0
        %v3737 = vadd.f32 %v3624, %v3736
        %3738 = vmatprep.mubr.bf16.mxu0 %v768
        %3739 = vmatmul.mubr.bf16.gmra.mrb[0].mxu0 %v767
        %v3740 = vpop.f32.mrb[0].mxu0
        %v3741 = vadd.f32 %v3628, %v3740
        %v3742 = vpop.f32.mrb[0].mxu0
        %v3743 = vadd.f32 %v3630, %v3742
        %v3744 = vpop.f32.mrb[0].mxu0
        %v3745 = vadd.f32 %v3632, %v3744
        %v3746 = vpop.f32.mrb[0].mxu0
        %v3747 = vadd.f32 %v3634, %v3746
        %3748 = vmatprep.mubr.bf16.mxu0 %v776
        %3749 = vmatmul.mubr.bf16.gmra.mrb[0].mxu0 %v775
        %v3750 = vpop.f32.mrb[0].mxu0
        %v3751 = vadd.f32 %v3638, %v3750
        %v3752 = vpop.f32.mrb[0].mxu0
        %v3753 = vadd.f32 %v3640, %v3752
        %v3754 = vpop.f32.mrb[0].mxu0
        %v3755 = vadd.f32 %v3642, %v3754
        %v3756 = vpop.f32.mrb[0].mxu0
        %v3757 = vadd.f32 %v3644, %v3756
        %3758 = vmatprep.mubr.bf16.mxu0 %v784
        %3759 = vmatmul.mubr.bf16.gmra.mrb[0].mxu0 %v783
        %v3760 = vpop.f32.mrb[0].mxu0
        %v3761 = vadd.f32 %v3648, %v3760
        %v3762 = vpop.f32.mrb[0].mxu0
        %v3763 = vadd.f32 %v3650, %v3762
        %v3764 = vpop.f32.mrb[0].mxu0
        %v3765 = vadd.f32 %v3652, %v3764
        %v3766 = vpop.f32.mrb[0].mxu0
        %v3767 = vadd.f32 %v3654, %v3766
        %3768 = vmatprep.mubr.bf16.mxu0 %v792
        %3769 = vmatmul.mubr.bf16.gmra.mrb[0].mxu0 %v791
        %v3770 = vpop.f32.mrb[0].mxu0
        %v3771 = vadd.f32 %v3658, %v3770
        %v3772 = vpop.f32.mrb[0].mxu0
        %v3773 = vadd.f32 %v3660, %v3772
        %v3774 = vpop.f32.mrb[0].mxu0
        %v3775 = vadd.f32 %v3662, %v3774
        %v3776 = vpop.f32.mrb[0].mxu0
        %v3777 = vadd.f32 %v3664, %v3776
        %3778 = vdwg.mxu0
        %3779 = vmatprep.subr.bf16.mxu0 %v2528
        %3780 = vmatpush1.bf16.msra.mxu0 %v2527
        %3781 = vmatprep.subr.bf16.mxu0 %v2534
        %3782 = vmatpush1.bf16.msra.mxu0 %v2533
        %3783 = vmatprep.subr.bf16.mxu0 %v2540
        %3784 = vmatpush1.bf16.msra.mxu0 %v2539
        %3785 = vmatprep.subr.bf16.mxu0 %v2546
        %3786 = vmatpush1.bf16.msra.mxu0 %v2545
        %3787 = vmatprep.subr.bf16.mxu0 %v2552
        %3788 = vmatpush1.bf16.msra.mxu0 %v2551
        %3789 = vmatprep.subr.bf16.mxu0 %v2558
        %3790 = vmatpush1.bf16.msra.mxu0 %v2557
        %3791 = vmatprep.subr.bf16.mxu0 %v2564
        %3792 = vmatpush1.bf16.msra.mxu0 %v2563
        %3793 = vmatprep.subr.bf16.mxu0 %v2570
        %3794 = vmatpush1.bf16.msra.mxu0 %v2569
        %3795 = vmatprep.subr.bf16.mxu0 %v2576
        %3796 = vmatpush1.bf16.msra.mxu0 %v2575
        %3797 = vmatprep.subr.bf16.mxu0 %v2582
        %3798 = vmatpush1.bf16.msra.mxu0 %v2581
        %3799 = vmatprep.subr.bf16.mxu0 %v2588
        %3800 = vmatpush1.bf16.msra.mxu0 %v2587
        %3801 = vmatprep.subr.bf16.mxu0 %v2594
        %3802 = vmatpush1.bf16.msra.mxu0 %v2593
        %3803 = vmatprep.subr.bf16.mxu0 %v2600
        %3804 = vmatpush1.bf16.msra.mxu0 %v2599
        %3805 = vmatprep.subr.bf16.mxu0 %v2606
        %3806 = vmatpush1.bf16.msra.mxu0 %v2605
        %3807 = vmatprep.subr.bf16.mxu0 %v2612
        %3808 = vmatpush1.bf16.msra.mxu0 %v2611
        %3809 = vmatprep.subr.bf16.mxu0 %v2618
        %3810 = vmatpush1.bf16.msra.mxu0 %v2617
        %3811 = vmatprep.mubr.bf16.mxu0 %v738
        %3812 = vmatmul.mubr.bf16.gmra.mrb[0].mxu0 %v737
        %v3813 = vpop.f32.mrb[0].mxu0
        %v3814 = vadd.f32 %v3701, %v3813
        %v3815 = vpop.f32.mrb[0].mxu0
        %v3816 = vadd.f32 %v3703, %v3815
        %v3817 = vpop.f32.mrb[0].mxu0
        %v3818 = vadd.f32 %v3705, %v3817
        %v3819 = vpop.f32.mrb[0].mxu0
        %v3820 = vadd.f32 %v3707, %v3819
        %3821 = vmatprep.mubr.bf16.mxu0 %v746
        %3822 = vmatmul.mubr.bf16.gmra.mrb[0].mxu0 %v745
        %v3823 = vpop.f32.mrb[0].mxu0
        %v3824 = vadd.f32 %v3711, %v3823
        %v3825 = vpop.f32.mrb[0].mxu0
        %v3826 = vadd.f32 %v3713, %v3825
        %v3827 = vpop.f32.mrb[0].mxu0
        %v3828 = vadd.f32 %v3715, %v3827
        %v3829 = vpop.f32.mrb[0].mxu0
        %v3830 = vadd.f32 %v3717, %v3829
        %3831 = vmatprep.mubr.bf16.mxu0 %v754
        %3832 = vmatmul.mubr.bf16.gmra.mrb[0].mxu0 %v753
        %v3833 = vpop.f32.mrb[0].mxu0
        %v3834 = vadd.f32 %v3721, %v3833
        %v3835 = vpop.f32.mrb[0].mxu0
        %v3836 = vadd.f32 %v3723, %v3835
        %v3837 = vpop.f32.mrb[0].mxu0
        %v3838 = vadd.f32 %v3725, %v3837
        %v3839 = vpop.f32.mrb[0].mxu0
        %v3840 = vadd.f32 %v3727, %v3839
        %3841 = vmatprep.mubr.bf16.mxu0 %v762
        %3842 = vmatmul.mubr.bf16.gmra.mrb[0].mxu0 %v761
        %v3843 = vpop.f32.mrb[0].mxu0
        %v3844 = vadd.f32 %v3731, %v3843
        %v3845 = vpop.f32.mrb[0].mxu0
        %v3846 = vadd.f32 %v3733, %v3845
        %v3847 = vpop.f32.mrb[0].mxu0
        %v3848 = vadd.f32 %v3735, %v3847
        %v3849 = vpop.f32.mrb[0].mxu0
        %v3850 = vadd.f32 %v3737, %v3849
        %3851 = vmatprep.mubr.bf16.mxu0 %v770
        %3852 = vmatmul.mubr.bf16.gmra.mrb[0].mxu0 %v769
        %v3853 = vpop.f32.mrb[0].mxu0
        %v3854 = vadd.f32 %v3741, %v3853
        %v3855 = vpop.f32.mrb[0].mxu0
        %v3856 = vadd.f32 %v3743, %v3855
        %v3857 = vpop.f32.mrb[0].mxu0
        %v3858 = vadd.f32 %v3745, %v3857
        %v3859 = vpop.f32.mrb[0].mxu0
        %v3860 = vadd.f32 %v3747, %v3859
        %3861 = vmatprep.mubr.bf16.mxu0 %v778
        %3862 = vmatmul.mubr.bf16.gmra.mrb[0].mxu0 %v777
        %v3863 = vpop.f32.mrb[0].mxu0
        %v3864 = vadd.f32 %v3751, %v3863
        %v3865 = vpop.f32.mrb[0].mxu0
        %v3866 = vadd.f32 %v3753, %v3865
        %v3867 = vpop.f32.mrb[0].mxu0
        %v3868 = vadd.f32 %v3755, %v3867
        %v3869 = vpop.f32.mrb[0].mxu0
        %v3870 = vadd.f32 %v3757, %v3869
        %3871 = vmatprep.mubr.bf16.mxu0 %v786
        %3872 = vmatmul.mubr.bf16.gmra.mrb[0].mxu0 %v785
        %v3873 = vpop.f32.mrb[0].mxu0
        %v3874 = vadd.f32 %v3761, %v3873
        %v3875 = vpop.f32.mrb[0].mxu0
        %v3876 = vadd.f32 %v3763, %v3875
        %v3877 = vpop.f32.mrb[0].mxu0
        %v3878 = vadd.f32 %v3765, %v3877
        %v3879 = vpop.f32.mrb[0].mxu0
        %v3880 = vadd.f32 %v3767, %v3879
        %3881 = vmatprep.mubr.bf16.mxu0 %v794
        %3882 = vmatmul.mubr.bf16.gmra.mrb[0].mxu0 %v793
        %v3883 = vpop.f32.mrb[0].mxu0
        %v3884 = vadd.f32 %v3771, %v3883
        %v3885 = vpop.f32.mrb[0].mxu0
        %v3886 = vadd.f32 %v3773, %v3885
        %v3887 = vpop.f32.mrb[0].mxu0
        %v3888 = vadd.f32 %v3775, %v3887
        %v3889 = vpop.f32.mrb[0].mxu0
        %v3890 = vadd.f32 %v3777, %v3889
        %3891 = vdwg.mxu0
        %3892 = vmatprep.subr.bf16.mxu0 %v2624
        %3893 = vmatpush1.bf16.msra.mxu0 %v2623
        %3894 = vmatprep.subr.bf16.mxu0 %v2630
        %3895 = vmatpush1.bf16.msra.mxu0 %v2629
        %3896 = vmatprep.subr.bf16.mxu0 %v2636
        %3897 = vmatpush1.bf16.msra.mxu0 %v2635
        %3898 = vmatprep.subr.bf16.mxu0 %v2642
        %3899 = vmatpush1.bf16.msra.mxu0 %v2641
        %3900 = vmatprep.subr.bf16.mxu0 %v2648
        %3901 = vmatpush1.bf16.msra.mxu0 %v2647
        %3902 = vmatprep.subr.bf16.mxu0 %v2654
        %3903 = vmatpush1.bf16.msra.mxu0 %v2653
        %3904 = vmatprep.subr.bf16.mxu0 %v2660
        %3905 = vmatpush1.bf16.msra.mxu0 %v2659
        %3906 = vmatprep.subr.bf16.mxu0 %v2666
        %3907 = vmatpush1.bf16.msra.mxu0 %v2665
        %3908 = vmatprep.subr.bf16.mxu0 %v2672
        %3909 = vmatpush1.bf16.msra.mxu0 %v2671
        %3910 = vmatprep.subr.bf16.mxu0 %v2678
        %3911 = vmatpush1.bf16.msra.mxu0 %v2677
        %3912 = vmatprep.subr.bf16.mxu0 %v2684
        %3913 = vmatpush1.bf16.msra.mxu0 %v2683
        %3914 = vmatprep.subr.bf16.mxu0 %v2690
        %3915 = vmatpush1.bf16.msra.mxu0 %v2689
        %3916 = vmatprep.subr.bf16.mxu0 %v2696
        %3917 = vmatpush1.bf16.msra.mxu0 %v2695
        %3918 = vmatprep.subr.bf16.mxu0 %v2702
        %3919 = vmatpush1.bf16.msra.mxu0 %v2701
        %3920 = vmatprep.subr.bf16.mxu0 %v2708
        %3921 = vmatpush1.bf16.msra.mxu0 %v2707
        %3922 = vmatprep.subr.bf16.mxu0 %v2714
        %3923 = vmatpush1.bf16.msra.mxu0 %v2713
        %3924 = vmatprep.mubr.bf16.mxu0 %v740
        %3925 = vmatmul.mubr.bf16.gmra.mrb[0].mxu0 %v739
        %v3926 = vpop.f32.mrb[0].mxu0
        %v3927 = vadd.f32 %v3814, %v3926
        %v3928 = vpop.f32.mrb[0].mxu0
        %v3929 = vadd.f32 %v3816, %v3928
        %v3930 = vpop.f32.mrb[0].mxu0
        %v3931 = vadd.f32 %v3818, %v3930
        %v3932 = vpop.f32.mrb[0].mxu0
        %v3933 = vadd.f32 %v3820, %v3932
        %3934 = vmatprep.mubr.bf16.mxu0 %v748
        %3935 = vmatmul.mubr.bf16.gmra.mrb[0].mxu0 %v747
        %v3936 = vpop.f32.mrb[0].mxu0
        %v3937 = vadd.f32 %v3824, %v3936
        %v3938 = vpop.f32.mrb[0].mxu0
        %v3939 = vadd.f32 %v3826, %v3938
        %v3940 = vpop.f32.mrb[0].mxu0
        %v3941 = vadd.f32 %v3828, %v3940
        %v3942 = vpop.f32.mrb[0].mxu0
        %v3943 = vadd.f32 %v3830, %v3942
        %3944 = vmatprep.mubr.bf16.mxu0 %v756
        %3945 = vmatmul.mubr.bf16.gmra.mrb[0].mxu0 %v755
        %v3946 = vpop.f32.mrb[0].mxu0
        %v3947 = vadd.f32 %v3834, %v3946
        %v3948 = vpop.f32.mrb[0].mxu0
        %v3949 = vadd.f32 %v3836, %v3948
        %v3950 = vpop.f32.mrb[0].mxu0
        %v3951 = vadd.f32 %v3838, %v3950
        %v3952 = vpop.f32.mrb[0].mxu0
        %v3953 = vadd.f32 %v3840, %v3952
        %3954 = vmatprep.mubr.bf16.mxu0 %v764
        %3955 = vmatmul.mubr.bf16.gmra.mrb[0].mxu0 %v763
        %v3956 = vpop.f32.mrb[0].mxu0
        %v3957 = vadd.f32 %v3844, %v3956
        %v3958 = vpop.f32.mrb[0].mxu0
        %v3959 = vadd.f32 %v3846, %v3958
        %v3960 = vpop.f32.mrb[0].mxu0
        %v3961 = vadd.f32 %v3848, %v3960
        %v3962 = vpop.f32.mrb[0].mxu0
        %v3963 = vadd.f32 %v3850, %v3962
        %3964 = vmatprep.mubr.bf16.mxu0 %v772
        %3965 = vmatmul.mubr.bf16.gmra.mrb[0].mxu0 %v771
        %v3966 = vpop.f32.mrb[0].mxu0
        %v3967 = vadd.f32 %v3854, %v3966
        %v3968 = vpop.f32.mrb[0].mxu0
        %v3969 = vadd.f32 %v3856, %v3968
        %v3970 = vpop.f32.mrb[0].mxu0
        %v3971 = vadd.f32 %v3858, %v3970
        %v3972 = vpop.f32.mrb[0].mxu0
        %v3973 = vadd.f32 %v3860, %v3972
        %3974 = vmatprep.mubr.bf16.mxu0 %v780
        %3975 = vmatmul.mubr.bf16.gmra.mrb[0].mxu0 %v779
        %v3976 = vpop.f32.mrb[0].mxu0
        %v3977 = vadd.f32 %v3864, %v3976
        %v3978 = vpop.f32.mrb[0].mxu0
        %v3979 = vadd.f32 %v3866, %v3978
        %v3980 = vpop.f32.mrb[0].mxu0
        %v3981 = vadd.f32 %v3868, %v3980
        %v3982 = vpop.f32.mrb[0].mxu0
        %v3983 = vadd.f32 %v3870, %v3982
        %3984 = vmatprep.mubr.bf16.mxu0 %v788
        %3985 = vmatmul.mubr.bf16.gmra.mrb[0].mxu0 %v787
        %v3986 = vpop.f32.mrb[0].mxu0
        %v3987 = vadd.f32 %v3874, %v3986
        %v3988 = vpop.f32.mrb[0].mxu0
        %v3989 = vadd.f32 %v3876, %v3988
        %v3990 = vpop.f32.mrb[0].mxu0
        %v3991 = vadd.f32 %v3878, %v3990
        %v3992 = vpop.f32.mrb[0].mxu0
        %v3993 = vadd.f32 %v3880, %v3992
        %3994 = vmatprep.mubr.bf16.mxu0 %v796
        %3995 = vmatmul.mubr.bf16.gmra.mrb[0].mxu0 %v795
        %v3996 = vpop.f32.mrb[0].mxu0
        %v3997 = vadd.f32 %v3884, %v3996
        %v3998 = vpop.f32.mrb[0].mxu0
        %v3999 = vadd.f32 %v3886, %v3998
        %v4000 = vpop.f32.mrb[0].mxu0
        %v4001 = vadd.f32 %v3888, %v4000
        %v4002 = vpop.f32.mrb[0].mxu0
        %v4003 = vadd.f32 %v3890, %v4002
        %4004 = vdwg.mxu0
        %4005 = vmatprep.subr.bf16.mxu0 %v2338
        %4006 = vmatpush1.bf16.msra.mxu0 %v2337
        %4007 = vmatprep.subr.bf16.mxu0 %v2344
        %4008 = vmatpush1.bf16.msra.mxu0 %v2343
        %4009 = vmatprep.subr.bf16.mxu0 %v2350
        %4010 = vmatpush1.bf16.msra.mxu0 %v2349
        %4011 = vmatprep.subr.bf16.mxu0 %v2356
        %4012 = vmatpush1.bf16.msra.mxu0 %v2355
        %4013 = vmatprep.subr.bf16.mxu0 %v2362
        %4014 = vmatpush1.bf16.msra.mxu0 %v2361
        %4015 = vmatprep.subr.bf16.mxu0 %v2368
        %4016 = vmatpush1.bf16.msra.mxu0 %v2367
        %4017 = vmatprep.subr.bf16.mxu0 %v2374
        %4018 = vmatpush1.bf16.msra.mxu0 %v2373
        %4019 = vmatprep.subr.bf16.mxu0 %v2380
        %4020 = vmatpush1.bf16.msra.mxu0 %v2379
        %4021 = vmatprep.subr.bf16.mxu0 %v2386
        %4022 = vmatpush1.bf16.msra.mxu0 %v2385
        %4023 = vmatprep.subr.bf16.mxu0 %v2392
        %4024 = vmatpush1.bf16.msra.mxu0 %v2391
        %4025 = vmatprep.subr.bf16.mxu0 %v2398
        %4026 = vmatpush1.bf16.msra.mxu0 %v2397
        %4027 = vmatprep.subr.bf16.mxu0 %v2404
        %4028 = vmatpush1.bf16.msra.mxu0 %v2403
        %4029 = vmatprep.subr.bf16.mxu0 %v2410
        %4030 = vmatpush1.bf16.msra.mxu0 %v2409
        %4031 = vmatprep.subr.bf16.mxu0 %v2416
        %4032 = vmatpush1.bf16.msra.mxu0 %v2415
        %4033 = vmatprep.subr.bf16.mxu0 %v2422
        %4034 = vmatpush1.bf16.msra.mxu0 %v2421
        %4035 = vmatprep.subr.bf16.mxu0 %v2428
        %4036 = vmatpush1.bf16.msra.mxu0 %v2427
        %4037 = vmatprep.mubr.bf16.mxu0 %v734
        %4038 = vmatmul.mubr.bf16.gmra.mrb[0].mxu0 %v733
        %v4039 = vpop.f32.mrb[0].mxu0
        %v4040 = vadd.f32 0.0, %v4039
        %v4041 = vpop.f32.mrb[0].mxu0
        %v4042 = vadd.f32 0.0, %v4041
        %v4043 = vpop.f32.mrb[0].mxu0
        %v4044 = vadd.f32 0.0, %v4043
        %v4045 = vpop.f32.mrb[0].mxu0
        %v4046 = vadd.f32 0.0, %v4045
        %4047 = vmatprep.mubr.bf16.mxu0 %v742
        %4048 = vmatmul.mubr.bf16.gmra.mrb[0].mxu0 %v741
        %v4049 = vpop.f32.mrb[0].mxu0
        %v4050 = vadd.f32 0.0, %v4049
        %v4051 = vpop.f32.mrb[0].mxu0
        %v4052 = vadd.f32 0.0, %v4051
        %v4053 = vpop.f32.mrb[0].mxu0
        %v4054 = vadd.f32 0.0, %v4053
        %v4055 = vpop.f32.mrb[0].mxu0
        %v4056 = vadd.f32 0.0, %v4055
        %4057 = vmatprep.mubr.bf16.mxu0 %v750
        %4058 = vmatmul.mubr.bf16.gmra.mrb[0].mxu0 %v749
        %v4059 = vpop.f32.mrb[0].mxu0
        %v4060 = vadd.f32 0.0, %v4059
        %v4061 = vpop.f32.mrb[0].mxu0
        %v4062 = vadd.f32 0.0, %v4061
        %v4063 = vpop.f32.mrb[0].mxu0
        %v4064 = vadd.f32 0.0, %v4063
        %v4065 = vpop.f32.mrb[0].mxu0
        %v4066 = vadd.f32 0.0, %v4065
        %4067 = vmatprep.mubr.bf16.mxu0 %v758
        %4068 = vmatmul.mubr.bf16.gmra.mrb[0].mxu0 %v757
        %v4069 = vpop.f32.mrb[0].mxu0
        %v4070 = vadd.f32 0.0, %v4069
        %v4071 = vpop.f32.mrb[0].mxu0
        %v4072 = vadd.f32 0.0, %v4071
        %v4073 = vpop.f32.mrb[0].mxu0
        %v4074 = vadd.f32 0.0, %v4073
        %v4075 = vpop.f32.mrb[0].mxu0
        %v4076 = vadd.f32 0.0, %v4075
        %4077 = vmatprep.mubr.bf16.mxu0 %v766
        %4078 = vmatmul.mubr.bf16.gmra.mrb[0].mxu0 %v765
        %v4079 = vpop.f32.mrb[0].mxu0
        %v4080 = vadd.f32 0.0, %v4079
        %v4081 = vpop.f32.mrb[0].mxu0
        %v4082 = vadd.f32 0.0, %v4081
        %v4083 = vpop.f32.mrb[0].mxu0
        %v4084 = vadd.f32 0.0, %v4083
        %v4085 = vpop.f32.mrb[0].mxu0
        %v4086 = vadd.f32 0.0, %v4085
        %4087 = vmatprep.mubr.bf16.mxu0 %v774
        %4088 = vmatmul.mubr.bf16.gmra.mrb[0].mxu0 %v773
        %v4089 = vpop.f32.mrb[0].mxu0
        %v4090 = vadd.f32 0.0, %v4089
        %v4091 = vpop.f32.mrb[0].mxu0
        %v4092 = vadd.f32 0.0, %v4091
        %v4093 = vpop.f32.mrb[0].mxu0
        %v4094 = vadd.f32 0.0, %v4093
        %v4095 = vpop.f32.mrb[0].mxu0
        %v4096 = vadd.f32 0.0, %v4095
        %4097 = vmatprep.mubr.bf16.mxu0 %v782
        %4098 = vmatmul.mubr.bf16.gmra.mrb[0].mxu0 %v781
        %v4099 = vpop.f32.mrb[0].mxu0
        %v4100 = vadd.f32 0.0, %v4099
        %v4101 = vpop.f32.mrb[0].mxu0
        %v4102 = vadd.f32 0.0, %v4101
        %v4103 = vpop.f32.mrb[0].mxu0
        %v4104 = vadd.f32 0.0, %v4103
        %v4105 = vpop.f32.mrb[0].mxu0
        %v4106 = vadd.f32 0.0, %v4105
        %4107 = vmatprep.mubr.bf16.mxu0 %v790
        %4108 = vmatmul.mubr.bf16.gmra.mrb[0].mxu0 %v789
        %v4109 = vpop.f32.mrb[0].mxu0
        %v4110 = vadd.f32 0.0, %v4109
        %v4111 = vpop.f32.mrb[0].mxu0
        %v4112 = vadd.f32 0.0, %v4111
        %v4113 = vpop.f32.mrb[0].mxu0
        %v4114 = vadd.f32 0.0, %v4113
        %v4115 = vpop.f32.mrb[0].mxu0
        %v4116 = vadd.f32 0.0, %v4115
        %4117 = vdwg.mxu0
        %4118 = vmatprep.subr.bf16.mxu0 %v2434
        %4119 = vmatpush1.bf16.msra.mxu0 %v2433
        %4120 = vmatprep.subr.bf16.mxu0 %v2440
        %4121 = vmatpush1.bf16.msra.mxu0 %v2439
        %4122 = vmatprep.subr.bf16.mxu0 %v2446
        %4123 = vmatpush1.bf16.msra.mxu0 %v2445
        %4124 = vmatprep.subr.bf16.mxu0 %v2452
        %4125 = vmatpush1.bf16.msra.mxu0 %v2451
        %4126 = vmatprep.subr.bf16.mxu0 %v2458
        %4127 = vmatpush1.bf16.msra.mxu0 %v2457
        %4128 = vmatprep.subr.bf16.mxu0 %v2464
        %4129 = vmatpush1.bf16.msra.mxu0 %v2463
        %4130 = vmatprep.subr.bf16.mxu0 %v2470
        %4131 = vmatpush1.bf16.msra.mxu0 %v2469
        %4132 = vmatprep.subr.bf16.mxu0 %v2476
        %4133 = vmatpush1.bf16.msra.mxu0 %v2475
        %4134 = vmatprep.subr.bf16.mxu0 %v2482
        %4135 = vmatpush1.bf16.msra.mxu0 %v2481
        %4136 = vmatprep.subr.bf16.mxu0 %v2488
        %4137 = vmatpush1.bf16.msra.mxu0 %v2487
        %4138 = vmatprep.subr.bf16.mxu0 %v2494
        %4139 = vmatpush1.bf16.msra.mxu0 %v2493
        %4140 = vmatprep.subr.bf16.mxu0 %v2500
        %4141 = vmatpush1.bf16.msra.mxu0 %v2499
        %4142 = vmatprep.subr.bf16.mxu0 %v2506
        %4143 = vmatpush1.bf16.msra.mxu0 %v2505
        %4144 = vmatprep.subr.bf16.mxu0 %v2512
        %4145 = vmatpush1.bf16.msra.mxu0 %v2511
        %4146 = vmatprep.subr.bf16.mxu0 %v2518
        %4147 = vmatpush1.bf16.msra.mxu0 %v2517
        %4148 = vmatprep.subr.bf16.mxu0 %v2524
        %4149 = vmatpush1.bf16.msra.mxu0 %v2523
        %4150 = vmatprep.mubr.bf16.mxu0 %v736
        %4151 = vmatmul.mubr.bf16.gmra.mrb[0].mxu0 %v735
        %v4152 = vpop.f32.mrb[0].mxu0
        %v4153 = vadd.f32 %v4040, %v4152
        %v4154 = vpop.f32.mrb[0].mxu0
        %v4155 = vadd.f32 %v4042, %v4154
        %v4156 = vpop.f32.mrb[0].mxu0
        %v4157 = vadd.f32 %v4044, %v4156
        %v4158 = vpop.f32.mrb[0].mxu0
        %v4159 = vadd.f32 %v4046, %v4158
        %4160 = vmatprep.mubr.bf16.mxu0 %v744
        %4161 = vmatmul.mubr.bf16.gmra.mrb[0].mxu0 %v743
        %v4162 = vpop.f32.mrb[0].mxu0
        %v4163 = vadd.f32 %v4050, %v4162
        %v4164 = vpop.f32.mrb[0].mxu0
        %v4165 = vadd.f32 %v4052, %v4164
        %v4166 = vpop.f32.mrb[0].mxu0
        %v4167 = vadd.f32 %v4054, %v4166
        %v4168 = vpop.f32.mrb[0].mxu0
        %v4169 = vadd.f32 %v4056, %v4168
        %4170 = vmatprep.mubr.bf16.mxu0 %v752
        %4171 = vmatmul.mubr.bf16.gmra.mrb[0].mxu0 %v751
        %v4172 = vpop.f32.mrb[0].mxu0
        %v4173 = vadd.f32 %v4060, %v4172
        %v4174 = vpop.f32.mrb[0].mxu0
        %v4175 = vadd.f32 %v4062, %v4174
        %v4176 = vpop.f32.mrb[0].mxu0
        %v4177 = vadd.f32 %v4064, %v4176
        %v4178 = vpop.f32.mrb[0].mxu0
        %v4179 = vadd.f32 %v4066, %v4178
        %4180 = vmatprep.mubr.bf16.mxu0 %v760
        %4181 = vmatmul.mubr.bf16.gmra.mrb[0].mxu0 %v759
        %v4182 = vpop.f32.mrb[0].mxu0
        %v4183 = vadd.f32 %v4070, %v4182
        %v4184 = vpop.f32.mrb[0].mxu0
        %v4185 = vadd.f32 %v4072, %v4184
        %v4186 = vpop.f32.mrb[0].mxu0
        %v4187 = vadd.f32 %v4074, %v4186
        %v4188 = vpop.f32.mrb[0].mxu0
        %v4189 = vadd.f32 %v4076, %v4188
        %4190 = vmatprep.mubr.bf16.mxu0 %v768
        %4191 = vmatmul.mubr.bf16.gmra.mrb[0].mxu0 %v767
        %v4192 = vpop.f32.mrb[0].mxu0
        %v4193 = vadd.f32 %v4080, %v4192
        %v4194 = vpop.f32.mrb[0].mxu0
        %v4195 = vadd.f32 %v4082, %v4194
        %v4196 = vpop.f32.mrb[0].mxu0
        %v4197 = vadd.f32 %v4084, %v4196
        %v4198 = vpop.f32.mrb[0].mxu0
        %v4199 = vadd.f32 %v4086, %v4198
        %4200 = vmatprep.mubr.bf16.mxu0 %v776
        %4201 = vmatmul.mubr.bf16.gmra.mrb[0].mxu0 %v775
        %v4202 = vpop.f32.mrb[0].mxu0
        %v4203 = vadd.f32 %v4090, %v4202
        %v4204 = vpop.f32.mrb[0].mxu0
        %v4205 = vadd.f32 %v4092, %v4204
        %v4206 = vpop.f32.mrb[0].mxu0
        %v4207 = vadd.f32 %v4094, %v4206
        %v4208 = vpop.f32.mrb[0].mxu0
        %v4209 = vadd.f32 %v4096, %v4208
        %4210 = vmatprep.mubr.bf16.mxu0 %v784
        %4211 = vmatmul.mubr.bf16.gmra.mrb[0].mxu0 %v783
        %v4212 = vpop.f32.mrb[0].mxu0
        %v4213 = vadd.f32 %v4100, %v4212
        %v4214 = vpop.f32.mrb[0].mxu0
        %v4215 = vadd.f32 %v4102, %v4214
        %v4216 = vpop.f32.mrb[0].mxu0
        %v4217 = vadd.f32 %v4104, %v4216
        %v4218 = vpop.f32.mrb[0].mxu0
        %v4219 = vadd.f32 %v4106, %v4218
        %4220 = vmatprep.mubr.bf16.mxu0 %v792
        %4221 = vmatmul.mubr.bf16.gmra.mrb[0].mxu0 %v791
        %v4222 = vpop.f32.mrb[0].mxu0
        %v4223 = vadd.f32 %v4110, %v4222
        %v4224 = vpop.f32.mrb[0].mxu0
        %v4225 = vadd.f32 %v4112, %v4224
        %v4226 = vpop.f32.mrb[0].mxu0
        %v4227 = vadd.f32 %v4114, %v4226
        %v4228 = vpop.f32.mrb[0].mxu0
        %v4229 = vadd.f32 %v4116, %v4228
        %4230 = vdwg.mxu0
        %4231 = vmatprep.subr.bf16.mxu0 %v2530
        %4232 = vmatpush1.bf16.msra.mxu0 %v2529
        %4233 = vmatprep.subr.bf16.mxu0 %v2536
        %4234 = vmatpush1.bf16.msra.mxu0 %v2535
        %4235 = vmatprep.subr.bf16.mxu0 %v2542
        %4236 = vmatpush1.bf16.msra.mxu0 %v2541
        %4237 = vmatprep.subr.bf16.mxu0 %v2548
        %4238 = vmatpush1.bf16.msra.mxu0 %v2547
        %4239 = vmatprep.subr.bf16.mxu0 %v2554
        %4240 = vmatpush1.bf16.msra.mxu0 %v2553
        %4241 = vmatprep.subr.bf16.mxu0 %v2560
        %4242 = vmatpush1.bf16.msra.mxu0 %v2559
        %4243 = vmatprep.subr.bf16.mxu0 %v2566
        %4244 = vmatpush1.bf16.msra.mxu0 %v2565
        %4245 = vmatprep.subr.bf16.mxu0 %v2572
        %4246 = vmatpush1.bf16.msra.mxu0 %v2571
        %4247 = vmatprep.subr.bf16.mxu0 %v2578
        %4248 = vmatpush1.bf16.msra.mxu0 %v2577
        %4249 = vmatprep.subr.bf16.mxu0 %v2584
        %4250 = vmatpush1.bf16.msra.mxu0 %v2583
        %4251 = vmatprep.subr.bf16.mxu0 %v2590
        %4252 = vmatpush1.bf16.msra.mxu0 %v2589
        %4253 = vmatprep.subr.bf16.mxu0 %v2596
        %4254 = vmatpush1.bf16.msra.mxu0 %v2595
        %4255 = vmatprep.subr.bf16.mxu0 %v2602
        %4256 = vmatpush1.bf16.msra.mxu0 %v2601
        %4257 = vmatprep.subr.bf16.mxu0 %v2608
        %4258 = vmatpush1.bf16.msra.mxu0 %v2607
        %4259 = vmatprep.subr.bf16.mxu0 %v2614
        %4260 = vmatpush1.bf16.msra.mxu0 %v2613
        %4261 = vmatprep.subr.bf16.mxu0 %v2620
        %4262 = vmatpush1.bf16.msra.mxu0 %v2619
        %4263 = vmatprep.mubr.bf16.mxu0 %v738
        %4264 = vmatmul.mubr.bf16.gmra.mrb[0].mxu0 %v737
        %v4265 = vpop.f32.mrb[0].mxu0
        %v4266 = vadd.f32 %v4153, %v4265
        %v4267 = vpop.f32.mrb[0].mxu0
        %v4268 = vadd.f32 %v4155, %v4267
        %v4269 = vpop.f32.mrb[0].mxu0
        %v4270 = vadd.f32 %v4157, %v4269
        %v4271 = vpop.f32.mrb[0].mxu0
        %v4272 = vadd.f32 %v4159, %v4271
        %4273 = vmatprep.mubr.bf16.mxu0 %v746
        %4274 = vmatmul.mubr.bf16.gmra.mrb[0].mxu0 %v745
        %v4275 = vpop.f32.mrb[0].mxu0
        %v4276 = vadd.f32 %v4163, %v4275
        %v4277 = vpop.f32.mrb[0].mxu0
        %v4278 = vadd.f32 %v4165, %v4277
        %v4279 = vpop.f32.mrb[0].mxu0
        %v4280 = vadd.f32 %v4167, %v4279
        %v4281 = vpop.f32.mrb[0].mxu0
        %v4282 = vadd.f32 %v4169, %v4281
        %4283 = vmatprep.mubr.bf16.mxu0 %v754
        %4284 = vmatmul.mubr.bf16.gmra.mrb[0].mxu0 %v753
        %v4285 = vpop.f32.mrb[0].mxu0
        %v4286 = vadd.f32 %v4173, %v4285
        %v4287 = vpop.f32.mrb[0].mxu0
        %v4288 = vadd.f32 %v4175, %v4287
        %v4289 = vpop.f32.mrb[0].mxu0
        %v4290 = vadd.f32 %v4177, %v4289
        %v4291 = vpop.f32.mrb[0].mxu0
        %v4292 = vadd.f32 %v4179, %v4291
        %4293 = vmatprep.mubr.bf16.mxu0 %v762
        %4294 = vmatmul.mubr.bf16.gmra.mrb[0].mxu0 %v761
        %v4295 = vpop.f32.mrb[0].mxu0
        %v4296 = vadd.f32 %v4183, %v4295
        %v4297 = vpop.f32.mrb[0].mxu0
        %v4298 = vadd.f32 %v4185, %v4297
        %v4299 = vpop.f32.mrb[0].mxu0
        %v4300 = vadd.f32 %v4187, %v4299
        %v4301 = vpop.f32.mrb[0].mxu0
        %v4302 = vadd.f32 %v4189, %v4301
        %4303 = vmatprep.mubr.bf16.mxu0 %v770
        %4304 = vmatmul.mubr.bf16.gmra.mrb[0].mxu0 %v769
        %v4305 = vpop.f32.mrb[0].mxu0
        %v4306 = vadd.f32 %v4193, %v4305
        %v4307 = vpop.f32.mrb[0].mxu0
        %v4308 = vadd.f32 %v4195, %v4307
        %v4309 = vpop.f32.mrb[0].mxu0
        %v4310 = vadd.f32 %v4197, %v4309
        %v4311 = vpop.f32.mrb[0].mxu0
        %v4312 = vadd.f32 %v4199, %v4311
        %4313 = vmatprep.mubr.bf16.mxu0 %v778
        %4314 = vmatmul.mubr.bf16.gmra.mrb[0].mxu0 %v777
        %v4315 = vpop.f32.mrb[0].mxu0
        %v4316 = vadd.f32 %v4203, %v4315
        %v4317 = vpop.f32.mrb[0].mxu0
        %v4318 = vadd.f32 %v4205, %v4317
        %v4319 = vpop.f32.mrb[0].mxu0
        %v4320 = vadd.f32 %v4207, %v4319
        %v4321 = vpop.f32.mrb[0].mxu0
        %v4322 = vadd.f32 %v4209, %v4321
        %4323 = vmatprep.mubr.bf16.mxu0 %v786
        %4324 = vmatmul.mubr.bf16.gmra.mrb[0].mxu0 %v785
        %v4325 = vpop.f32.mrb[0].mxu0
        %v4326 = vadd.f32 %v4213, %v4325
        %v4327 = vpop.f32.mrb[0].mxu0
        %v4328 = vadd.f32 %v4215, %v4327
        %v4329 = vpop.f32.mrb[0].mxu0
        %v4330 = vadd.f32 %v4217, %v4329
        %v4331 = vpop.f32.mrb[0].mxu0
        %v4332 = vadd.f32 %v4219, %v4331
        %4333 = vmatprep.mubr.bf16.mxu0 %v794
        %4334 = vmatmul.mubr.bf16.gmra.mrb[0].mxu0 %v793
        %v4335 = vpop.f32.mrb[0].mxu0
        %v4336 = vadd.f32 %v4223, %v4335
        %v4337 = vpop.f32.mrb[0].mxu0
        %v4338 = vadd.f32 %v4225, %v4337
        %v4339 = vpop.f32.mrb[0].mxu0
        %v4340 = vadd.f32 %v4227, %v4339
        %v4341 = vpop.f32.mrb[0].mxu0
        %v4342 = vadd.f32 %v4229, %v4341
        %4343 = vdwg.mxu0
        %4344 = vmatprep.subr.bf16.mxu0 %v2626
        %4345 = vmatpush1.bf16.msra.mxu0 %v2625
        %4346 = vmatprep.subr.bf16.mxu0 %v2632
        %4347 = vmatpush1.bf16.msra.mxu0 %v2631
        %4348 = vmatprep.subr.bf16.mxu0 %v2638
        %4349 = vmatpush1.bf16.msra.mxu0 %v2637
        %4350 = vmatprep.subr.bf16.mxu0 %v2644
        %4351 = vmatpush1.bf16.msra.mxu0 %v2643
        %4352 = vmatprep.subr.bf16.mxu0 %v2650
        %4353 = vmatpush1.bf16.msra.mxu0 %v2649
        %4354 = vmatprep.subr.bf16.mxu0 %v2656
        %4355 = vmatpush1.bf16.msra.mxu0 %v2655
        %4356 = vmatprep.subr.bf16.mxu0 %v2662
        %4357 = vmatpush1.bf16.msra.mxu0 %v2661
        %4358 = vmatprep.subr.bf16.mxu0 %v2668
        %4359 = vmatpush1.bf16.msra.mxu0 %v2667
        %4360 = vmatprep.subr.bf16.mxu0 %v2674
        %4361 = vmatpush1.bf16.msra.mxu0 %v2673
        %4362 = vmatprep.subr.bf16.mxu0 %v2680
        %4363 = vmatpush1.bf16.msra.mxu0 %v2679
        %4364 = vmatprep.subr.bf16.mxu0 %v2686
        %4365 = vmatpush1.bf16.msra.mxu0 %v2685
        %4366 = vmatprep.subr.bf16.mxu0 %v2692
        %4367 = vmatpush1.bf16.msra.mxu0 %v2691
        %4368 = vmatprep.subr.bf16.mxu0 %v2698
        %4369 = vmatpush1.bf16.msra.mxu0 %v2697
        %4370 = vmatprep.subr.bf16.mxu0 %v2704
        %4371 = vmatpush1.bf16.msra.mxu0 %v2703
        %4372 = vmatprep.subr.bf16.mxu0 %v2710
        %4373 = vmatpush1.bf16.msra.mxu0 %v2709
        %4374 = vmatprep.subr.bf16.mxu0 %v2716
        %4375 = vmatpush1.bf16.msra.mxu0 %v2715
        %4376 = vmatprep.mubr.bf16.mxu0 %v740
        %4377 = vmatmul.mubr.bf16.gmra.mrb[0].mxu0 %v739
        %v4378 = vpop.f32.mrb[0].mxu0
        %v4379 = vadd.f32 %v4266, %v4378
        %v4380 = vpop.f32.mrb[0].mxu0
        %v4381 = vadd.f32 %v4268, %v4380
        %v4382 = vpop.f32.mrb[0].mxu0
        %v4383 = vadd.f32 %v4270, %v4382
        %v4384 = vpop.f32.mrb[0].mxu0
        %v4385 = vadd.f32 %v4272, %v4384
        %4386 = vmatprep.mubr.bf16.mxu0 %v748
        %4387 = vmatmul.mubr.bf16.gmra.mrb[0].mxu0 %v747
        %v4388 = vpop.f32.mrb[0].mxu0
        %v4389 = vadd.f32 %v4276, %v4388
        %v4390 = vpop.f32.mrb[0].mxu0
        %v4391 = vadd.f32 %v4278, %v4390
        %v4392 = vpop.f32.mrb[0].mxu0
        %v4393 = vadd.f32 %v4280, %v4392
        %v4394 = vpop.f32.mrb[0].mxu0
        %v4395 = vadd.f32 %v4282, %v4394
        %4396 = vmatprep.mubr.bf16.mxu0 %v756
        %4397 = vmatmul.mubr.bf16.gmra.mrb[0].mxu0 %v755
        %v4398 = vpop.f32.mrb[0].mxu0
        %v4399 = vadd.f32 %v4286, %v4398
        %v4400 = vpop.f32.mrb[0].mxu0
        %v4401 = vadd.f32 %v4288, %v4400
        %v4402 = vpop.f32.mrb[0].mxu0
        %v4403 = vadd.f32 %v4290, %v4402
        %v4404 = vpop.f32.mrb[0].mxu0
        %v4405 = vadd.f32 %v4292, %v4404
        %4406 = vmatprep.mubr.bf16.mxu0 %v764
        %4407 = vmatmul.mubr.bf16.gmra.mrb[0].mxu0 %v763
        %v4408 = vpop.f32.mrb[0].mxu0
        %v4409 = vadd.f32 %v4296, %v4408
        %v4410 = vpop.f32.mrb[0].mxu0
        %v4411 = vadd.f32 %v4298, %v4410
        %v4412 = vpop.f32.mrb[0].mxu0
        %v4413 = vadd.f32 %v4300, %v4412
        %v4414 = vpop.f32.mrb[0].mxu0
        %v4415 = vadd.f32 %v4302, %v4414
        %4416 = vmatprep.mubr.bf16.mxu0 %v772
        %4417 = vmatmul.mubr.bf16.gmra.mrb[0].mxu0 %v771
        %v4418 = vpop.f32.mrb[0].mxu0
        %v4419 = vadd.f32 %v4306, %v4418
        %v4420 = vpop.f32.mrb[0].mxu0
        %v4421 = vadd.f32 %v4308, %v4420
        %v4422 = vpop.f32.mrb[0].mxu0
        %v4423 = vadd.f32 %v4310, %v4422
        %v4424 = vpop.f32.mrb[0].mxu0
        %v4425 = vadd.f32 %v4312, %v4424
        %4426 = vmatprep.mubr.bf16.mxu0 %v780
        %4427 = vmatmul.mubr.bf16.gmra.mrb[0].mxu0 %v779
        %v4428 = vpop.f32.mrb[0].mxu0
        %v4429 = vadd.f32 %v4316, %v4428
        %v4430 = vpop.f32.mrb[0].mxu0
        %v4431 = vadd.f32 %v4318, %v4430
        %v4432 = vpop.f32.mrb[0].mxu0
        %v4433 = vadd.f32 %v4320, %v4432
        %v4434 = vpop.f32.mrb[0].mxu0
        %v4435 = vadd.f32 %v4322, %v4434
        %4436 = vmatprep.mubr.bf16.mxu0 %v788
        %4437 = vmatmul.mubr.bf16.gmra.mrb[0].mxu0 %v787
        %v4438 = vpop.f32.mrb[0].mxu0
        %v4439 = vadd.f32 %v4326, %v4438
        %v4440 = vpop.f32.mrb[0].mxu0
        %v4441 = vadd.f32 %v4328, %v4440
        %v4442 = vpop.f32.mrb[0].mxu0
        %v4443 = vadd.f32 %v4330, %v4442
        %v4444 = vpop.f32.mrb[0].mxu0
        %v4445 = vadd.f32 %v4332, %v4444
        %4446 = vmatprep.mubr.bf16.mxu0 %v796
        %4447 = vmatmul.mubr.bf16.gmra.mrb[0].mxu0 %v795
        %v4448 = vpop.f32.mrb[0].mxu0
        %v4449 = vadd.f32 %v4336, %v4448
        %v4450 = vpop.f32.mrb[0].mxu0
        %v4451 = vadd.f32 %v4338, %v4450
        %v4452 = vpop.f32.mrb[0].mxu0
        %v4453 = vadd.f32 %v4340, %v4452
        %v4454 = vpop.f32.mrb[0].mxu0
        %v4455 = vadd.f32 %v4342, %v4454
        %4456 = vdwg.mxu0
        %v4457 = vmul.f32 %v3475, %v3475
        %v4458 = vmul.f32 %v3477, %v3477
        %v4459 = vmul.f32 %v3927, %v3927
        %v4460 = vmul.f32 %v3479, %v3479
        %v4461 = vmul.f32 %v3481, %v3481
        %v4462 = vmul.f32 %v3931, %v3931
        %v4463 = vmul.f32 %v3485, %v3485
        %v4464 = vmul.f32 %v3487, %v3487
        %v4465 = vmul.f32 %v3937, %v3937
        %v4466 = vmul.f32 %v3489, %v3489
        %v4467 = vmul.f32 %v3491, %v3491
        %v4468 = vmul.f32 %v3941, %v3941
        %v4469 = vmul.f32 %v3495, %v3495
        %v4470 = vmul.f32 %v3497, %v3497
        %v4471 = vmul.f32 %v3947, %v3947
        %v4472 = vmul.f32 %v3499, %v3499
        %v4473 = vmul.f32 %v3501, %v3501
        %v4474 = vmul.f32 %v3951, %v3951
        %v4475 = vmul.f32 %v3505, %v3505
        %v4476 = vmul.f32 %v3507, %v3507
        %v4477 = vmul.f32 %v3957, %v3957
        %v4478 = vmul.f32 %v3509, %v3509
        %v4479 = vmul.f32 %v3511, %v3511
        %v4480 = vmul.f32 %v3961, %v3961
        %v4481 = vmul.f32 %v3515, %v3515
        %v4482 = vmul.f32 %v3517, %v3517
        %v4483 = vmul.f32 %v3967, %v3967
        %v4484 = vmul.f32 %v3519, %v3519
        %v4485 = vmul.f32 %v3521, %v3521
        %v4486 = vmul.f32 %v3971, %v3971
        %v4487 = vmul.f32 %v3525, %v3525
        %v4488 = vmul.f32 %v3527, %v3527
        %v4489 = vmul.f32 %v3977, %v3977
        %v4490 = vmul.f32 %v3529, %v3529
        %v4491 = vmul.f32 %v3531, %v3531
        %v4492 = vmul.f32 %v3981, %v3981
        %v4493 = vmul.f32 %v3535, %v3535
        %v4494 = vmul.f32 %v3537, %v3537
        %v4495 = vmul.f32 %v3987, %v3987
        %v4496 = vmul.f32 %v3539, %v3539
        %v4497 = vmul.f32 %v3541, %v3541
        %v4498 = vmul.f32 %v3991, %v3991
        %v4499 = vmul.f32 %v3545, %v3545
        %v4500 = vmul.f32 %v3547, %v3547
        %v4501 = vmul.f32 %v3997, %v3997
        %v4502 = vmul.f32 %v3549, %v3549
        %v4503 = vmul.f32 %v3551, %v3551
        %v4504 = vmul.f32 %v4001, %v4001
        %v4505 = vmul.f32 %v3929, %v3929
        %v4506 = vmul.f32 %v4379, %v4379
        %v4507 = vmul.f32 %v4381, %v4381
        %v4508 = vmul.f32 %v3933, %v3933
        %v4509 = vmul.f32 %v4383, %v4383
        %v4510 = vmul.f32 %v4385, %v4385
        %v4511 = vmul.f32 %v3939, %v3939
        %v4512 = vmul.f32 %v4389, %v4389
        %v4513 = vmul.f32 %v4391, %v4391
        %v4514 = vmul.f32 %v3943, %v3943
        %v4515 = vmul.f32 %v4393, %v4393
        %v4516 = vmul.f32 %v4395, %v4395
        %v4517 = vmul.f32 %v3949, %v3949
        %v4518 = vmul.f32 %v4399, %v4399
        %v4519 = vmul.f32 %v4401, %v4401
        %v4520 = vmul.f32 %v3953, %v3953
        %v4521 = vmul.f32 %v4403, %v4403
        %v4522 = vmul.f32 %v4405, %v4405
        %v4523 = vmul.f32 %v3959, %v3959
        %v4524 = vmul.f32 %v4409, %v4409
        %v4525 = vmul.f32 %v4411, %v4411
        %v4526 = vmul.f32 %v3963, %v3963
        %v4527 = vmul.f32 %v4413, %v4413
        %v4528 = vmul.f32 %v4415, %v4415
        %v4529 = vmul.f32 %v3969, %v3969
        %v4530 = vmul.f32 %v4419, %v4419
        %v4531 = vmul.f32 %v4421, %v4421
        %v4532 = vmul.f32 %v3973, %v3973
        %v4533 = vmul.f32 %v4423, %v4423
        %v4534 = vmul.f32 %v4425, %v4425
        %v4535 = vmul.f32 %v3979, %v3979
        %v4536 = vmul.f32 %v4429, %v4429
        %v4537 = vmul.f32 %v4431, %v4431
        %v4538 = vmul.f32 %v3983, %v3983
        %v4539 = vmul.f32 %v4433, %v4433
        %v4540 = vmul.f32 %v4435, %v4435
        %v4541 = vmul.f32 %v3989, %v3989
        %v4542 = vmul.f32 %v4439, %v4439
        %v4543 = vmul.f32 %v4441, %v4441
        %v4544 = vmul.f32 %v3993, %v3993
        %v4545 = vmul.f32 %v4443, %v4443
        %v4546 = vmul.f32 %v4445, %v4445
        %v4547 = vmul.f32 %v3999, %v3999
        %v4548 = vmul.f32 %v4449, %v4449
        %v4549 = vmul.f32 %v4451, %v4451
        %v4550 = vmul.f32 %v4003, %v4003
        %v4551 = vmul.f32 %v4453, %v4453
        %v4552 = vmul.f32 %v4455, %v4455
        %v4553 = vadd.f32 %v4457, %v4505
        %v4554 = vadd.f32 %v4458, %v4506
        %v4555 = vadd.f32 %v4459, %v4507
        %v4556 = vadd.f32 %v4460, %v4508
        %v4557 = vadd.f32 %v4461, %v4509
        %v4558 = vadd.f32 %v4462, %v4510
        %v4559 = vadd.f32 %v4463, %v4511
        %v4560 = vadd.f32 %v4464, %v4512
        %v4561 = vadd.f32 %v4465, %v4513
        %v4562 = vadd.f32 %v4466, %v4514
        %v4563 = vadd.f32 %v4467, %v4515
        %v4564 = vadd.f32 %v4468, %v4516
        %v4565 = vadd.f32 %v4469, %v4517
        %v4566 = vadd.f32 %v4470, %v4518
        %v4567 = vadd.f32 %v4471, %v4519
        %v4568 = vadd.f32 %v4472, %v4520
        %v4569 = vadd.f32 %v4473, %v4521
        %v4570 = vadd.f32 %v4474, %v4522
        %v4571 = vadd.f32 %v4475, %v4523
        %v4572 = vadd.f32 %v4476, %v4524
        %v4573 = vadd.f32 %v4477, %v4525
        %v4574 = vadd.f32 %v4478, %v4526
        %v4575 = vadd.f32 %v4479, %v4527
        %v4576 = vadd.f32 %v4480, %v4528
        %v4577 = vadd.f32 %v4481, %v4529
        %v4578 = vadd.f32 %v4482, %v4530
        %v4579 = vadd.f32 %v4483, %v4531
        %v4580 = vadd.f32 %v4484, %v4532
        %v4581 = vadd.f32 %v4485, %v4533
        %v4582 = vadd.f32 %v4486, %v4534
        %v4583 = vadd.f32 %v4487, %v4535
        %v4584 = vadd.f32 %v4488, %v4536
        %v4585 = vadd.f32 %v4489, %v4537
        %v4586 = vadd.f32 %v4490, %v4538
        %v4587 = vadd.f32 %v4491, %v4539
        %v4588 = vadd.f32 %v4492, %v4540
        %v4589 = vadd.f32 %v4493, %v4541
        %v4590 = vadd.f32 %v4494, %v4542
        %v4591 = vadd.f32 %v4495, %v4543
        %v4592 = vadd.f32 %v4496, %v4544
        %v4593 = vadd.f32 %v4497, %v4545
        %v4594 = vadd.f32 %v4498, %v4546
        %v4595 = vadd.f32 %v4499, %v4547
        %v4596 = vadd.f32 %v4500, %v4548
        %v4597 = vadd.f32 %v4501, %v4549
        %v4598 = vadd.f32 %v4502, %v4550
        %v4599 = vadd.f32 %v4503, %v4551
        %v4600 = vadd.f32 %v4504, %v4552
        %v4601 = vpack.c.bf16 %v4556, %v4553
        %v4602 = vpack.c.bf16 %v4557, %v4554
        %v4603 = vpack.c.bf16 %v4558, %v4555
        %v4604 = vpack.c.bf16 %v4562, %v4559
        %v4605 = vpack.c.bf16 %v4563, %v4560
        %v4606 = vpack.c.bf16 %v4564, %v4561
        %v4607 = vpack.c.bf16 %v4568, %v4565
        %v4608 = vpack.c.bf16 %v4569, %v4566
        %v4609 = vpack.c.bf16 %v4570, %v4567
        %v4610 = vpack.c.bf16 %v4574, %v4571
        %v4611 = vpack.c.bf16 %v4575, %v4572
        %v4612 = vpack.c.bf16 %v4576, %v4573
        %v4613 = vpack.c.bf16 %v4580, %v4577
        %v4614 = vpack.c.bf16 %v4581, %v4578
        %v4615 = vpack.c.bf16 %v4582, %v4579
        %v4616 = vpack.c.bf16 %v4586, %v4583
        %v4617 = vpack.c.bf16 %v4587, %v4584
        %v4618 = vpack.c.bf16 %v4588, %v4585
        %v4619 = vpack.c.bf16 %v4592, %v4589
        %v4620 = vpack.c.bf16 %v4593, %v4590
        %v4621 = vpack.c.bf16 %v4594, %v4591
        %v4622 = vpack.c.bf16 %v4598, %v4595
        %v4623 = vpack.c.bf16 %v4599, %v4596
        %v4624 = vpack.c.bf16 %v4600, %v4597
        %v4625 = vld [vmem:[#allocation8] sm:$0xf]
        %v4626 = vld [vmem:[#allocation8 + $0x4] sm:$0xf]
        %v4627 = vld [vmem:[#allocation8 + $0x8] sm:$0xf]
        %v4628 = vld [vmem:[#allocation8 + $0xc] sm:$0xf]
        %v4629 = vld [vmem:[#allocation8 + $0x10] sm:$0xf]
        %v4630 = vld [vmem:[#allocation8 + $0x14] sm:$0xf]
        %v4631 = vld [vmem:[#allocation8 + $0x18] sm:$0xf]
        %v4632 = vld [vmem:[#allocation8 + $0x1c] sm:$0xf]
        %v4633 = vld [vmem:[#allocation8 + $0x20] sm:$0xf]
        %v4634 = vld [vmem:[#allocation8 + $0x24] sm:$0xf]
        %v4635 = vld [vmem:[#allocation8 + $0x28] sm:$0xf]
        %v4636 = vld [vmem:[#allocation8 + $0x2c] sm:$0xf]
        %v4637 = vld [vmem:[#allocation8 + $0x30] sm:$0xf]
        %v4638 = vld [vmem:[#allocation8 + $0x34] sm:$0xf]
        %v4639 = vld [vmem:[#allocation8 + $0x38] sm:$0xf]
        %v4640 = vld [vmem:[#allocation8 + $0x3c] sm:$0xf]
        %v4641 = vld [vmem:[#allocation8 + $0x40] sm:$0xf]
        %v4642 = vld [vmem:[#allocation8 + $0x44] sm:$0xf]
        %v4643 = vld [vmem:[#allocation8 + $0x48] sm:$0xf]
        %v4644 = vld [vmem:[#allocation8 + $0x4c] sm:$0xf]
        %v4645 = vld [vmem:[#allocation8 + $0x50] sm:$0xf]
        %v4646 = vld [vmem:[#allocation8 + $0x54] sm:$0xf]
        %v4647 = vld [vmem:[#allocation8 + $0x58] sm:$0xf]
        %v4648 = vld [vmem:[#allocation8 + $0x5c] sm:$0xf]
        %v4649 = vld [vmem:[#allocation8 + $0x60] sm:$0xf]
        %v4650 = vld [vmem:[#allocation8 + $0x64] sm:$0xf]
        %v4651 = vld [vmem:[#allocation8 + $0x68] sm:$0xf]
        %v4652 = vld [vmem:[#allocation8 + $0x6c] sm:$0xf]
        %v4653 = vld [vmem:[#allocation8 + $0x70] sm:$0xf]
        %v4654 = vld [vmem:[#allocation8 + $0x74] sm:$0xf]
        %v4655 = vld [vmem:[#allocation8 + $0x78] sm:$0xf]
        %v4656 = vld [vmem:[#allocation8 + $0x7c] sm:$0xf]
        %v4657 = vld [vmem:[#allocation8 + $0x80] sm:$0xf]
        %v4658 = vld [vmem:[#allocation8 + $0x84] sm:$0xf]
        %v4659 = vld [vmem:[#allocation8 + $0x88] sm:$0xf]
        %v4660 = vld [vmem:[#allocation8 + $0x8c] sm:$0xf]
        %v4661 = vld [vmem:[#allocation8 + $0x90] sm:$0xf]
        %v4662 = vld [vmem:[#allocation8 + $0x94] sm:$0xf]
        %v4663 = vld [vmem:[#allocation8 + $0x98] sm:$0xf]
        %v4664 = vld [vmem:[#allocation8 + $0x9c] sm:$0xf]
        %v4665 = vld [vmem:[#allocation8 + $0xa0] sm:$0xf]
        %v4666 = vld [vmem:[#allocation8 + $0xa4] sm:$0xf]
        %v4667 = vld [vmem:[#allocation8 + $0xa8] sm:$0xf]
        %v4668 = vld [vmem:[#allocation8 + $0xac] sm:$0xf]
        %v4669 = vld [vmem:[#allocation8 + $0xb0] sm:$0xf]
        %v4670 = vld [vmem:[#allocation8 + $0xb4] sm:$0xf]
        %v4671 = vld [vmem:[#allocation8 + $0xb8] sm:$0xf]
        %v4672 = vld [vmem:[#allocation8 + $0xbc] sm:$0xf]
        %v4721 = vunpack.c.l.b16 %v4625
        %v4722 = vunpack.c.l.b16 %v4626
        %v4723 = vunpack.c.l.b16 %v4627
        %v4724 = vunpack.c.l.b16 %v4628
        %v4725 = vunpack.c.l.b16 %v4629
        %v4726 = vunpack.c.l.b16 %v4630
        %v4727 = vunpack.c.l.b16 %v4631
        %v4728 = vunpack.c.l.b16 %v4632
        %v4729 = vunpack.c.l.b16 %v4633
        %v4730 = vunpack.c.l.b16 %v4634
        %v4731 = vunpack.c.l.b16 %v4635
        %v4732 = vunpack.c.l.b16 %v4636
        %v4733 = vunpack.c.l.b16 %v4637
        %v4734 = vunpack.c.l.b16 %v4638
        %v4735 = vunpack.c.l.b16 %v4639
        %v4736 = vunpack.c.l.b16 %v4640
        %v4737 = vunpack.c.l.b16 %v4641
        %v4738 = vunpack.c.l.b16 %v4642
        %v4739 = vunpack.c.l.b16 %v4643
        %v4740 = vunpack.c.l.b16 %v4644
        %v4741 = vunpack.c.l.b16 %v4645
        %v4742 = vunpack.c.l.b16 %v4646
        %v4743 = vunpack.c.l.b16 %v4647
        %v4744 = vunpack.c.l.b16 %v4648
        %v4745 = vunpack.c.l.b16 %v4649
        %v4746 = vunpack.c.l.b16 %v4650
        %v4747 = vunpack.c.l.b16 %v4651
        %v4748 = vunpack.c.l.b16 %v4652
        %v4749 = vunpack.c.l.b16 %v4653
        %v4750 = vunpack.c.l.b16 %v4654
        %v4751 = vunpack.c.l.b16 %v4655
        %v4752 = vunpack.c.l.b16 %v4656
        %v4753 = vunpack.c.l.b16 %v4657
        %v4754 = vunpack.c.l.b16 %v4658
        %v4755 = vunpack.c.l.b16 %v4659
        %v4756 = vunpack.c.l.b16 %v4660
        %v4757 = vunpack.c.l.b16 %v4661
        %v4758 = vunpack.c.l.b16 %v4662
        %v4759 = vunpack.c.l.b16 %v4663
        %v4760 = vunpack.c.l.b16 %v4664
        %v4761 = vunpack.c.l.b16 %v4665
        %v4762 = vunpack.c.l.b16 %v4666
        %v4763 = vunpack.c.l.b16 %v4667
        %v4764 = vunpack.c.l.b16 %v4668
        %v4765 = vunpack.c.l.b16 %v4669
        %v4766 = vunpack.c.l.b16 %v4670
        %v4767 = vunpack.c.l.b16 %v4671
        %v4768 = vunpack.c.l.b16 %v4672
        %v4769 = vpack.c.b16 %v4722, %v4721
        %v4770 = vpack.c.b16 %v4724, %v4723
        %v4771 = vpack.c.b16 %v4726, %v4725
        %v4772 = vpack.c.b16 %v4728, %v4727
        %v4773 = vpack.c.b16 %v4730, %v4729
        %v4774 = vpack.c.b16 %v4732, %v4731
        %v4775 = vpack.c.b16 %v4734, %v4733
        %v4776 = vpack.c.b16 %v4736, %v4735
        %v4777 = vpack.c.b16 %v4738, %v4737
        %v4778 = vpack.c.b16 %v4740, %v4739
        %v4779 = vpack.c.b16 %v4742, %v4741
        %v4780 = vpack.c.b16 %v4744, %v4743
        %v4781 = vpack.c.b16 %v4746, %v4745
        %v4782 = vpack.c.b16 %v4748, %v4747
        %v4783 = vpack.c.b16 %v4750, %v4749
        %v4784 = vpack.c.b16 %v4752, %v4751
        %v4785 = vpack.c.b16 %v4754, %v4753
        %v4786 = vpack.c.b16 %v4756, %v4755
        %v4787 = vpack.c.b16 %v4758, %v4757
        %v4788 = vpack.c.b16 %v4760, %v4759
        %v4789 = vpack.c.b16 %v4762, %v4761
        %v4790 = vpack.c.b16 %v4764, %v4763
        %v4791 = vpack.c.b16 %v4766, %v4765
        %v4792 = vpack.c.b16 %v4768, %v4767
        %4817 = vmatprep.subr.bf16.mxu0 0
        %4818 = vmatpush1.bf16.msra.mxu0 %v4769
        %4819 = vmatprep.subr.bf16.mxu0 0
        %4820 = vmatpush1.bf16.msra.mxu0 %v4770
        %4821 = vmatprep.subr.bf16.mxu0 0
        %4822 = vmatpush1.bf16.msra.mxu0 %v4771
        %4823 = vmatprep.subr.bf16.mxu0 0
        %4824 = vmatpush1.bf16.msra.mxu0 %v4772
        %4825 = vmatprep.subr.bf16.mxu0 0
        %4826 = vmatpush1.bf16.msra.mxu0 %v4773
        %4827 = vmatprep.subr.bf16.mxu0 0
        %4828 = vmatpush1.bf16.msra.mxu0 %v4774
        %4829 = vmatprep.subr.bf16.mxu0 0
        %4830 = vmatpush1.bf16.msra.mxu0 %v4775
        %4831 = vmatprep.subr.bf16.mxu0 0
        %4832 = vmatpush1.bf16.msra.mxu0 %v4776
        %4833 = vmatprep.subr.bf16.mxu0 0
        %4834 = vmatpush1.bf16.msra.mxu0 %v4777
        %4835 = vmatprep.subr.bf16.mxu0 0
        %4836 = vmatpush1.bf16.msra.mxu0 %v4778
        %4837 = vmatprep.subr.bf16.mxu0 0
        %4838 = vmatpush1.bf16.msra.mxu0 %v4779
        %4839 = vmatprep.subr.bf16.mxu0 0
        %4840 = vmatpush1.bf16.msra.mxu0 %v4780
        %4841 = vmatprep.subr.bf16.mxu0 0
        %4842 = vmatpush1.bf16.msra.mxu0 %v4781
        %4843 = vmatprep.subr.bf16.mxu0 0
        %4844 = vmatpush1.bf16.msra.mxu0 %v4782
        %4845 = vmatprep.subr.bf16.mxu0 0
        %4846 = vmatpush1.bf16.msra.mxu0 %v4783
        %4847 = vmatprep.subr.bf16.mxu0 0
        %4848 = vmatpush1.bf16.msra.mxu0 %v4784
        %4849 = vmatprep.mubr.bf16.mxu0 %v4602
        %4850 = vmatmul.mubr.bf16.gmra.mrb[0].mxu0 %v4601
        %v4851 = vpop.f32.mrb[0].mxu0
        %v4852 = vadd.f32 0.0, %v4851
        %v4853 = vpop.f32.mrb[0].mxu0
        %v4854 = vpop.f32.mrb[0].mxu0
        %v4855 = vadd.f32 0.0, %v4854
        %v4856 = vpop.f32.mrb[0].mxu0
        %4857 = vmatprep.mubr.bf16.mxu0 %v4605
        %4858 = vmatmul.mubr.bf16.gmra.mrb[0].mxu0 %v4604
        %v4859 = vpop.f32.mrb[0].mxu0
        %v4860 = vadd.f32 0.0, %v4859
        %v4861 = vpop.f32.mrb[0].mxu0
        %v4862 = vpop.f32.mrb[0].mxu0
        %v4863 = vadd.f32 0.0, %v4862
        %v4864 = vpop.f32.mrb[0].mxu0
        %4865 = vmatprep.mubr.bf16.mxu0 %v4608
        %4866 = vmatmul.mubr.bf16.gmra.mrb[0].mxu0 %v4607
        %v4867 = vpop.f32.mrb[0].mxu0
        %v4868 = vadd.f32 0.0, %v4867
        %v4869 = vpop.f32.mrb[0].mxu0
        %v4870 = vpop.f32.mrb[0].mxu0
        %v4871 = vadd.f32 0.0, %v4870
        %v4872 = vpop.f32.mrb[0].mxu0
        %4873 = vmatprep.mubr.bf16.mxu0 %v4611
        %4874 = vmatmul.mubr.bf16.gmra.mrb[0].mxu0 %v4610
        %v4875 = vpop.f32.mrb[0].mxu0
        %v4876 = vadd.f32 0.0, %v4875
        %v4877 = vpop.f32.mrb[0].mxu0
        %v4878 = vpop.f32.mrb[0].mxu0
        %v4879 = vadd.f32 0.0, %v4878
        %v4880 = vpop.f32.mrb[0].mxu0
        %4881 = vmatprep.mubr.bf16.mxu0 %v4614
        %4882 = vmatmul.mubr.bf16.gmra.mrb[0].mxu0 %v4613
        %v4883 = vpop.f32.mrb[0].mxu0
        %v4884 = vadd.f32 0.0, %v4883
        %v4885 = vpop.f32.mrb[0].mxu0
        %v4886 = vpop.f32.mrb[0].mxu0
        %v4887 = vadd.f32 0.0, %v4886
        %v4888 = vpop.f32.mrb[0].mxu0
        %4889 = vmatprep.mubr.bf16.mxu0 %v4617
        %4890 = vmatmul.mubr.bf16.gmra.mrb[0].mxu0 %v4616
        %v4891 = vpop.f32.mrb[0].mxu0
        %v4892 = vadd.f32 0.0, %v4891
        %v4893 = vpop.f32.mrb[0].mxu0
        %v4894 = vpop.f32.mrb[0].mxu0
        %v4895 = vadd.f32 0.0, %v4894
        %v4896 = vpop.f32.mrb[0].mxu0
        %4897 = vmatprep.mubr.bf16.mxu0 %v4620
        %4898 = vmatmul.mubr.bf16.gmra.mrb[0].mxu0 %v4619
        %v4899 = vpop.f32.mrb[0].mxu0
        %v4900 = vadd.f32 0.0, %v4899
        %v4901 = vpop.f32.mrb[0].mxu0
        %v4902 = vpop.f32.mrb[0].mxu0
        %v4903 = vadd.f32 0.0, %v4902
        %v4904 = vpop.f32.mrb[0].mxu0
        %4905 = vmatprep.mubr.bf16.mxu0 %v4623
        %4906 = vmatmul.mubr.bf16.gmra.mrb[0].mxu0 %v4622
        %v4907 = vpop.f32.mrb[0].mxu0
        %v4908 = vadd.f32 0.0, %v4907
        %v4909 = vpop.f32.mrb[0].mxu0
        %v4910 = vpop.f32.mrb[0].mxu0
        %v4911 = vadd.f32 0.0, %v4910
        %v4912 = vpop.f32.mrb[0].mxu0
        %4913 = vdwg.mxu0
        %4914 = vmatprep.subr.bf16.mxu0 0
        %4915 = vmatpush1.bf16.msra.mxu0 %v4785
        %4916 = vmatprep.subr.bf16.mxu0 0
        %4917 = vmatpush1.bf16.msra.mxu0 %v4786
        %4918 = vmatprep.subr.bf16.mxu0 0
        %4919 = vmatpush1.bf16.msra.mxu0 %v4787
        %4920 = vmatprep.subr.bf16.mxu0 0
        %4921 = vmatpush1.bf16.msra.mxu0 %v4788
        %4922 = vmatprep.subr.bf16.mxu0 0
        %4923 = vmatpush1.bf16.msra.mxu0 %v4789
        %4924 = vmatprep.subr.bf16.mxu0 0
        %4925 = vmatpush1.bf16.msra.mxu0 %v4790
        %4926 = vmatprep.subr.bf16.mxu0 0
        %4927 = vmatpush1.bf16.msra.mxu0 %v4791
        %4928 = vmatprep.subr.bf16.mxu0 0
        %4929 = vmatpush1.bf16.msra.mxu0 %v4792
        %4930 = vmatprep.subr.bf16.mxu0 0
        %4931 = vmatpush1.bf16.msra.mxu0 0
        %4932 = vmatprep.subr.bf16.mxu0 0
        %4933 = vmatpush1.bf16.msra.mxu0 0
        %4934 = vmatprep.subr.bf16.mxu0 0
        %4935 = vmatpush1.bf16.msra.mxu0 0
        %4936 = vmatprep.subr.bf16.mxu0 0
        %4937 = vmatpush1.bf16.msra.mxu0 0
        %4938 = vmatprep.subr.bf16.mxu0 0
        %4939 = vmatpush1.bf16.msra.mxu0 0
        %4940 = vmatprep.subr.bf16.mxu0 0
        %4941 = vmatpush1.bf16.msra.mxu0 0
        %4942 = vmatprep.subr.bf16.mxu0 0
        %4943 = vmatpush1.bf16.msra.mxu0 0
        %4944 = vmatprep.subr.bf16.mxu0 0
        %4945 = vmatpush1.bf16.msra.mxu0 0
        %4946 = vmatprep.mubr.bf16.mxu0 0
        %4947 = vmatmul.mubr.bf16.gmra.mrb[0].mxu0 %v4603
        %v4948 = vpop.f32.mrb[0].mxu0
        %v4949 = vadd.f32 %v4852, %v4948
        %v4950 = vpop.f32.mrb[0].mxu0
        %v4951 = vpop.f32.mrb[0].mxu0
        %v4952 = vadd.f32 %v4855, %v4951
        %v4953 = vpop.f32.mrb[0].mxu0
        %4954 = vmatprep.mubr.bf16.mxu0 0
        %4955 = vmatmul.mubr.bf16.gmra.mrb[0].mxu0 %v4606
        %v4956 = vpop.f32.mrb[0].mxu0
        %v4957 = vadd.f32 %v4860, %v4956
        %v4958 = vpop.f32.mrb[0].mxu0
        %v4959 = vpop.f32.mrb[0].mxu0
        %v4960 = vadd.f32 %v4863, %v4959
        %v4961 = vpop.f32.mrb[0].mxu0
        %4962 = vmatprep.mubr.bf16.mxu0 0
        %4963 = vmatmul.mubr.bf16.gmra.mrb[0].mxu0 %v4609
        %v4964 = vpop.f32.mrb[0].mxu0
        %v4965 = vadd.f32 %v4868, %v4964
        %v4966 = vpop.f32.mrb[0].mxu0
        %v4967 = vpop.f32.mrb[0].mxu0
        %v4968 = vadd.f32 %v4871, %v4967
        %v4969 = vpop.f32.mrb[0].mxu0
        %4970 = vmatprep.mubr.bf16.mxu0 0
        %4971 = vmatmul.mubr.bf16.gmra.mrb[0].mxu0 %v4612
        %v4972 = vpop.f32.mrb[0].mxu0
        %v4973 = vadd.f32 %v4876, %v4972
        %v4974 = vpop.f32.mrb[0].mxu0
        %v4975 = vpop.f32.mrb[0].mxu0
        %v4976 = vadd.f32 %v4879, %v4975
        %v4977 = vpop.f32.mrb[0].mxu0
        %4978 = vmatprep.mubr.bf16.mxu0 0
        %4979 = vmatmul.mubr.bf16.gmra.mrb[0].mxu0 %v4615
        %v4980 = vpop.f32.mrb[0].mxu0
        %v4981 = vadd.f32 %v4884, %v4980
        %v4982 = vpop.f32.mrb[0].mxu0
        %v4983 = vpop.f32.mrb[0].mxu0
        %v4984 = vadd.f32 %v4887, %v4983
        %v4985 = vpop.f32.mrb[0].mxu0
        %4986 = vmatprep.mubr.bf16.mxu0 0
        %4987 = vmatmul.mubr.bf16.gmra.mrb[0].mxu0 %v4618
        %v4988 = vpop.f32.mrb[0].mxu0
        %v4989 = vadd.f32 %v4892, %v4988
        %v4990 = vpop.f32.mrb[0].mxu0
        %v4991 = vpop.f32.mrb[0].mxu0
        %v4992 = vadd.f32 %v4895, %v4991
        %v4993 = vpop.f32.mrb[0].mxu0
        %4994 = vmatprep.mubr.bf16.mxu0 0
        %4995 = vmatmul.mubr.bf16.gmra.mrb[0].mxu0 %v4621
        %v4996 = vpop.f32.mrb[0].mxu0
        %v4997 = vadd.f32 %v4900, %v4996
        %v4998 = vpop.f32.mrb[0].mxu0
        %v4999 = vpop.f32.mrb[0].mxu0
        %v5000 = vadd.f32 %v4903, %v4999
        %v5001 = vpop.f32.mrb[0].mxu0
        %5002 = vmatprep.mubr.bf16.mxu0 0
        %5003 = vmatmul.mubr.bf16.gmra.mrb[0].mxu0 %v4624
        %v5004 = vpop.f32.mrb[0].mxu0
        %v5005 = vadd.f32 %v4908, %v5004
        %v5006 = vpop.f32.mrb[0].mxu0
        %v5007 = vpop.f32.mrb[0].mxu0
        %v5008 = vadd.f32 %v4911, %v5007
        %v5009 = vpop.f32.mrb[0].mxu0
        %5010 = vdwg.mxu0
        %v5011 = vmax.f32 %v4949, 1e-05
        %v5012 = vmax.f32 %v4952, 1e-05
        %v5013 = vmax.f32 %v4957, 1e-05
        %v5014 = vmax.f32 %v4960, 1e-05
        %v5015 = vmax.f32 %v4965, 1e-05
        %v5016 = vmax.f32 %v4968, 1e-05
        %v5017 = vmax.f32 %v4973, 1e-05
        %v5018 = vmax.f32 %v4976, 1e-05
        %v5019 = vmax.f32 %v4981, 1e-05
        %v5020 = vmax.f32 %v4984, 1e-05
        %v5021 = vmax.f32 %v4989, 1e-05
        %v5022 = vmax.f32 %v4992, 1e-05
        %v5023 = vmax.f32 %v4997, 1e-05
        %v5024 = vmax.f32 %v5000, 1e-05
        %v5025 = vmax.f32 %v5005, 1e-05
        %v5026 = vmax.f32 %v5008, 1e-05
        %v5027 = vlog2.pop %v5011
        %v5028 = vmul.f32 %v5027, 0.6931472
        %v5029 = vlog2.pop %v5012
        %v5030 = vmul.f32 %v5029, 0.6931472
        %v5031 = vlog2.pop %v5013
        %v5032 = vmul.f32 %v5031, 0.6931472
        %v5033 = vlog2.pop %v5014
        %v5034 = vmul.f32 %v5033, 0.6931472
        %v5035 = vlog2.pop %v5015
        %v5036 = vmul.f32 %v5035, 0.6931472
        %v5037 = vlog2.pop %v5016
        %v5038 = vmul.f32 %v5037, 0.6931472
        %v5039 = vlog2.pop %v5017
        %v5040 = vmul.f32 %v5039, 0.6931472
        %v5041 = vlog2.pop %v5018
        %v5042 = vmul.f32 %v5041, 0.6931472
        %v5043 = vlog2.pop %v5019
        %v5044 = vmul.f32 %v5043, 0.6931472
        %v5045 = vlog2.pop %v5020
        %v5046 = vmul.f32 %v5045, 0.6931472
        %v5047 = vlog2.pop %v5021
        %v5048 = vmul.f32 %v5047, 0.6931472
        %v5049 = vlog2.pop %v5022
        %v5050 = vmul.f32 %v5049, 0.6931472
        %v5051 = vlog2.pop %v5023
        %v5052 = vmul.f32 %v5051, 0.6931472
        %v5053 = vlog2.pop %v5024
        %v5054 = vmul.f32 %v5053, 0.6931472
        %v5055 = vlog2.pop %v5025
        %v5056 = vmul.f32 %v5055, 0.6931472
        %v5057 = vlog2.pop %v5026
        %v5058 = vmul.f32 %v5057, 0.6931472
        %v5059 = vld [vmem:[#allocation10] sm:$0x1]
        %v5061 = vlaneseq
        %v5062 = vshrl.u32 %v5061, 7
        %v5063 = vsub.s32 0, %v5062
        %v5064 = vrot.slane %v5059, %v5063
        %v5066 = vmul.f32 %v5028, %v5064
        %v5067 = vmul.f32 %v5030, %v5064
        %v5068 = vmul.f32 %v5032, %v5064
        %v5069 = vmul.f32 %v5034, %v5064
        %v5070 = vmul.f32 %v5036, %v5064
        %v5071 = vmul.f32 %v5038, %v5064
        %v5072 = vmul.f32 %v5040, %v5064
        %v5073 = vmul.f32 %v5042, %v5064
        %v5074 = vmul.f32 %v5044, %v5064
        %v5075 = vmul.f32 %v5046, %v5064
        %v5076 = vmul.f32 %v5048, %v5064
        %v5077 = vmul.f32 %v5050, %v5064
        %v5078 = vmul.f32 %v5052, %v5064
        %v5079 = vmul.f32 %v5054, %v5064
        %v5080 = vmul.f32 %v5056, %v5064
        %v5081 = vmul.f32 %v5058, %v5064
        %5082 = vst [vmem:[%s357] sm:$0xff] %v5066
        %5083 = vst [vmem:[%s357 + $0x8] sm:$0xff] %v5067
        %5084 = vst [vmem:[%s357 + $0x10] sm:$0xff] %v5068
        %5085 = vst [vmem:[%s357 + $0x18] sm:$0xff] %v5069
        %5086 = vst [vmem:[%s357 + $0x20] sm:$0xff] %v5070
        %5087 = vst [vmem:[%s357 + $0x28] sm:$0xff] %v5071
        %5088 = vst [vmem:[%s357 + $0x30] sm:$0xff] %v5072
        %5089 = vst [vmem:[%s357 + $0x38] sm:$0xff] %v5073
        %5090 = vst [vmem:[%s357 + $0x40] sm:$0xff] %v5074
        %5091 = vst [vmem:[%s357 + $0x48] sm:$0xff] %v5075
        %5092 = vst [vmem:[%s357 + $0x50] sm:$0xff] %v5076
        %5093 = vst [vmem:[%s357 + $0x58] sm:$0xff] %v5077
        %5094 = vst [vmem:[%s357 + $0x60] sm:$0xff] %v5078
        %5095 = vst [vmem:[%s357 + $0x68] sm:$0xff] %v5079
        %5096 = vst [vmem:[%s357 + $0x70] sm:$0xff] %v5080
        %5097 = vst [vmem:[%s357 + $0x78] sm:$0xff] %v5081
        %s5098 = sand.u32 %s171, 1
        %s5099 = scalar_lea.sflag [#allocation4], %s5098
        %s5100 = sand.u32 %s171, 1
        %s5101 = smul.addr %s5100, 128
        %s5102 = scalar_lea.vmem [#allocation11], %s5101
        // Predicated region
        $region61: #{tpu_custom_call.1} parent=39 // pred_check
          %p5103 = pneg %p181
        $region62: #{tpu_custom_call.1} parent=39 // pred_check_branch
          %5105 = sbr.rel (%p5103) target = $region64
        $region63: #{tpu_custom_call.1} parent=39 // pred_region
          %s5106 = smul.u32 16, %s31
          %s5108 = ssub.s32 2048, 2048
          %5109 = vsyncadd %s5099, %s5108
          %s5110 = smul.addr %s30, 16
          %s5111 = sadd.s32 %s5106, %s5110
          %s5112 = smul.addr %s5111, 128
          %s5113 = scalar_lea.hbm %s5, %s5112
          %s5114 = sshll.u32 %s5102, 4
          %s5115 = int_to_ptr.vmem [resolvable:$true] %s5114
          %5120 = dma.vmem_to_hbm [thread:$0]  %s5115, 2048, %s5113, %s5099, 128, 128, 8
        $region64: #{tpu_custom_call.1} parent=39 // pred_fallthru
          _
      $region40: #{tpu_custom_call.1} parent=5 // pred_fallthru
        _
      %p5121 = scmp.le.s32.totalorder 2, %s21
      // Predicated region
      $region65: #{tpu_custom_call.1} parent=5 // pred_check
        %p5122 = pneg %p5121
      $region66: #{tpu_custom_call.1} parent=5 // pred_check_branch
        %5124 = sbr.rel (%p5122) target = $region68
      $region67: #{tpu_custom_call.1} parent=5 // pred_region
        %s5125 = ssub.s32 %s21, 2
        // Predicated region
        $region69: #{tpu_custom_call.1} parent=67 // pred_check
          %p5126 = pneg %p187
        $region70: #{tpu_custom_call.1} parent=67 // pred_check_branch
          %5128 = sbr.rel (%p5126) target = $region72
        $region71: #{tpu_custom_call.1} parent=67 // pred_region
          %s5129 = sand.u32 %s172, 1
          %s5130 = scalar_lea.sflag [#allocation4], %s5129
          %s5131 = sand.u32 %s172, 1
          %s5132 = smul.addr %s5131, 128
          %s5133 = scalar_lea.vmem [#allocation11], %s5132
          %5134 = dma.done %s5130, 2048
        $region72: #{tpu_custom_call.1} parent=67 // pred_fallthru
          _
      $region68: #{tpu_custom_call.1} parent=5 // pred_fallthru
        _
    $region6: #{tpu_custom_call.1} parent=1 // loop_footer
      %s25 = sadd.s32 1, %s21
    $region7: #{tpu_custom_call.1} parent=1 // loop_footer_branch
      %20 = sbr.rel target = $region3
    $region8: #{tpu_custom_call.1} parent=1 // loop_exit
      _
    %5135 = vsyncpa [#allocation3], 1
    %s5136 = scalar_lea.sflag [#allocation3], 1
    %5137 = vsyncpa %s5136, 1
    %5138 = vsyncpa [#allocation6], 1
    %s5139 = scalar_lea.sflag [#allocation6], 1
    %5140 = vsyncpa %s5139, 1
    %5141 = vsyncpa [#allocation9], 1
    %5142 = vsyncpa [#allocation4], 1
    %s5143 = scalar_lea.sflag [#allocation4], 1
    %5144 = vsyncpa %s5143, 1

</llo_original>
